<compile_context>
chip_gen: v6e
topology: v6e:2x2x1
jax: 0.10.0
libtpu: 0.0.40
codegen_flags: <defaults>
</compile_context>

<pallas_src>
import functools
import numpy as np
import jax
import jax.numpy as jnp
from jax import lax
from jax.experimental import pallas as pl
from jax.experimental.pallas import tpu as pltpu

BN_EPS = 1e-5
OFF = 8  # sublane offset of the padded interior (keeps the interior store vreg-aligned)


def _round_up(x, m):
    return ((x + m - 1) // m) * m


def _bn_fold(p):
    scale = p['gamma'] / jnp.sqrt(p['var'] + BN_EPS)
    bias = p['beta'] - p['mean'] * scale
    return scale, bias


# ---------------------------------------------------------------------------
# Kernel 1: fused unit chain (+ optional stride-1 max-pool window, + optional
#           identity residual) for one batch element, entirely in VMEM.
# refs = (x, [dw, pw, scale, bias] * n_units, out, pad_0..pad_{n-1}[, pool_pad])
# ---------------------------------------------------------------------------
def _block_fused_kernel(*refs, n_units, first_relu, do_pool, fuse_residual,
                        H, W, unit_dims):
    x_ref = refs[0]
    o_ref = refs[1 + 4 * n_units]
    pad_refs = refs[2 + 4 * n_units:]

    h = x_ref[0]                                           # (H, W, Cin) f32

    for u in range(n_units):
        dw_ref, pw_ref, s_ref, b_ref = refs[1 + 4 * u: 5 + 4 * u]
        cin, cout = unit_dims[u]
        pad = pad_refs[u]                                  # (H+2, OFF+W+1, cin)

        if u > 0 or first_relu:
            h = jnp.maximum(h, 0.0)

        # Zero-pad the activation (halo of 1) via the VMEM scratch pad.
        pad[...] = jnp.zeros((H + 2, OFF + W + 1, cin), jnp.float32)
        pad[1:H + 1, OFF:OFF + W, :] = h

        # Depthwise 3x3, stride 1, pad 1, bias=False (9 shifted multiply-adds).
        acc = jnp.zeros((H, W, cin), jnp.float32)
        for kh in range(3):
            for kw in range(3):
                w_tap = dw_ref[kh, kw:kw + 1, :].reshape(1, 1, cin)
                tap = pad[kh:kh + H, OFF - 1 + kw:OFF - 1 + kw + W, :]
                acc = acc + tap * w_tap

        # Pointwise 1x1 conv (MXU matmul) + folded eval-mode BatchNorm.
        y = jnp.dot(acc.reshape(H * W, cin), pw_ref[...],
                    preferred_element_type=jnp.float32)
        y = y * s_ref[...] + b_ref[...]
        h = y.reshape(H, W, cout)

    if do_pool:
        cpool = unit_dims[-1][1]
        pad = pad_refs[n_units]                            # (H+2, OFF+W+1, cpool)
        pad[...] = jnp.full((H + 2, OFF + W + 1, cpool), -jnp.inf, jnp.float32)
        pad[1:H + 1, OFF:OFF + W, :] = h
        m = h                                              # center tap
        for kh in range(3):
            for kw in range(3):
                if kh == 1 and kw == 1:
                    continue
                m = jnp.maximum(m, pad[kh:kh + H, OFF - 1 + kw:OFF - 1 + kw + W, :])
        h = m                                              # stride-1 window max

    if fuse_residual:
        h = h + x_ref[0]

    o_ref[0] = h.astype(o_ref.dtype)


# ---------------------------------------------------------------------------
# Kernel 2: skip branch (1x1 conv + BN) fused with the residual add.
# out = (x @ w) * scale + bias + y
# ---------------------------------------------------------------------------
def _skip_add_kernel(x_ref, w_ref, s_ref, b_ref, y_ref, o_ref):
    acc = jnp.dot(x_ref[...], w_ref[...], preferred_element_type=jnp.float32)
    o_ref[...] = (acc * s_ref[...] + b_ref[...] + y_ref[...]).astype(o_ref.dtype)


def _skip_residual(xs2d, w, scale, bias, ys2d):
    M, K = xs2d.shape
    Nc = w.shape[1]
    TM = min(512, _round_up(M, 8))
    Mp = _round_up(M, TM)
    xs_p = jnp.pad(xs2d, ((0, Mp - M), (0, 0)))
    ys_p = jnp.pad(ys2d, ((0, Mp - M), (0, 0)))
    out = pl.pallas_call(
        _skip_add_kernel,
        out_shape=jax.ShapeDtypeStruct((Mp, Nc), jnp.float32),
        grid_spec=pltpu.PrefetchScalarGridSpec(
            num_scalar_prefetch=0,
            grid=(Mp // TM,),
            in_specs=[
                pl.BlockSpec((TM, K), lambda i: (i, 0)),
                pl.BlockSpec((K, Nc), lambda i: (0, 0)),
                pl.BlockSpec((1, Nc), lambda i: (0, 0)),
                pl.BlockSpec((1, Nc), lambda i: (0, 0)),
                pl.BlockSpec((TM, Nc), lambda i: (i, 0)),
            ],
            out_specs=pl.BlockSpec((TM, Nc), lambda i: (i, 0)),
        ),
        compiler_params=pltpu.CompilerParams(dimension_semantics=("parallel",)),
    )(xs_p, w, scale.reshape(1, -1), bias.reshape(1, -1), ys_p)
    return out[:M]


# ---------------------------------------------------------------------------
# Block forward (NCHW in / NCHW out)
# ---------------------------------------------------------------------------
def block_forward(params, x_nchw, cfg):
    in_f, out_f, s = cfg['in_filters'], cfg['out_filters'], cfg['strides']
    x = jnp.transpose(x_nchw, (0, 2, 3, 1)).astype(jnp.float32)   # NCHW -> NHWC
    N, H, W, _ = x.shape

    units = params['units']
    n_units = len(units)
    unit_dims = tuple((int(u['dw_w'].shape[-1]), int(u['pw_w'].shape[-1]))
                      for u in units)
    cout_last = unit_dims[-1][1]
    has_skip = (out_f != in_f) or (s != 1)
    do_pool = (s != 1)

    unit_inputs, unit_specs = [], []
    for u, (cin, cout) in zip(units, unit_dims):
        scale, bias = _bn_fold(u)
        unit_inputs += [u['dw_w'], u['pw_w'],
                        scale.reshape(1, cout), bias.reshape(1, cout)]
        unit_specs += [
            pl.BlockSpec((3, 3, cin), lambda n: (0, 0, 0)),
            pl.BlockSpec((cin, cout), lambda n: (0, 0)),
            pl.BlockSpec((1, cout), lambda n: (0, 0)),
            pl.BlockSpec((1, cout), lambda n: (0, 0)),
        ]

    scratch = [pltpu.VMEM((H + 2, OFF + W + 1, cin), jnp.float32)
               for (cin, _) in unit_dims]
    if do_pool:
        scratch.append(pltpu.VMEM((H + 2, OFF + W + 1, cout_last), jnp.float32))

    kernel = functools.partial(
        _block_fused_kernel, n_units=n_units,
        first_relu=bool(cfg['start_with_relu']), do_pool=do_pool,
        fuse_residual=not has_skip, H=H, W=W, unit_dims=unit_dims)

    y = pl.pallas_call(
        kernel,
        out_shape=jax.ShapeDtypeStruct((N, H, W, cout_last), jnp.float32),
        grid_spec=pltpu.PrefetchScalarGridSpec(
            num_scalar_prefetch=0,
            grid=(N,),
            in_specs=[pl.BlockSpec((1, H, W, in_f), lambda n: (n, 0, 0, 0))]
                     + unit_specs,
            out_specs=pl.BlockSpec((1, H, W, cout_last), lambda n: (n, 0, 0, 0)),
            scratch_shapes=scratch,
        ),
        compiler_params=pltpu.CompilerParams(dimension_semantics=("parallel",)),
    )(x, *unit_inputs)

    if has_skip:
        ys = y[:, ::s, ::s, :] if s != 1 else y   # strided subsample of pooled map
        xs = x[:, ::s, ::s, :] if s != 1 else x   # strided 1x1-conv input
        Nb, Ho, Wo, _ = ys.shape
        scale, bias = _bn_fold(params['skip'])
        out2d = _skip_residual(xs.reshape(Nb * Ho * Wo, in_f), params['skip']['w'],
                               scale, bias, ys.reshape(Nb * Ho * Wo, cout_last))
        out = out2d.reshape(Nb, Ho, Wo, cout_last)
    else:
        out = y
    return jnp.transpose(out, (0, 3, 1, 2))                        # NHWC -> NCHW


# ---------------------------------------------------------------------------
# Parameter construction (mirrors Block.__init__ structure)
# ---------------------------------------------------------------------------
def unit_configs(in_filters, out_filters, reps, grow_first):
    cfgs = []
    filters = in_filters
    if grow_first:
        cfgs.append((in_filters, out_filters))
        filters = out_filters
    for _ in range(reps - 1):
        cfgs.append((filters, filters))
    if not grow_first:
        cfgs.append((in_filters, out_filters))
    return cfgs


def init_params(key, cfg):
    in_f, out_f = cfg['in_filters'], cfg['out_filters']
    units = []
    for cin, cout in unit_configs(in_f, out_f, cfg['reps'], cfg['grow_first']):
        key, k1, k2, k3, k4 = jax.random.split(key, 5)
        units.append(dict(
            dw_w=jax.random.normal(k1, (3, 3, cin), jnp.float32) / 3.0,
            pw_w=jax.random.normal(k2, (cin, cout), jnp.float32) / np.sqrt(cin),
            gamma=1.0 + 0.1 * jax.random.normal(k3, (cout,), jnp.float32),
            beta=0.1 * jax.random.normal(k4, (cout,), jnp.float32),
            mean=jnp.zeros((cout,), jnp.float32),
            var=jnp.ones((cout,), jnp.float32),
        ))
    params = dict(units=units)
    if (out_f != in_f) or (cfg['strides'] != 1):
        key, k1, k2, k3 = jax.random.split(key, 4)
        params['skip'] = dict(
            w=jax.random.normal(k1, (in_f, out_f), jnp.float32) / np.sqrt(in_f),
            gamma=1.0 + 0.1 * jax.random.normal(k2, (out_f,), jnp.float32),
            beta=0.1 * jax.random.normal(k3, (out_f,), jnp.float32),
            mean=jnp.zeros((out_f,), jnp.float32),
            var=jnp.ones((out_f,), jnp.float32),
        )
    return params


# ---------------------------------------------------------------------------
# Pure-JAX f32 reference (numerical sanity check)
# ---------------------------------------------------------------------------
def _ref_dwconv(x, w):
    N, H, W, C = x.shape
    xp = jnp.pad(x, ((0, 0), (1, 1), (1, 1), (0, 0)))
    out = jnp.zeros_like(x)
    for kh in range(3):
        for kw in range(3):
            out = out + xp[:, kh:kh + H, kw:kw + W, :] * w[kh, kw]
    return out


def _ref_bn(x, p):
    scale, bias = _bn_fold(p)
    return x * scale + bias


def ref_block_forward(params, x_nchw, cfg):
    s = cfg['strides']
    x = jnp.transpose(x_nchw, (0, 2, 3, 1)).astype(jnp.float32)
    inp = x
    for idx, unit in enumerate(params['units']):
        if idx > 0 or cfg['start_with_relu']:
            x = jnp.maximum(x, 0.0)
        x = _ref_dwconv(x, unit['dw_w'])
        x = jnp.einsum('nhwc,cd->nhwd', x, unit['pw_w'],
                       precision=lax.Precision.HIGHEST)
        x = _ref_bn(x, unit)
    if s != 1:
        x = lax.reduce_window(x, -jnp.inf, lax.max,
                              window_dimensions=(1, 3, 3, 1),
                              window_strides=(1, s, s, 1),
                              padding=((0, 0), (1, 1), (1, 1), (0, 0)))
    if (cfg['out_filters'] != cfg['in_filters']) or (s != 1):
        sk = inp[:, ::s, ::s, :]
        sk = jnp.einsum('nhwc,cd->nhwd', sk, params['skip']['w'],
                        precision=lax.Precision.HIGHEST)
        sk = _ref_bn(sk, params['skip'])
    else:
        sk = inp
    return jnp.transpose(x + sk, (0, 3, 1, 2))


if __name__ == "__main__":
    key = jax.random.PRNGKey(0)

    # Config 1: Block(8, 16, reps=2, strides=2, start_with_relu=True, grow_first=True)
    cfg1 = dict(in_filters=8, out_filters=16, reps=2, strides=2,
                start_with_relu=True, grow_first=True)
    key, pk1, xk1 = jax.random.split(key, 3)
    params1 = init_params(pk1, cfg1)
    x1 = jax.random.normal(xk1, (2, cfg1['in_filters'], 16, 16), jnp.float32)
    fwd1 = jax.jit(functools.partial(block_forward, cfg=cfg1))
    out1 = jax.block_until_ready(fwd1(params1, x1))
    Ho = (16 - 1) // cfg1['strides'] + 1
    assert out1.shape == (2, cfg1['out_filters'], Ho, Ho), out1.shape
    assert bool(jnp.all(jnp.isfinite(out1)))
    ref1 = ref_block_forward(params1, x1, cfg1)
    err1 = float(jnp.max(jnp.abs(out1 - ref1)) / (jnp.max(jnp.abs(ref1)) + 1e-6))
    assert err1 < 2e-2, f"config1 mismatch vs reference: rel-err {err1:.5f}"

    # Config 2: identity-skip path — Block(16, 16, reps=2, strides=1,
    #           start_with_relu=False, grow_first=True)
    cfg2 = dict(in_filters=16, out_filters=16, reps=2, strides=1,
                start_with_relu=False, grow_first=True)
    key, pk2, xk2 = jax.random.split(key, 3)
    params2 = init_params(pk2, cfg2)
    x2 = jax.random.normal(xk2, (2, cfg2['in_filters'], 16, 16), jnp.float32)
    fwd2 = jax.jit(functools.partial(block_forward, cfg=cfg2))
    out2 = jax.block_until_ready(fwd2(params2, x2))
    assert out2.shape == (2, 16, 16, 16), out2.shape
    assert bool(jnp.all(jnp.isfinite(out2)))
    ref2 = ref_block_forward(params2, x2, cfg2)
    err2 = float(jnp.max(jnp.abs(out2 - ref2)) / (jnp.max(jnp.abs(ref2)) + 1e-6))
    assert err2 < 2e-2, f"config2 mismatch vs reference: rel-err {err2:.5f}"

    print("KERNEL_OK")
</pallas_src>

<mosaic_0001>
module attributes {stable_mosaic.version = 11 : i64} {
  func.func @_block_fused_kernel(%arg0: i32, %arg1: memref<1x16x16x8xf32, #tpu.memory_space<vmem>>, %arg2: memref<3x3x8xf32, #tpu.memory_space<vmem>>, %arg3: memref<8x16xf32, #tpu.memory_space<vmem>>, %arg4: memref<1x16xf32, #tpu.memory_space<vmem>>, %arg5: memref<1x16xf32, #tpu.memory_space<vmem>>, %arg6: memref<3x3x16xf32, #tpu.memory_space<vmem>>, %arg7: memref<16x16xf32, #tpu.memory_space<vmem>>, %arg8: memref<1x16xf32, #tpu.memory_space<vmem>>, %arg9: memref<1x16xf32, #tpu.memory_space<vmem>>, %arg10: memref<1x16x16x16xf32, #tpu.memory_space<vmem>>, %arg11: memref<18x25x8xf32, #tpu.memory_space<vmem>>, %arg12: memref<18x25x16xf32, #tpu.memory_space<vmem>>, %arg13: memref<18x25x16xf32, #tpu.memory_space<vmem>>) attributes {dimension_semantics = [#tpu.dimension_semantics<parallel>], iteration_bounds = array<i64: 2>, scalar_prefetch = 0 : i64, scratch_operands = 3 : i64, tpu.core_type = #tpu.core_type<tc>, window_params = [{transform_indices = @transform_0, window_bounds = array<i64: 1, 16, 16, 8>}, {pipeline_mode = #tpu.pipeline_mode<synchronous>, transform_indices = @transform_1, window_bounds = array<i64: 3, 3, 8>}, {pipeline_mode = #tpu.pipeline_mode<synchronous>, transform_indices = @transform_2, window_bounds = array<i64: 8, 16>}, {pipeline_mode = #tpu.pipeline_mode<synchronous>, transform_indices = @transform_3, window_bounds = array<i64: 1, 16>}, {pipeline_mode = #tpu.pipeline_mode<synchronous>, transform_indices = @transform_4, window_bounds = array<i64: 1, 16>}, {pipeline_mode = #tpu.pipeline_mode<synchronous>, transform_indices = @transform_5, window_bounds = array<i64: 3, 3, 16>}, {pipeline_mode = #tpu.pipeline_mode<synchronous>, transform_indices = @transform_6, window_bounds = array<i64: 16, 16>}, {pipeline_mode = #tpu.pipeline_mode<synchronous>, transform_indices = @transform_7, window_bounds = array<i64: 1, 16>}, {pipeline_mode = #tpu.pipeline_mode<synchronous>, transform_indices = @transform_8, window_bounds = array<i64: 1, 16>}, {transform_indices = @transform_9, window_bounds = array<i64: 1, 16, 16, 16>}]} {
    %c0 = arith.constant 0 : index
    %c0_0 = arith.constant 0 : index
    %c0_1 = arith.constant 0 : index
    %c0_2 = arith.constant 0 : index
    %0 = vector.load %arg1[%c0, %c0_0, %c0_1, %c0_2] : memref<1x16x16x8xf32, #tpu.memory_space<vmem>>, vector<1x16x16x8xf32>
    %1 = vector.shape_cast %0 : vector<1x16x16x8xf32> to vector<16x16x8xf32>
    %cst = arith.constant 0.000000e+00 : f32
    %2 = vector.broadcast %cst : f32 to vector<16x16x8xf32>
    %3 = arith.maximumf %1, %2 : vector<16x16x8xf32>
    %cst_3 = arith.constant 0.000000e+00 : f32
    %4 = vector.broadcast %cst_3 : f32 to vector<18x25x8xf32>
    %c0_4 = arith.constant 0 : index
    %c0_5 = arith.constant 0 : index
    %c0_6 = arith.constant 0 : index
    %5 = vector.load %arg11[%c0_4, %c0_5, %c0_6] : memref<18x25x8xf32, #tpu.memory_space<vmem>>, vector<18x25x8xf32>
    tpu.vector_store %arg11[%c0_4, %c0_5, %c0_6], %4 {strides = array<i32>} : memref<18x25x8xf32, #tpu.memory_space<vmem>>, vector<18x25x8xf32>,
    %c1 = arith.constant 1 : index
    %c8 = arith.constant 8 : index
    %c0_7 = arith.constant 0 : index
    %6 = vector.load %arg11[%c1, %c8, %c0_7] : memref<18x25x8xf32, #tpu.memory_space<vmem>>, vector<16x16x8xf32>
    tpu.vector_store %arg11[%c1, %c8, %c0_7], %3 {strides = array<i32>} : memref<18x25x8xf32, #tpu.memory_space<vmem>>, vector<16x16x8xf32>,
    %cst_8 = arith.constant 0.000000e+00 : f32
    %7 = vector.broadcast %cst_8 : f32 to vector<16x16x8xf32>
    %c0_9 = arith.constant 0 : index
    %c0_10 = arith.constant 0 : index
    %c0_11 = arith.constant 0 : index
    %8 = vector.load %arg2[%c0_9, %c0_10, %c0_11] : memref<3x3x8xf32, #tpu.memory_space<vmem>>, vector<1x1x8xf32>
    %9 = vector.shape_cast %8 : vector<1x1x8xf32> to vector<1x8xf32>
    %10 = vector.shape_cast %9 : vector<1x8xf32> to vector<1x1x8xf32>
    %c0_12 = arith.constant 0 : index
    %c7 = arith.constant 7 : index
    %c0_13 = arith.constant 0 : index
    %11 = vector.load %arg11[%c0_12, %c7, %c0_13] : memref<18x25x8xf32, #tpu.memory_space<vmem>>, vector<16x16x8xf32>
    %12 = vector.broadcast %10 : vector<1x1x8xf32> to vector<16x16x8xf32>
    %13 = arith.mulf %11, %12 : vector<16x16x8xf32>
    %14 = arith.addf %7, %13 : vector<16x16x8xf32>
    %c0_14 = arith.constant 0 : index
    %c1_15 = arith.constant 1 : index
    %c0_16 = arith.constant 0 : index
    %15 = vector.load %arg2[%c0_14, %c1_15, %c0_16] : memref<3x3x8xf32, #tpu.memory_space<vmem>>, vector<1x1x8xf32>
    %16 = vector.shape_cast %15 : vector<1x1x8xf32> to vector<1x8xf32>
    %17 = vector.shape_cast %16 : vector<1x8xf32> to vector<1x1x8xf32>
    %c0_17 = arith.constant 0 : index
    %c8_18 = arith.constant 8 : index
    %c0_19 = arith.constant 0 : index
    %18 = vector.load %arg11[%c0_17, %c8_18, %c0_19] : memref<18x25x8xf32, #tpu.memory_space<vmem>>, vector<16x16x8xf32>
    %19 = vector.broadcast %17 : vector<1x1x8xf32> to vector<16x16x8xf32>
    %20 = arith.mulf %18, %19 : vector<16x16x8xf32>
    %21 = arith.addf %14, %20 : vector<16x16x8xf32>
    %c0_20 = arith.constant 0 : index
    %c2 = arith.constant 2 : index
    %c0_21 = arith.constant 0 : index
    %22 = vector.load %arg2[%c0_20, %c2, %c0_21] : memref<3x3x8xf32, #tpu.memory_space<vmem>>, vector<1x1x8xf32>
    %23 = vector.shape_cast %22 : vector<1x1x8xf32> to vector<1x8xf32>
    %24 = vector.shape_cast %23 : vector<1x8xf32> to vector<1x1x8xf32>
    %c0_22 = arith.constant 0 : index
    %c9 = arith.constant 9 : index
    %c0_23 = arith.constant 0 : index
    %25 = vector.load %arg11[%c0_22, %c9, %c0_23] : memref<18x25x8xf32, #tpu.memory_space<vmem>>, vector<16x16x8xf32>
    %26 = vector.broadcast %24 : vector<1x1x8xf32> to vector<16x16x8xf32>
    %27 = arith.mulf %25, %26 : vector<16x16x8xf32>
    %28 = arith.addf %21, %27 : vector<16x16x8xf32>
    %c1_24 = arith.constant 1 : index
    %c0_25 = arith.constant 0 : index
    %c0_26 = arith.constant 0 : index
    %29 = vector.load %arg2[%c1_24, %c0_25, %c0_26] : memref<3x3x8xf32, #tpu.memory_space<vmem>>, vector<1x1x8xf32>
    %30 = vector.shape_cast %29 : vector<1x1x8xf32> to vector<1x8xf32>
    %31 = vector.shape_cast %30 : vector<1x8xf32> to vector<1x1x8xf32>
    %c1_27 = arith.constant 1 : index
    %c7_28 = arith.constant 7 : index
    %c0_29 = arith.constant 0 : index
    %32 = vector.load %arg11[%c1_27, %c7_28, %c0_29] : memref<18x25x8xf32, #tpu.memory_space<vmem>>, vector<16x16x8xf32>
    %33 = vector.broadcast %31 : vector<1x1x8xf32> to vector<16x16x8xf32>
    %34 = arith.mulf %32, %33 : vector<16x16x8xf32>
    %35 = arith.addf %28, %34 : vector<16x16x8xf32>
    %c1_30 = arith.constant 1 : index
    %c1_31 = arith.constant 1 : index
    %c0_32 = arith.constant 0 : index
    %36 = vector.load %arg2[%c1_30, %c1_31, %c0_32] : memref<3x3x8xf32, #tpu.memory_space<vmem>>, vector<1x1x8xf32>
    %37 = vector.shape_cast %36 : vector<1x1x8xf32> to vector<1x8xf32>
    %38 = vector.shape_cast %37 : vector<1x8xf32> to vector<1x1x8xf32>
    %c1_33 = arith.constant 1 : index
    %c8_34 = arith.constant 8 : index
    %c0_35 = arith.constant 0 : index
    %39 = vector.load %arg11[%c1_33, %c8_34, %c0_35] : memref<18x25x8xf32, #tpu.memory_space<vmem>>, vector<16x16x8xf32>
    %40 = vector.broadcast %38 : vector<1x1x8xf32> to vector<16x16x8xf32>
    %41 = arith.mulf %39, %40 : vector<16x16x8xf32>
    %42 = arith.addf %35, %41 : vector<16x16x8xf32>
    %c1_36 = arith.constant 1 : index
    %c2_37 = arith.constant 2 : index
    %c0_38 = arith.constant 0 : index
    %43 = vector.load %arg2[%c1_36, %c2_37, %c0_38] : memref<3x3x8xf32, #tpu.memory_space<vmem>>, vector<1x1x8xf32>
    %44 = vector.shape_cast %43 : vector<1x1x8xf32> to vector<1x8xf32>
    %45 = vector.shape_cast %44 : vector<1x8xf32> to vector<1x1x8xf32>
    %c1_39 = arith.constant 1 : index
    %c9_40 = arith.constant 9 : index
    %c0_41 = arith.constant 0 : index
    %46 = vector.load %arg11[%c1_39, %c9_40, %c0_41] : memref<18x25x8xf32, #tpu.memory_space<vmem>>, vector<16x16x8xf32>
    %47 = vector.broadcast %45 : vector<1x1x8xf32> to vector<16x16x8xf32>
    %48 = arith.mulf %46, %47 : vector<16x16x8xf32>
    %49 = arith.addf %42, %48 : vector<16x16x8xf32>
    %c2_42 = arith.constant 2 : index
    %c0_43 = arith.constant 0 : index
    %c0_44 = arith.constant 0 : index
    %50 = vector.load %arg2[%c2_42, %c0_43, %c0_44] : memref<3x3x8xf32, #tpu.memory_space<vmem>>, vector<1x1x8xf32>
    %51 = vector.shape_cast %50 : vector<1x1x8xf32> to vector<1x8xf32>
    %52 = vector.shape_cast %51 : vector<1x8xf32> to vector<1x1x8xf32>
    %c2_45 = arith.constant 2 : index
    %c7_46 = arith.constant 7 : index
    %c0_47 = arith.constant 0 : index
    %53 = vector.load %arg11[%c2_45, %c7_46, %c0_47] : memref<18x25x8xf32, #tpu.memory_space<vmem>>, vector<16x16x8xf32>
    %54 = vector.broadcast %52 : vector<1x1x8xf32> to vector<16x16x8xf32>
    %55 = arith.mulf %53, %54 : vector<16x16x8xf32>
    %56 = arith.addf %49, %55 : vector<16x16x8xf32>
    %c2_48 = arith.constant 2 : index
    %c1_49 = arith.constant 1 : index
    %c0_50 = arith.constant 0 : index
    %57 = vector.load %arg2[%c2_48, %c1_49, %c0_50] : memref<3x3x8xf32, #tpu.memory_space<vmem>>, vector<1x1x8xf32>
    %58 = vector.shape_cast %57 : vector<1x1x8xf32> to vector<1x8xf32>
    %59 = vector.shape_cast %58 : vector<1x8xf32> to vector<1x1x8xf32>
    %c2_51 = arith.constant 2 : index
    %c8_52 = arith.constant 8 : index
    %c0_53 = arith.constant 0 : index
    %60 = vector.load %arg11[%c2_51, %c8_52, %c0_53] : memref<18x25x8xf32, #tpu.memory_space<vmem>>, vector<16x16x8xf32>
    %61 = vector.broadcast %59 : vector<1x1x8xf32> to vector<16x16x8xf32>
    %62 = arith.mulf %60, %61 : vector<16x16x8xf32>
    %63 = arith.addf %56, %62 : vector<16x16x8xf32>
    %c2_54 = arith.constant 2 : index
    %c2_55 = arith.constant 2 : index
    %c0_56 = arith.constant 0 : index
    %64 = vector.load %arg2[%c2_54, %c2_55, %c0_56] : memref<3x3x8xf32, #tpu.memory_space<vmem>>, vector<1x1x8xf32>
    %65 = vector.shape_cast %64 : vector<1x1x8xf32> to vector<1x8xf32>
    %66 = vector.shape_cast %65 : vector<1x8xf32> to vector<1x1x8xf32>
    %c2_57 = arith.constant 2 : index
    %c9_58 = arith.constant 9 : index
    %c0_59 = arith.constant 0 : index
    %67 = vector.load %arg11[%c2_57, %c9_58, %c0_59] : memref<18x25x8xf32, #tpu.memory_space<vmem>>, vector<16x16x8xf32>
    %68 = vector.broadcast %66 : vector<1x1x8xf32> to vector<16x16x8xf32>
    %69 = arith.mulf %67, %68 : vector<16x16x8xf32>
    %70 = arith.addf %63, %69 : vector<16x16x8xf32>
    %71 = vector.shape_cast %70 : vector<16x16x8xf32> to vector<256x8xf32>
    %c0_60 = arith.constant 0 : index
    %c0_61 = arith.constant 0 : index
    %72 = vector.load %arg3[%c0_60, %c0_61] : memref<8x16xf32, #tpu.memory_space<vmem>>, vector<8x16xf32>
    %cst_62 = arith.constant dense<0.000000e+00> : vector<256x16xf32>
    %73 = tpu.matmul %71, %72, %cst_62 {dimension_numbers = #tpu.dot_dimension_numbers<[1], [0], [0], [1], [0, 0, 1, 1], [], []>} : vector<256x8xf32>, vector<8x16xf32>, vector<256x16xf32> -> vector<256x16xf32>
    %c0_63 = arith.constant 0 : index
    %c0_64 = arith.constant 0 : index
    %74 = vector.load %arg4[%c0_63, %c0_64] : memref<1x16xf32, #tpu.memory_space<vmem>>, vector<1x16xf32>
    %75 = vector.broadcast %74 : vector<1x16xf32> to vector<256x16xf32>
    %76 = arith.mulf %73, %75 : vector<256x16xf32>
    %c0_65 = arith.constant 0 : index
    %c0_66 = arith.constant 0 : index
    %77 = vector.load %arg5[%c0_65, %c0_66] : memref<1x16xf32, #tpu.memory_space<vmem>>, vector<1x16xf32>
    %78 = vector.broadcast %77 : vector<1x16xf32> to vector<256x16xf32>
    %79 = arith.addf %76, %78 : vector<256x16xf32>
    %80 = vector.shape_cast %79 : vector<256x16xf32> to vector<16x16x16xf32>
    %cst_67 = arith.constant 0.000000e+00 : f32
    %81 = vector.broadcast %cst_67 : f32 to vector<16x16x16xf32>
    %82 = arith.maximumf %80, %81 : vector<16x16x16xf32>
    %cst_68 = arith.constant 0.000000e+00 : f32
    %83 = vector.broadcast %cst_68 : f32 to vector<18x25x16xf32>
    %c0_69 = arith.constant 0 : index
    %c0_70 = arith.constant 0 : index
    %c0_71 = arith.constant 0 : index
    %84 = vector.load %arg12[%c0_69, %c0_70, %c0_71] : memref<18x25x16xf32, #tpu.memory_space<vmem>>, vector<18x25x16xf32>
    tpu.vector_store %arg12[%c0_69, %c0_70, %c0_71], %83 {strides = array<i32>} : memref<18x25x16xf32, #tpu.memory_space<vmem>>, vector<18x25x16xf32>,
    %c1_72 = arith.constant 1 : index
    %c8_73 = arith.constant 8 : index
    %c0_74 = arith.constant 0 : index
    %85 = vector.load %arg12[%c1_72, %c8_73, %c0_74] : memref<18x25x16xf32, #tpu.memory_space<vmem>>, vector<16x16x16xf32>
    tpu.vector_store %arg12[%c1_72, %c8_73, %c0_74], %82 {strides = array<i32>} : memref<18x25x16xf32, #tpu.memory_space<vmem>>, vector<16x16x16xf32>,
    %cst_75 = arith.constant 0.000000e+00 : f32
    %86 = vector.broadcast %cst_75 : f32 to vector<16x16x16xf32>
    %c0_76 = arith.constant 0 : index
    %c0_77 = arith.constant 0 : index
    %c0_78 = arith.constant 0 : index
    %87 = vector.load %arg6[%c0_76, %c0_77, %c0_78] : memref<3x3x16xf32, #tpu.memory_space<vmem>>, vector<1x1x16xf32>
    %88 = vector.shape_cast %87 : vector<1x1x16xf32> to vector<1x16xf32>
    %89 = vector.shape_cast %88 : vector<1x16xf32> to vector<1x1x16xf32>
    %c0_79 = arith.constant 0 : index
    %c7_80 = arith.constant 7 : index
    %c0_81 = arith.constant 0 : index
    %90 = vector.load %arg12[%c0_79, %c7_80, %c0_81] : memref<18x25x16xf32, #tpu.memory_space<vmem>>, vector<16x16x16xf32>
    %91 = vector.broadcast %89 : vector<1x1x16xf32> to vector<16x16x16xf32>
    %92 = arith.mulf %90, %91 : vector<16x16x16xf32>
    %93 = arith.addf %86, %92 : vector<16x16x16xf32>
    %c0_82 = arith.constant 0 : index
    %c1_83 = arith.constant 1 : index
    %c0_84 = arith.constant 0 : index
    %94 = vector.load %arg6[%c0_82, %c1_83, %c0_84] : memref<3x3x16xf32, #tpu.memory_space<vmem>>, vector<1x1x16xf32>
    %95 = vector.shape_cast %94 : vector<1x1x16xf32> to vector<1x16xf32>
    %96 = vector.shape_cast %95 : vector<1x16xf32> to vector<1x1x16xf32>
    %c0_85 = arith.constant 0 : index
    %c8_86 = arith.constant 8 : index
    %c0_87 = arith.constant 0 : index
    %97 = vector.load %arg12[%c0_85, %c8_86, %c0_87] : memref<18x25x16xf32, #tpu.memory_space<vmem>>, vector<16x16x16xf32>
    %98 = vector.broadcast %96 : vector<1x1x16xf32> to vector<16x16x16xf32>
    %99 = arith.mulf %97, %98 : vector<16x16x16xf32>
    %100 = arith.addf %93, %99 : vector<16x16x16xf32>
    %c0_88 = arith.constant 0 : index
    %c2_89 = arith.constant 2 : index
    %c0_90 = arith.constant 0 : index
    %101 = vector.load %arg6[%c0_88, %c2_89, %c0_90] : memref<3x3x16xf32, #tpu.memory_space<vmem>>, vector<1x1x16xf32>
    %102 = vector.shape_cast %101 : vector<1x1x16xf32> to vector<1x16xf32>
    %103 = vector.shape_cast %102 : vector<1x16xf32> to vector<1x1x16xf32>
    %c0_91 = arith.constant 0 : index
    %c9_92 = arith.constant 9 : index
    %c0_93 = arith.constant 0 : index
    %104 = vector.load %arg12[%c0_91, %c9_92, %c0_93] : memref<18x25x16xf32, #tpu.memory_space<vmem>>, vector<16x16x16xf32>
    %105 = vector.broadcast %103 : vector<1x1x16xf32> to vector<16x16x16xf32>
    %106 = arith.mulf %104, %105 : vector<16x16x16xf32>
    %107 = arith.addf %100, %106 : vector<16x16x16xf32>
    %c1_94 = arith.constant 1 : index
    %c0_95 = arith.constant 0 : index
    %c0_96 = arith.constant 0 : index
    %108 = vector.load %arg6[%c1_94, %c0_95, %c0_96] : memref<3x3x16xf32, #tpu.memory_space<vmem>>, vector<1x1x16xf32>
    %109 = vector.shape_cast %108 : vector<1x1x16xf32> to vector<1x16xf32>
    %110 = vector.shape_cast %109 : vector<1x16xf32> to vector<1x1x16xf32>
    %c1_97 = arith.constant 1 : index
    %c7_98 = arith.constant 7 : index
    %c0_99 = arith.constant 0 : index
    %111 = vector.load %arg12[%c1_97, %c7_98, %c0_99] : memref<18x25x16xf32, #tpu.memory_space<vmem>>, vector<16x16x16xf32>
    %112 = vector.broadcast %110 : vector<1x1x16xf32> to vector<16x16x16xf32>
    %113 = arith.mulf %111, %112 : vector<16x16x16xf32>
    %114 = arith.addf %107, %113 : vector<16x16x16xf32>
    %c1_100 = arith.constant 1 : index
    %c1_101 = arith.constant 1 : index
    %c0_102 = arith.constant 0 : index
    %115 = vector.load %arg6[%c1_100, %c1_101, %c0_102] : memref<3x3x16xf32, #tpu.memory_space<vmem>>, vector<1x1x16xf32>
    %116 = vector.shape_cast %115 : vector<1x1x16xf32> to vector<1x16xf32>
    %117 = vector.shape_cast %116 : vector<1x16xf32> to vector<1x1x16xf32>
    %c1_103 = arith.constant 1 : index
    %c8_104 = arith.constant 8 : index
    %c0_105 = arith.constant 0 : index
    %118 = vector.load %arg12[%c1_103, %c8_104, %c0_105] : memref<18x25x16xf32, #tpu.memory_space<vmem>>, vector<16x16x16xf32>
    %119 = vector.broadcast %117 : vector<1x1x16xf32> to vector<16x16x16xf32>
    %120 = arith.mulf %118, %119 : vector<16x16x16xf32>
    %121 = arith.addf %114, %120 : vector<16x16x16xf32>
    %c1_106 = arith.constant 1 : index
    %c2_107 = arith.constant 2 : index
    %c0_108 = arith.constant 0 : index
    %122 = vector.load %arg6[%c1_106, %c2_107, %c0_108] : memref<3x3x16xf32, #tpu.memory_space<vmem>>, vector<1x1x16xf32>
    %123 = vector.shape_cast %122 : vector<1x1x16xf32> to vector<1x16xf32>
    %124 = vector.shape_cast %123 : vector<1x16xf32> to vector<1x1x16xf32>
    %c1_109 = arith.constant 1 : index
    %c9_110 = arith.constant 9 : index
    %c0_111 = arith.constant 0 : index
    %125 = vector.load %arg12[%c1_109, %c9_110, %c0_111] : memref<18x25x16xf32, #tpu.memory_space<vmem>>, vector<16x16x16xf32>
    %126 = vector.broadcast %124 : vector<1x1x16xf32> to vector<16x16x16xf32>
    %127 = arith.mulf %125, %126 : vector<16x16x16xf32>
    %128 = arith.addf %121, %127 : vector<16x16x16xf32>
    %c2_112 = arith.constant 2 : index
    %c0_113 = arith.constant 0 : index
    %c0_114 = arith.constant 0 : index
    %129 = vector.load %arg6[%c2_112, %c0_113, %c0_114] : memref<3x3x16xf32, #tpu.memory_space<vmem>>, vector<1x1x16xf32>
    %130 = vector.shape_cast %129 : vector<1x1x16xf32> to vector<1x16xf32>
    %131 = vector.shape_cast %130 : vector<1x16xf32> to vector<1x1x16xf32>
    %c2_115 = arith.constant 2 : index
    %c7_116 = arith.constant 7 : index
    %c0_117 = arith.constant 0 : index
    %132 = vector.load %arg12[%c2_115, %c7_116, %c0_117] : memref<18x25x16xf32, #tpu.memory_space<vmem>>, vector<16x16x16xf32>
    %133 = vector.broadcast %131 : vector<1x1x16xf32> to vector<16x16x16xf32>
    %134 = arith.mulf %132, %133 : vector<16x16x16xf32>
    %135 = arith.addf %128, %134 : vector<16x16x16xf32>
    %c2_118 = arith.constant 2 : index
    %c1_119 = arith.constant 1 : index
    %c0_120 = arith.constant 0 : index
    %136 = vector.load %arg6[%c2_118, %c1_119, %c0_120] : memref<3x3x16xf32, #tpu.memory_space<vmem>>, vector<1x1x16xf32>
    %137 = vector.shape_cast %136 : vector<1x1x16xf32> to vector<1x16xf32>
    %138 = vector.shape_cast %137 : vector<1x16xf32> to vector<1x1x16xf32>
    %c2_121 = arith.constant 2 : index
    %c8_122 = arith.constant 8 : index
    %c0_123 = arith.constant 0 : index
    %139 = vector.load %arg12[%c2_121, %c8_122, %c0_123] : memref<18x25x16xf32, #tpu.memory_space<vmem>>, vector<16x16x16xf32>
    %140 = vector.broadcast %138 : vector<1x1x16xf32> to vector<16x16x16xf32>
    %141 = arith.mulf %139, %140 : vector<16x16x16xf32>
    %142 = arith.addf %135, %141 : vector<16x16x16xf32>
    %c2_124 = arith.constant 2 : index
    %c2_125 = arith.constant 2 : index
    %c0_126 = arith.constant 0 : index
    %143 = vector.load %arg6[%c2_124, %c2_125, %c0_126] : memref<3x3x16xf32, #tpu.memory_space<vmem>>, vector<1x1x16xf32>
    %144 = vector.shape_cast %143 : vector<1x1x16xf32> to vector<1x16xf32>
    %145 = vector.shape_cast %144 : vector<1x16xf32> to vector<1x1x16xf32>
    %c2_127 = arith.constant 2 : index
    %c9_128 = arith.constant 9 : index
    %c0_129 = arith.constant 0 : index
    %146 = vector.load %arg12[%c2_127, %c9_128, %c0_129] : memref<18x25x16xf32, #tpu.memory_space<vmem>>, vector<16x16x16xf32>
    %147 = vector.broadcast %145 : vector<1x1x16xf32> to vector<16x16x16xf32>
    %148 = arith.mulf %146, %147 : vector<16x16x16xf32>
    %149 = arith.addf %142, %148 : vector<16x16x16xf32>
    %150 = vector.shape_cast %149 : vector<16x16x16xf32> to vector<256x16xf32>
    %c0_130 = arith.constant 0 : index
    %c0_131 = arith.constant 0 : index
    %151 = vector.load %arg7[%c0_130, %c0_131] : memref<16x16xf32, #tpu.memory_space<vmem>>, vector<16x16xf32>
    %cst_132 = arith.constant dense<0.000000e+00> : vector<256x16xf32>
    %152 = tpu.matmul %150, %151, %cst_132 {dimension_numbers = #tpu.dot_dimension_numbers<[1], [0], [0], [1], [0, 0, 1, 1], [], []>} : vector<256x16xf32>, vector<16x16xf32>, vector<256x16xf32> -> vector<256x16xf32>
    %c0_133 = arith.constant 0 : index
    %c0_134 = arith.constant 0 : index
    %153 = vector.load %arg8[%c0_133, %c0_134] : memref<1x16xf32, #tpu.memory_space<vmem>>, vector<1x16xf32>
    %154 = vector.broadcast %153 : vector<1x16xf32> to vector<256x16xf32>
    %155 = arith.mulf %152, %154 : vector<256x16xf32>
    %c0_135 = arith.constant 0 : index
    %c0_136 = arith.constant 0 : index
    %156 = vector.load %arg9[%c0_135, %c0_136] : memref<1x16xf32, #tpu.memory_space<vmem>>, vector<1x16xf32>
    %157 = vector.broadcast %156 : vector<1x16xf32> to vector<256x16xf32>
    %158 = arith.addf %155, %157 : vector<256x16xf32>
    %159 = vector.shape_cast %158 : vector<256x16xf32> to vector<16x16x16xf32>
    %cst_137 = arith.constant 0xFF800000 : f32
    %160 = vector.broadcast %cst_137 : f32 to vector<18x25x16xf32>
    %c0_138 = arith.constant 0 : index
    %c0_139 = arith.constant 0 : index
    %c0_140 = arith.constant 0 : index
    %161 = vector.load %arg13[%c0_138, %c0_139, %c0_140] : memref<18x25x16xf32, #tpu.memory_space<vmem>>, vector<18x25x16xf32>
    tpu.vector_store %arg13[%c0_138, %c0_139, %c0_140], %160 {strides = array<i32>} : memref<18x25x16xf32, #tpu.memory_space<vmem>>, vector<18x25x16xf32>,
    %c1_141 = arith.constant 1 : index
    %c8_142 = arith.constant 8 : index
    %c0_143 = arith.constant 0 : index
    %162 = vector.load %arg13[%c1_141, %c8_142, %c0_143] : memref<18x25x16xf32, #tpu.memory_space<vmem>>, vector<16x16x16xf32>
    tpu.vector_store %arg13[%c1_141, %c8_142, %c0_143], %159 {strides = array<i32>} : memref<18x25x16xf32, #tpu.memory_space<vmem>>, vector<16x16x16xf32>,
    %c0_144 = arith.constant 0 : index
    %c7_145 = arith.constant 7 : index
    %c0_146 = arith.constant 0 : index
    %163 = vector.load %arg13[%c0_144, %c7_145, %c0_146] : memref<18x25x16xf32, #tpu.memory_space<vmem>>, vector<16x16x16xf32>
    %164 = arith.maximumf %159, %163 : vector<16x16x16xf32>
    %c0_147 = arith.constant 0 : index
    %c8_148 = arith.constant 8 : index
    %c0_149 = arith.constant 0 : index
    %165 = vector.load %arg13[%c0_147, %c8_148, %c0_149] : memref<18x25x16xf32, #tpu.memory_space<vmem>>, vector<16x16x16xf32>
    %166 = arith.maximumf %164, %165 : vector<16x16x16xf32>
    %c0_150 = arith.constant 0 : index
    %c9_151 = arith.constant 9 : index
    %c0_152 = arith.constant 0 : index
    %167 = vector.load %arg13[%c0_150, %c9_151, %c0_152] : memref<18x25x16xf32, #tpu.memory_space<vmem>>, vector<16x16x16xf32>
    %168 = arith.maximumf %166, %167 : vector<16x16x16xf32>
    %c1_153 = arith.constant 1 : index
    %c7_154 = arith.constant 7 : index
    %c0_155 = arith.constant 0 : index
    %169 = vector.load %arg13[%c1_153, %c7_154, %c0_155] : memref<18x25x16xf32, #tpu.memory_space<vmem>>, vector<16x16x16xf32>
    %170 = arith.maximumf %168, %169 : vector<16x16x16xf32>
    %c1_156 = arith.constant 1 : index
    %c9_157 = arith.constant 9 : index
    %c0_158 = arith.constant 0 : index
    %171 = vector.load %arg13[%c1_156, %c9_157, %c0_158] : memref<18x25x16xf32, #tpu.memory_space<vmem>>, vector<16x16x16xf32>
    %172 = arith.maximumf %170, %171 : vector<16x16x16xf32>
    %c2_159 = arith.constant 2 : index
    %c7_160 = arith.constant 7 : index
    %c0_161 = arith.constant 0 : index
    %173 = vector.load %arg13[%c2_159, %c7_160, %c0_161] : memref<18x25x16xf32, #tpu.memory_space<vmem>>, vector<16x16x16xf32>
    %174 = arith.maximumf %172, %173 : vector<16x16x16xf32>
    %c2_162 = arith.constant 2 : index
    %c8_163 = arith.constant 8 : index
    %c0_164 = arith.constant 0 : index
    %175 = vector.load %arg13[%c2_162, %c8_163, %c0_164] : memref<18x25x16xf32, #tpu.memory_space<vmem>>, vector<16x16x16xf32>
    %176 = arith.maximumf %174, %175 : vector<16x16x16xf32>
    %c2_165 = arith.constant 2 : index
    %c9_166 = arith.constant 9 : index
    %c0_167 = arith.constant 0 : index
    %177 = vector.load %arg13[%c2_165, %c9_166, %c0_167] : memref<18x25x16xf32, #tpu.memory_space<vmem>>, vector<16x16x16xf32>
    %178 = arith.maximumf %176, %177 : vector<16x16x16xf32>
    %c0_168 = arith.constant 0 : index
    %c0_169 = arith.constant 0 : index
    %c0_170 = arith.constant 0 : index
    %c0_171 = arith.constant 0 : index
    %179 = vector.load %arg10[%c0_168, %c0_169, %c0_170, %c0_171] : memref<1x16x16x16xf32, #tpu.memory_space<vmem>>, vector<1x16x16x16xf32>
    %180 = vector.shape_cast %179 : vector<1x16x16x16xf32> to vector<16x16x16xf32>
    %181 = vector.shape_cast %178 : vector<16x16x16xf32> to vector<1x16x16x16xf32>
    tpu.vector_store %arg10[%c0_168, %c0_169, %c0_170, %c0_171], %181 {strides = array<i32>} : memref<1x16x16x16xf32, #tpu.memory_space<vmem>>, vector<1x16x16x16xf32>,
    return
  }
  func.func @transform_0(%arg0: i32) -> (i32, i32, i32, i32) {
    %c0_i32 = arith.constant 0 : i32
    %c0_i32_0 = arith.constant 0 : i32
    %c0_i32_1 = arith.constant 0 : i32
    %c0_i32_2 = arith.constant 0 : i32
    return %arg0, %c0_i32, %c0_i32_0, %c0_i32_1 : i32, i32, i32, i32
  }
  func.func @transform_1(%arg0: i32) -> (i32, i32, i32) {
    %c0_i32 = arith.constant 0 : i32
    %c0_i32_0 = arith.constant 0 : i32
    %c0_i32_1 = arith.constant 0 : i32
    %c0_i32_2 = arith.constant 0 : i32
    return %c0_i32, %c0_i32_0, %c0_i32_1 : i32, i32, i32
  }
  func.func @transform_2(%arg0: i32) -> (i32, i32) {
    %c0_i32 = arith.constant 0 : i32
    %c0_i32_0 = arith.constant 0 : i32
    %c0_i32_1 = arith.constant 0 : i32
    return %c0_i32, %c0_i32_0 : i32, i32
  }
  func.func @transform_3(%arg0: i32) -> (i32, i32) {
    %c0_i32 = arith.constant 0 : i32
    %c0_i32_0 = arith.constant 0 : i32
    %c0_i32_1 = arith.constant 0 : i32
    return %c0_i32, %c0_i32_0 : i32, i32
  }
  func.func @transform_4(%arg0: i32) -> (i32, i32) {
    %c0_i32 = arith.constant 0 : i32
    %c0_i32_0 = arith.constant 0 : i32
    %c0_i32_1 = arith.constant 0 : i32
    return %c0_i32, %c0_i32_0 : i32, i32
  }
  func.func @transform_5(%arg0: i32) -> (i32, i32, i32) {
    %c0_i32 = arith.constant 0 : i32
    %c0_i32_0 = arith.constant 0 : i32
    %c0_i32_1 = arith.constant 0 : i32
    %c0_i32_2 = arith.constant 0 : i32
    return %c0_i32, %c0_i32_0, %c0_i32_1 : i32, i32, i32
  }
  func.func @transform_6(%arg0: i32) -> (i32, i32) {
    %c0_i32 = arith.constant 0 : i32
    %c0_i32_0 = arith.constant 0 : i32
    %c0_i32_1 = arith.constant 0 : i32
    return %c0_i32, %c0_i32_0 : i32, i32
  }
  func.func @transform_7(%arg0: i32) -> (i32, i32) {
    %c0_i32 = arith.constant 0 : i32
    %c0_i32_0 = arith.constant 0 : i32
    %c0_i32_1 = arith.constant 0 : i32
    return %c0_i32, %c0_i32_0 : i32, i32
  }
  func.func @transform_8(%arg0: i32) -> (i32, i32) {
    %c0_i32 = arith.constant 0 : i32
    %c0_i32_0 = arith.constant 0 : i32
    %c0_i32_1 = arith.constant 0 : i32
    return %c0_i32, %c0_i32_0 : i32, i32
  }
  func.func @transform_9(%arg0: i32) -> (i32, i32, i32, i32) {
    %c0_i32 = arith.constant 0 : i32
    %c0_i32_0 = arith.constant 0 : i32
    %c0_i32_1 = arith.constant 0 : i32
    %c0_i32_2 = arith.constant 0 : i32
    return %arg0, %c0_i32, %c0_i32_0, %c0_i32_1 : i32, i32, i32, i32
  }
}

module attributes {stable_mosaic.version = 11 : i64} {
  func.func @_skip_add_kernel(%arg0: i32, %arg1: memref<128x8xf32, #tpu.memory_space<vmem>>, %arg2: memref<8x16xf32, #tpu.memory_space<vmem>>, %arg3: memref<1x16xf32, #tpu.memory_space<vmem>>, %arg4: memref<1x16xf32, #tpu.memory_space<vmem>>, %arg5: memref<128x16xf32, #tpu.memory_space<vmem>>, %arg6: memref<128x16xf32, #tpu.memory_space<vmem>>) attributes {dimension_semantics = [#tpu.dimension_semantics<parallel>], iteration_bounds = array<i64: 1>, scalar_prefetch = 0 : i64, scratch_operands = 0 : i64, tpu.core_type = #tpu.core_type<tc>, window_params = [{transform_indices = @transform_0, window_bounds = array<i64: 128, 8>}, {pipeline_mode = #tpu.pipeline_mode<synchronous>, transform_indices = @transform_1, window_bounds = array<i64: 8, 16>}, {pipeline_mode = #tpu.pipeline_mode<synchronous>, transform_indices = @transform_2, window_bounds = array<i64: 1, 16>}, {pipeline_mode = #tpu.pipeline_mode<synchronous>, transform_indices = @transform_3, window_bounds = array<i64: 1, 16>}, {transform_indices = @transform_4, window_bounds = array<i64: 128, 16>}, {transform_indices = @transform_5, window_bounds = array<i64: 128, 16>}]} {
    %c0 = arith.constant 0 : index
    %c0_0 = arith.constant 0 : index
    %0 = vector.load %arg1[%c0, %c0_0] : memref<128x8xf32, #tpu.memory_space<vmem>>, vector<128x8xf32>
    %c0_1 = arith.constant 0 : index
    %c0_2 = arith.constant 0 : index
    %1 = vector.load %arg2[%c0_1, %c0_2] : memref<8x16xf32, #tpu.memory_space<vmem>>, vector<8x16xf32>
    %cst = arith.constant dense<0.000000e+00> : vector<128x16xf32>
    %2 = tpu.matmul %0, %1, %cst {dimension_numbers = #tpu.dot_dimension_numbers<[1], [0], [0], [1], [0, 0, 1, 1], [], []>} : vector<128x8xf32>, vector<8x16xf32>, vector<128x16xf32> -> vector<128x16xf32>
    %c0_3 = arith.constant 0 : index
    %c0_4 = arith.constant 0 : index
    %3 = vector.load %arg3[%c0_3, %c0_4] : memref<1x16xf32, #tpu.memory_space<vmem>>, vector<1x16xf32>
    %4 = vector.broadcast %3 : vector<1x16xf32> to vector<128x16xf32>
    %5 = arith.mulf %2, %4 : vector<128x16xf32>
    %c0_5 = arith.constant 0 : index
    %c0_6 = arith.constant 0 : index
    %6 = vector.load %arg4[%c0_5, %c0_6] : memref<1x16xf32, #tpu.memory_space<vmem>>, vector<1x16xf32>
    %7 = vector.broadcast %6 : vector<1x16xf32> to vector<128x16xf32>
    %8 = arith.addf %5, %7 : vector<128x16xf32>
    %c0_7 = arith.constant 0 : index
    %c0_8 = arith.constant 0 : index
    %9 = vector.load %arg5[%c0_7, %c0_8] : memref<128x16xf32, #tpu.memory_space<vmem>>, vector<128x16xf32>
    %10 = arith.addf %8, %9 : vector<128x16xf32>
    %c0_9 = arith.constant 0 : index
    %c0_10 = arith.constant 0 : index
    %11 = vector.load %arg6[%c0_9, %c0_10] : memref<128x16xf32, #tpu.memory_space<vmem>>, vector<128x16xf32>
    tpu.vector_store %arg6[%c0_9, %c0_10], %10 {strides = array<i32>} : memref<128x16xf32, #tpu.memory_space<vmem>>, vector<128x16xf32>,
    return
  }
  func.func @transform_0(%arg0: i32) -> (i32, i32) {
    %c0_i32 = arith.constant 0 : i32
    %c0_i32_0 = arith.constant 0 : i32
    return %arg0, %c0_i32 : i32, i32
  }
  func.func @transform_1(%arg0: i32) -> (i32, i32) {
    %c0_i32 = arith.constant 0 : i32
    %c0_i32_0 = arith.constant 0 : i32
    %c0_i32_1 = arith.constant 0 : i32
    return %c0_i32, %c0_i32_0 : i32, i32
  }
  func.func @transform_2(%arg0: i32) -> (i32, i32) {
    %c0_i32 = arith.constant 0 : i32
    %c0_i32_0 = arith.constant 0 : i32
    %c0_i32_1 = arith.constant 0 : i32
    return %c0_i32, %c0_i32_0 : i32, i32
  }
  func.func @transform_3(%arg0: i32) -> (i32, i32) {
    %c0_i32 = arith.constant 0 : i32
    %c0_i32_0 = arith.constant 0 : i32
    %c0_i32_1 = arith.constant 0 : i32
    return %c0_i32, %c0_i32_0 : i32, i32
  }
  func.func @transform_4(%arg0: i32) -> (i32, i32) {
    %c0_i32 = arith.constant 0 : i32
    %c0_i32_0 = arith.constant 0 : i32
    return %arg0, %c0_i32 : i32, i32
  }
  func.func @transform_5(%arg0: i32) -> (i32, i32) {
    %c0_i32 = arith.constant 0 : i32
    %c0_i32_0 = arith.constant 0 : i32
    return %arg0, %c0_i32 : i32, i32
  }
}

</mosaic_0001>

<llo_original>
// kernel: block_forward.3
$region0: #{block_forward.3}
  #allocation0 [shape = 'u32[]', space=smem, size = 0x4, offset = 0x4, fixed_abs, tag = 'smem constant byte address 0x4 - core index']
  #allocation1 [shape = 'u32[144,128]{1,0:T(1,128)}', space=vmem, size = 0x12000, scoped, tag = 'internal scratch']
  %s0 = inlined_call_operand.vmem [shape: f32[128,8], index: 0, kind: input, shape index: {}]
  %s1 = inlined_call_operand.vmem [shape: f32[8,16], index: 1, kind: input, shape index: {}]
  %s2 = inlined_call_operand.vmem [shape: f32[1,16], index: 2, kind: input, shape index: {}]
  %s3 = inlined_call_operand.vmem [shape: f32[1,16], index: 3, kind: input, shape index: {}]
  %s4 = inlined_call_operand.vmem [shape: f32[128,16], index: 4, kind: input, shape index: {}]
  %s5 = inlined_call_operand.hbm [shape: f32[128,16], index: 5, kind: output, shape index: {}]
  %s6 = sld [smem:[#allocation0]]
  $region30: #{block_forward.3} parent=0
    _
  %s8 = ssub.s32 1, %s6
  %s9 = scalar_select 0, %s8, %s6
  $region1: #{block_forward.3} parent=0
    #allocation2 [shape = 'u8[65536]{0}', space=vmem, size = 0x10000, scoped, tag = 'output window, operand 0, single buffered']
    #allocation3 [shape = 's32[1]{0}', space=sflag, size = 0x4, scoped, tag = 'scoped memory for block_forward.3']
    %10 = vsyncpa [#allocation3], 0
    // Predicated region
    $region2: #{block_forward.3} parent=1 // pred_check
      _
    $region3: #{block_forward.3} parent=1 // pred_check_branch
      %12 = sbr.rel (0) target = $region5
    $region4: #{block_forward.3} parent=1 // pred_region
      _
    $region5: #{block_forward.3} parent=1 // pred_fallthru
      _
    // Predicated region
    $region6: #{block_forward.3} parent=1 // pred_check
      _
    $region7: #{block_forward.3} parent=1 // pred_check_branch
      %14 = sbr.rel (0) target = $region9
    $region8: #{block_forward.3} parent=1 // pred_region
      _
    $region9: #{block_forward.3} parent=1 // pred_fallthru
      _
    // Predicated region
    $region10: #{block_forward.3} parent=1 // pred_check
      _
    $region11: #{block_forward.3} parent=1 // pred_check_branch
      %16 = sbr.rel (0) target = $region13
    $region12: #{block_forward.3} parent=1 // pred_region
      _
    $region13: #{block_forward.3} parent=1 // pred_fallthru
      _
    // Predicated region
    $region14: #{block_forward.3} parent=1 // pred_check
      _
    $region15: #{block_forward.3} parent=1 // pred_check_branch
      %18 = sbr.rel (0) target = $region17
    $region16: #{block_forward.3} parent=1 // pred_region
      _
    $region17: #{block_forward.3} parent=1 // pred_fallthru
      _
    // Predicated region
    $region18: #{block_forward.3} parent=1 // pred_check
      _
    $region19: #{block_forward.3} parent=1 // pred_check_branch
      %20 = sbr.rel (0) target = $region21
    $region20: #{block_forward.3} parent=1 // pred_region
      _
    $region21: #{block_forward.3} parent=1 // pred_fallthru
      _
    %v21 = vld [vmem:[%s0] sm:$0xff]
    %v22 = vld [vmem:[%s0 + $0x8] sm:$0xff]
    %v23 = vld [vmem:[%s0 + $0x10] sm:$0xff]
    %v24 = vld [vmem:[%s0 + $0x18] sm:$0xff]
    %v25 = vld [vmem:[%s0 + $0x20] sm:$0xff]
    %v26 = vld [vmem:[%s0 + $0x28] sm:$0xff]
    %v27 = vld [vmem:[%s0 + $0x30] sm:$0xff]
    %v28 = vld [vmem:[%s0 + $0x38] sm:$0xff]
    %v29 = vld [vmem:[%s0 + $0x40] sm:$0xff]
    %v30 = vld [vmem:[%s0 + $0x48] sm:$0xff]
    %v31 = vld [vmem:[%s0 + $0x50] sm:$0xff]
    %v32 = vld [vmem:[%s0 + $0x58] sm:$0xff]
    %v33 = vld [vmem:[%s0 + $0x60] sm:$0xff]
    %v34 = vld [vmem:[%s0 + $0x68] sm:$0xff]
    %v35 = vld [vmem:[%s0 + $0x70] sm:$0xff]
    %v36 = vld [vmem:[%s0 + $0x78] sm:$0xff]
    %v37 = vld [vmem:[%s1] sm:$0xff]
    %vm38 = vcmask 64512
    %v40 = vsel %vm38, %v21, 0
    %v43 = vsel %vm38, %v22, 0
    %v46 = vsel %vm38, %v23, 0
    %v49 = vsel %vm38, %v24, 0
    %v52 = vsel %vm38, %v25, 0
    %v55 = vsel %vm38, %v26, 0
    %v58 = vsel %vm38, %v27, 0
    %v61 = vsel %vm38, %v28, 0
    %v64 = vsel %vm38, %v29, 0
    %v67 = vsel %vm38, %v30, 0
    %v70 = vsel %vm38, %v31, 0
    %v73 = vsel %vm38, %v32, 0
    %v76 = vsel %vm38, %v33, 0
    %v79 = vsel %vm38, %v34, 0
    %v82 = vsel %vm38, %v35, 0
    %v85 = vsel %vm38, %v36, 0
    %87 = vmatprep.subr.mxu0 0.0
    %88 = vmatpush1.msra.mxu0 0.0
    %89 = vmatprep.subr.mxu0 0.0
    %90 = vmatpush1.msra.mxu0 0.0
    %91 = vmatprep.subr.mxu0 0.0
    %92 = vmatpush1.msra.mxu0 0.0
    %93 = vmatprep.subr.mxu0 0.0
    %94 = vmatpush1.msra.mxu0 0.0
    %95 = vmatprep.subr.mxu0 0.0
    %96 = vmatpush1.msra.mxu0 0.0
    %97 = vmatprep.subr.mxu0 0.0
    %98 = vmatpush1.msra.mxu0 0.0
    %99 = vmatprep.subr.mxu0 0.0
    %100 = vmatpush1.msra.mxu0 0.0
    %101 = vmatprep.subr.mxu0 0.0
    %102 = vmatpush1.msra.mxu0 0.0
    %103 = vmatprep.subr.mxu0 0.0
    %104 = vmatpush1.msra.mxu0 0.0
    %105 = vmatprep.subr.mxu0 0.0
    %106 = vmatpush1.msra.mxu0 0.0
    %107 = vmatprep.subr.mxu0 0.0
    %108 = vmatpush1.msra.mxu0 0.0
    %109 = vmatprep.subr.mxu0 0.0
    %110 = vmatpush1.msra.mxu0 0.0
    %111 = vmatprep.subr.mxu0 0.0
    %112 = vmatpush1.msra.mxu0 0.0
    %113 = vmatprep.subr.mxu0 0.0
    %114 = vmatpush1.msra.mxu0 0.0
    %115 = vmatprep.subr.mxu0 0.0
    %116 = vmatpush1.msra.mxu0 0.0
    %117 = vmatprep.subr.mxu0 0.0
    %118 = vmatpush1.msra.mxu0 %v37
    %119 = vmatprep.subr.mxu0 0.0
    %120 = vmatpush2.msra.mxu0 0.0
    %121 = vmatprep.subr.mxu0 0.0
    %122 = vmatpush2.msra.mxu0 0.0
    %123 = vmatprep.subr.mxu0 0.0
    %124 = vmatpush2.msra.mxu0 0.0
    %125 = vmatprep.subr.mxu0 0.0
    %126 = vmatpush2.msra.mxu0 0.0
    %127 = vmatprep.subr.mxu0 0.0
    %128 = vmatpush2.msra.mxu0 0.0
    %129 = vmatprep.subr.mxu0 0.0
    %130 = vmatpush2.msra.mxu0 0.0
    %131 = vmatprep.subr.mxu0 0.0
    %132 = vmatpush2.msra.mxu0 0.0
    %133 = vmatprep.subr.mxu0 0.0
    %134 = vmatpush2.msra.mxu0 0.0
    %135 = vmatprep.subr.mxu0 0.0
    %136 = vmatpush2.msra.mxu0 0.0
    %137 = vmatprep.subr.mxu0 0.0
    %138 = vmatpush2.msra.mxu0 0.0
    %139 = vmatprep.subr.mxu0 0.0
    %140 = vmatpush2.msra.mxu0 0.0
    %141 = vmatprep.subr.mxu0 0.0
    %142 = vmatpush2.msra.mxu0 0.0
    %143 = vmatprep.subr.mxu0 0.0
    %144 = vmatpush2.msra.mxu0 0.0
    %145 = vmatprep.subr.mxu0 0.0
    %146 = vmatpush2.msra.mxu0 0.0
    %147 = vmatprep.subr.mxu0 0.0
    %148 = vmatpush2.msra.mxu0 0.0
    %149 = vmatprep.subr.mxu0 0.0
    %150 = vmatpush2.msra.mxu0 0.0
    %151 = vmatprep.mubr.f32.mxu0 0.0
    %152 = vmatmul.mubr.f32.gmra.mxu0 %v40
    %v153 = vpop.f32.mrf.mxu0
    %v154 = vadd.f32 0.0, %v153
    %v155 = vpop.f32.mrf.mxu0
    %156 = vmatprep.mubr.f32.mxu0 0.0
    %157 = vmatmul.mubr.f32.gmra.mxu0 %v43
    %v158 = vpop.f32.mrf.mxu0
    %v159 = vadd.f32 0.0, %v158
    %v160 = vpop.f32.mrf.mxu0
    %161 = vmatprep.mubr.f32.mxu0 0.0
    %162 = vmatmul.mubr.f32.gmra.mxu0 %v46
    %v163 = vpop.f32.mrf.mxu0
    %v164 = vadd.f32 0.0, %v163
    %v165 = vpop.f32.mrf.mxu0
    %166 = vmatprep.mubr.f32.mxu0 0.0
    %167 = vmatmul.mubr.f32.gmra.mxu0 %v49
    %v168 = vpop.f32.mrf.mxu0
    %v169 = vadd.f32 0.0, %v168
    %v170 = vpop.f32.mrf.mxu0
    %171 = vmatprep.mubr.f32.mxu0 0.0
    %172 = vmatmul.mubr.f32.gmra.mxu0 %v52
    %v173 = vpop.f32.mrf.mxu0
    %v174 = vadd.f32 0.0, %v173
    %v175 = vpop.f32.mrf.mxu0
    %176 = vmatprep.mubr.f32.mxu0 0.0
    %177 = vmatmul.mubr.f32.gmra.mxu0 %v55
    %v178 = vpop.f32.mrf.mxu0
    %v179 = vadd.f32 0.0, %v178
    %v180 = vpop.f32.mrf.mxu0
    %181 = vmatprep.mubr.f32.mxu0 0.0
    %182 = vmatmul.mubr.f32.gmra.mxu0 %v58
    %v183 = vpop.f32.mrf.mxu0
    %v184 = vadd.f32 0.0, %v183
    %v185 = vpop.f32.mrf.mxu0
    %186 = vmatprep.mubr.f32.mxu0 0.0
    %187 = vmatmul.mubr.f32.gmra.mxu0 %v61
    %v188 = vpop.f32.mrf.mxu0
    %v189 = vadd.f32 0.0, %v188
    %v190 = vpop.f32.mrf.mxu0
    %191 = vmatprep.mubr.f32.mxu0 0.0
    %192 = vmatmul.mubr.f32.gmra.mxu0 %v64
    %v193 = vpop.f32.mrf.mxu0
    %v194 = vadd.f32 0.0, %v193
    %v195 = vpop.f32.mrf.mxu0
    %196 = vmatprep.mubr.f32.mxu0 0.0
    %197 = vmatmul.mubr.f32.gmra.mxu0 %v67
    %v198 = vpop.f32.mrf.mxu0
    %v199 = vadd.f32 0.0, %v198
    %v200 = vpop.f32.mrf.mxu0
    %201 = vmatprep.mubr.f32.mxu0 0.0
    %202 = vmatmul.mubr.f32.gmra.mxu0 %v70
    %v203 = vpop.f32.mrf.mxu0
    %v204 = vadd.f32 0.0, %v203
    %v205 = vpop.f32.mrf.mxu0
    %206 = vmatprep.mubr.f32.mxu0 0.0
    %207 = vmatmul.mubr.f32.gmra.mxu0 %v73
    %v208 = vpop.f32.mrf.mxu0
    %v209 = vadd.f32 0.0, %v208
    %v210 = vpop.f32.mrf.mxu0
    %211 = vmatprep.mubr.f32.mxu0 0.0
    %212 = vmatmul.mubr.f32.gmra.mxu0 %v76
    %v213 = vpop.f32.mrf.mxu0
    %v214 = vadd.f32 0.0, %v213
    %v215 = vpop.f32.mrf.mxu0
    %216 = vmatprep.mubr.f32.mxu0 0.0
    %217 = vmatmul.mubr.f32.gmra.mxu0 %v79
    %v218 = vpop.f32.mrf.mxu0
    %v219 = vadd.f32 0.0, %v218
    %v220 = vpop.f32.mrf.mxu0
    %221 = vmatprep.mubr.f32.mxu0 0.0
    %222 = vmatmul.mubr.f32.gmra.mxu0 %v82
    %v223 = vpop.f32.mrf.mxu0
    %v224 = vadd.f32 0.0, %v223
    %v225 = vpop.f32.mrf.mxu0
    %226 = vmatprep.mubr.f32.mxu0 0.0
    %227 = vmatmul.mubr.f32.gmra.mxu0 %v85
    %v228 = vpop.f32.mrf.mxu0
    %v229 = vadd.f32 0.0, %v228
    %v230 = vpop.f32.mrf.mxu0
    %231 = vdwg.mxu0
    %v232 = vld [vmem:[%s2] sm:$0x1]
    %v234 = vlaneseq
    %v235 = vshrl.u32 %v234, 7
    %v236 = vsub.s32 0, %v235
    %v237 = vrot.slane %v232, %v236
    %v239 = vmul.f32 %v154, %v237
    %v240 = vmul.f32 %v159, %v237
    %v241 = vmul.f32 %v164, %v237
    %v242 = vmul.f32 %v169, %v237
    %v243 = vmul.f32 %v174, %v237
    %v244 = vmul.f32 %v179, %v237
    %v245 = vmul.f32 %v184, %v237
    %v246 = vmul.f32 %v189, %v237
    %v247 = vmul.f32 %v194, %v237
    %v248 = vmul.f32 %v199, %v237
    %v249 = vmul.f32 %v204, %v237
    %v250 = vmul.f32 %v209, %v237
    %v251 = vmul.f32 %v214, %v237
    %v252 = vmul.f32 %v219, %v237
    %v253 = vmul.f32 %v224, %v237
    %v254 = vmul.f32 %v229, %v237
    %v255 = vld [vmem:[%s3] sm:$0x1]
    %v257 = vlaneseq
    %v258 = vshrl.u32 %v257, 7
    %v259 = vsub.s32 0, %v258
    %v260 = vrot.slane %v255, %v259
    %v262 = vadd.f32 %v239, %v260
    %v263 = vadd.f32 %v240, %v260
    %v264 = vadd.f32 %v241, %v260
    %v265 = vadd.f32 %v242, %v260
    %v266 = vadd.f32 %v243, %v260
    %v267 = vadd.f32 %v244, %v260
    %v268 = vadd.f32 %v245, %v260
    %v269 = vadd.f32 %v246, %v260
    %v270 = vadd.f32 %v247, %v260
    %v271 = vadd.f32 %v248, %v260
    %v272 = vadd.f32 %v249, %v260
    %v273 = vadd.f32 %v250, %v260
    %v274 = vadd.f32 %v251, %v260
    %v275 = vadd.f32 %v252, %v260
    %v276 = vadd.f32 %v253, %v260
    %v277 = vadd.f32 %v254, %v260
    %v278 = vld [vmem:[%s4] sm:$0xff]
    %v279 = vld [vmem:[%s4 + $0x8] sm:$0xff]
    %v280 = vld [vmem:[%s4 + $0x10] sm:$0xff]
    %v281 = vld [vmem:[%s4 + $0x18] sm:$0xff]
    %v282 = vld [vmem:[%s4 + $0x20] sm:$0xff]
    %v283 = vld [vmem:[%s4 + $0x28] sm:$0xff]
    %v284 = vld [vmem:[%s4 + $0x30] sm:$0xff]
    %v285 = vld [vmem:[%s4 + $0x38] sm:$0xff]
    %v286 = vld [vmem:[%s4 + $0x40] sm:$0xff]
    %v287 = vld [vmem:[%s4 + $0x48] sm:$0xff]
    %v288 = vld [vmem:[%s4 + $0x50] sm:$0xff]
    %v289 = vld [vmem:[%s4 + $0x58] sm:$0xff]
    %v290 = vld [vmem:[%s4 + $0x60] sm:$0xff]
    %v291 = vld [vmem:[%s4 + $0x68] sm:$0xff]
    %v292 = vld [vmem:[%s4 + $0x70] sm:$0xff]
    %v293 = vld [vmem:[%s4 + $0x78] sm:$0xff]
    %v294 = vadd.f32 %v262, %v278
    %v295 = vadd.f32 %v263, %v279
    %v296 = vadd.f32 %v264, %v280
    %v297 = vadd.f32 %v265, %v281
    %v298 = vadd.f32 %v266, %v282
    %v299 = vadd.f32 %v267, %v283
    %v300 = vadd.f32 %v268, %v284
    %v301 = vadd.f32 %v269, %v285
    %v302 = vadd.f32 %v270, %v286
    %v303 = vadd.f32 %v271, %v287
    %v304 = vadd.f32 %v272, %v288
    %v305 = vadd.f32 %v273, %v289
    %v306 = vadd.f32 %v274, %v290
    %v307 = vadd.f32 %v275, %v291
    %v308 = vadd.f32 %v276, %v292
    %v309 = vadd.f32 %v277, %v293
    %vm310 = vcmask 130048
    %311 = vst.msk [vmem:[#allocation2] sm:$0xff] %vm310, %v294
    %312 = vst.msk [vmem:[#allocation2 + $0x8] sm:$0xff] %vm310, %v295
    %313 = vst.msk [vmem:[#allocation2 + $0x10] sm:$0xff] %vm310, %v296
    %314 = vst.msk [vmem:[#allocation2 + $0x18] sm:$0xff] %vm310, %v297
    %315 = vst.msk [vmem:[#allocation2 + $0x20] sm:$0xff] %vm310, %v298
    %316 = vst.msk [vmem:[#allocation2 + $0x28] sm:$0xff] %vm310, %v299
    %317 = vst.msk [vmem:[#allocation2 + $0x30] sm:$0xff] %vm310, %v300
    %318 = vst.msk [vmem:[#allocation2 + $0x38] sm:$0xff] %vm310, %v301
    %319 = vst.msk [vmem:[#allocation2 + $0x40] sm:$0xff] %vm310, %v302
    %320 = vst.msk [vmem:[#allocation2 + $0x48] sm:$0xff] %vm310, %v303
    %321 = vst.msk [vmem:[#allocation2 + $0x50] sm:$0xff] %vm310, %v304
    %322 = vst.msk [vmem:[#allocation2 + $0x58] sm:$0xff] %vm310, %v305
    %323 = vst.msk [vmem:[#allocation2 + $0x60] sm:$0xff] %vm310, %v306
    %324 = vst.msk [vmem:[#allocation2 + $0x68] sm:$0xff] %vm310, %v307
    %325 = vst.msk [vmem:[#allocation2 + $0x70] sm:$0xff] %vm310, %v308
    %326 = vst.msk [vmem:[#allocation2 + $0x78] sm:$0xff] %vm310, %v309
    // Predicated region
    $region22: #{block_forward.3} parent=1 // pred_check
      _
    $region23: #{block_forward.3} parent=1 // pred_check_branch
      %328 = sbr.rel (0) target = $region25
    $region24: #{block_forward.3} parent=1 // pred_region
      %s330 = ssub.s32 2048, 2048
      %331 = vsyncadd [#allocation3], %s330
      %s332 = sshll.u32 [#allocation2], 4
      %s333 = int_to_ptr.vmem [resolvable:$true] %s332
      %338 = dma.vmem_to_hbm [thread:$0]  %s333, 2048, %s5, [#allocation3], 128, 128, 8
    $region25: #{block_forward.3} parent=1 // pred_fallthru
      _
    // Predicated region
    $region26: #{block_forward.3} parent=1 // pred_check
      _
    $region27: #{block_forward.3} parent=1 // pred_check_branch
      %340 = sbr.rel (0) target = $region29
    $region28: #{block_forward.3} parent=1 // pred_region
      %341 = dma.done [#allocation3], 2048
    $region29: #{block_forward.3} parent=1 // pred_fallthru
      _
    %342 = vsyncpa [#allocation3], 1

// kernel: block_forward.2
$region0: #{block_forward.2}
  #allocation0 [shape = 'u32[]', space=smem, size = 0x4, offset = 0x4, fixed_abs, tag = 'smem constant byte address 0x4 - core index']
  #allocation1 [shape = 'u32[144,128]{1,0:T(1,128)}', space=vmem, size = 0x12000, scoped, tag = 'internal scratch']
  #allocation2 [shape = 'f32[18,25,8]{2,1,0:T(8,128)}', space=vmem, size = 0x48000, scoped, tag = 'scratch operand']
  #allocation3 [shape = 'f32[18,25,16]{2,1,0:T(8,128)}', space=vmem, size = 0x48000, scoped, tag = 'scratch operand']
  #allocation4 [shape = 'f32[18,25,16]{2,1,0:T(8,128)}', space=vmem, size = 0x48000, scoped, tag = 'scratch operand']
  %s0 = inlined_call_operand.vmem [shape: f32[2,16,16,8], index: 0, kind: input, shape index: {}]
  %s1 = inlined_call_operand.vmem [shape: f32[3,3,8], index: 1, kind: input, shape index: {}]
  %s2 = inlined_call_operand.vmem [shape: f32[8,16], index: 2, kind: input, shape index: {}]
  %s3 = inlined_call_operand.vmem [shape: f32[1,16], index: 3, kind: input, shape index: {}]
  %s4 = inlined_call_operand.vmem [shape: f32[1,16], index: 4, kind: input, shape index: {}]
  %s5 = inlined_call_operand.vmem [shape: f32[3,3,16], index: 5, kind: input, shape index: {}]
  %s6 = inlined_call_operand.vmem [shape: f32[16,16], index: 6, kind: input, shape index: {}]
  %s7 = inlined_call_operand.vmem [shape: f32[1,16], index: 7, kind: input, shape index: {}]
  %s8 = inlined_call_operand.vmem [shape: f32[1,16], index: 8, kind: input, shape index: {}]
  %s9 = inlined_call_operand.vmem [shape: f32[2,16,16,16], index: 9, kind: output, shape index: {}]
  %s10 = sld [smem:[#allocation0]]
  $region69: #{block_forward.2} parent=0
    _
  %s12 = ssub.s32 1, %s10
  %s13 = scalar_select 0, %s12, %s10
  loop: start=0, step=1, limit=4
  $region2: #{block_forward.2} parent=0 // loop_pre_header
    _
  $region3: #{block_forward.2} parent=0 // loop_header
    %s15 = sphi 0, %s19
    %p16 = scmp.ge.s32.totalorder %s15, 4
    %s25 = sphi 0, %s27
    %s28 = sphi 0, %s25
    %s29 = sphi 0, %s28
    %s45 = sphi 0, %s29
    %s49 = sphi 0, %s49
    %s51 = sphi 0, %s49
    %s52 = sphi 0, %s51
    %s66 = sphi 0, %s52
    %s70 = sphi 0, %s70
    %s72 = sphi 0, %s70
    %s73 = sphi 0, %s72
    %s87 = sphi 0, %s73
    %s91 = sphi 0, %s91
    %s93 = sphi 0, %s91
    %s94 = sphi 0, %s93
    %s108 = sphi 0, %s94
    %s112 = sphi 0, %s112
    %s114 = sphi 0, %s112
    %s115 = sphi 0, %s114
    %s129 = sphi 0, %s115
    %s133 = sphi 0, %s133
    %s135 = sphi 0, %s133
    %s136 = sphi 0, %s135
    %s150 = sphi 0, %s136
    %s154 = sphi 0, %s154
    %s156 = sphi 0, %s154
    %s157 = sphi 0, %s156
    %s171 = sphi 0, %s157
    %s175 = sphi 0, %s175
    %s177 = sphi 0, %s175
    %s178 = sphi 0, %s177
    %s192 = sphi 0, %s178
    %s196 = sphi 0, %s196
    %s198 = sphi 0, %s196
    %s199 = sphi 0, %s198
    %s213 = sphi 0, %s199
    %s219 = sphi 0, %s221
    %s222 = sphi 0, %s219
    %s223 = sphi 0, %s222
    %s239 = sphi 0, %s223
  $region4: #{block_forward.2} parent=0 // loop_header_branch
    %18 = sbr.rel (%p16) target = $region8
  $region5: #{block_forward.2} parent=0 // loop_body
    %s20 = ssub.s32 %s15, 1
    %s21 = ssub.s32 %s15, 2
    %s22 = sadd.s32 %s15, 1
    %s23 = ssub.s32 %s15, %s22
    %p24 = scmp.eq.s32.totalorder %s23, 0
    %s26 = sadd.s32 %s25, 1
    %s27 = scalar_select %p24, %s25, %s26
    %p30 = pneg %p24
    %p31 = scmp.eq.s32.totalorder %s15, 1
    %p32 = por %p30, %p31
    %p33 = scmp.ne.s32.totalorder %s25, %s28
    %p34 = scmp.eq.s32.totalorder %s15, 0
    %p35 = por %p33, %p34
    %p36 = scmp.ne.s32.totalorder %s25, %s28
    %p37 = scmp.eq.s32.totalorder %s20, 1
    %p38 = por %p36, %p37
    %p39 = scmp.ne.s32.totalorder %s28, %s29
    %p40 = scmp.eq.s32.totalorder %s20, 0
    %p41 = por %p39, %p40
    %p42 = scmp.ne.s32.totalorder %s28, %s29
    %p43 = scmp.eq.s32.totalorder %s21, 1
    %p44 = por %p42, %p43
    %p46 = scmp.ne.s32.totalorder %s29, %s45
    %p47 = scmp.eq.s32.totalorder %s21, 0
    %p48 = por %p46, %p47
    %s50 = sadd.s32 %s49, 1
    %p53 = scmp.eq.s32.totalorder %s15, 1
    %p54 = scmp.ne.s32.totalorder %s49, %s51
    %p55 = scmp.eq.s32.totalorder %s15, 0
    %p56 = por %p54, %p55
    %p57 = scmp.ne.s32.totalorder %s49, %s51
    %p58 = scmp.eq.s32.totalorder %s20, 1
    %p59 = por %p57, %p58
    %p60 = scmp.ne.s32.totalorder %s51, %s52
    %p61 = scmp.eq.s32.totalorder %s20, 0
    %p62 = por %p60, %p61
    %p63 = scmp.ne.s32.totalorder %s51, %s52
    %p64 = scmp.eq.s32.totalorder %s21, 1
    %p65 = por %p63, %p64
    %p67 = scmp.ne.s32.totalorder %s52, %s66
    %p68 = scmp.eq.s32.totalorder %s21, 0
    %p69 = por %p67, %p68
    %s71 = sadd.s32 %s70, 1
    %p74 = scmp.eq.s32.totalorder %s15, 1
    %p75 = scmp.ne.s32.totalorder %s70, %s72
    %p76 = scmp.eq.s32.totalorder %s15, 0
    %p77 = por %p75, %p76
    %p78 = scmp.ne.s32.totalorder %s70, %s72
    %p79 = scmp.eq.s32.totalorder %s20, 1
    %p80 = por %p78, %p79
    %p81 = scmp.ne.s32.totalorder %s72, %s73
    %p82 = scmp.eq.s32.totalorder %s20, 0
    %p83 = por %p81, %p82
    %p84 = scmp.ne.s32.totalorder %s72, %s73
    %p85 = scmp.eq.s32.totalorder %s21, 1
    %p86 = por %p84, %p85
    %p88 = scmp.ne.s32.totalorder %s73, %s87
    %p89 = scmp.eq.s32.totalorder %s21, 0
    %p90 = por %p88, %p89
    %s92 = sadd.s32 %s91, 1
    %p95 = scmp.eq.s32.totalorder %s15, 1
    %p96 = scmp.ne.s32.totalorder %s91, %s93
    %p97 = scmp.eq.s32.totalorder %s15, 0
    %p98 = por %p96, %p97
    %p99 = scmp.ne.s32.totalorder %s91, %s93
    %p100 = scmp.eq.s32.totalorder %s20, 1
    %p101 = por %p99, %p100
    %p102 = scmp.ne.s32.totalorder %s93, %s94
    %p103 = scmp.eq.s32.totalorder %s20, 0
    %p104 = por %p102, %p103
    %p105 = scmp.ne.s32.totalorder %s93, %s94
    %p106 = scmp.eq.s32.totalorder %s21, 1
    %p107 = por %p105, %p106
    %p109 = scmp.ne.s32.totalorder %s94, %s108
    %p110 = scmp.eq.s32.totalorder %s21, 0
    %p111 = por %p109, %p110
    %s113 = sadd.s32 %s112, 1
    %p116 = scmp.eq.s32.totalorder %s15, 1
    %p117 = scmp.ne.s32.totalorder %s112, %s114
    %p118 = scmp.eq.s32.totalorder %s15, 0
    %p119 = por %p117, %p118
    %p120 = scmp.ne.s32.totalorder %s112, %s114
    %p121 = scmp.eq.s32.totalorder %s20, 1
    %p122 = por %p120, %p121
    %p123 = scmp.ne.s32.totalorder %s114, %s115
    %p124 = scmp.eq.s32.totalorder %s20, 0
    %p125 = por %p123, %p124
    %p126 = scmp.ne.s32.totalorder %s114, %s115
    %p127 = scmp.eq.s32.totalorder %s21, 1
    %p128 = por %p126, %p127
    %p130 = scmp.ne.s32.totalorder %s115, %s129
    %p131 = scmp.eq.s32.totalorder %s21, 0
    %p132 = por %p130, %p131
    %s134 = sadd.s32 %s133, 1
    %p137 = scmp.eq.s32.totalorder %s15, 1
    %p138 = scmp.ne.s32.totalorder %s133, %s135
    %p139 = scmp.eq.s32.totalorder %s15, 0
    %p140 = por %p138, %p139
    %p141 = scmp.ne.s32.totalorder %s133, %s135
    %p142 = scmp.eq.s32.totalorder %s20, 1
    %p143 = por %p141, %p142
    %p144 = scmp.ne.s32.totalorder %s135, %s136
    %p145 = scmp.eq.s32.totalorder %s20, 0
    %p146 = por %p144, %p145
    %p147 = scmp.ne.s32.totalorder %s135, %s136
    %p148 = scmp.eq.s32.totalorder %s21, 1
    %p149 = por %p147, %p148
    %p151 = scmp.ne.s32.totalorder %s136, %s150
    %p152 = scmp.eq.s32.totalorder %s21, 0
    %p153 = por %p151, %p152
    %s155 = sadd.s32 %s154, 1
    %p158 = scmp.eq.s32.totalorder %s15, 1
    %p159 = scmp.ne.s32.totalorder %s154, %s156
    %p160 = scmp.eq.s32.totalorder %s15, 0
    %p161 = por %p159, %p160
    %p162 = scmp.ne.s32.totalorder %s154, %s156
    %p163 = scmp.eq.s32.totalorder %s20, 1
    %p164 = por %p162, %p163
    %p165 = scmp.ne.s32.totalorder %s156, %s157
    %p166 = scmp.eq.s32.totalorder %s20, 0
    %p167 = por %p165, %p166
    %p168 = scmp.ne.s32.totalorder %s156, %s157
    %p169 = scmp.eq.s32.totalorder %s21, 1
    %p170 = por %p168, %p169
    %p172 = scmp.ne.s32.totalorder %s157, %s171
    %p173 = scmp.eq.s32.totalorder %s21, 0
    %p174 = por %p172, %p173
    %s176 = sadd.s32 %s175, 1
    %p179 = scmp.eq.s32.totalorder %s15, 1
    %p180 = scmp.ne.s32.totalorder %s175, %s177
    %p181 = scmp.eq.s32.totalorder %s15, 0
    %p182 = por %p180, %p181
    %p183 = scmp.ne.s32.totalorder %s175, %s177
    %p184 = scmp.eq.s32.totalorder %s20, 1
    %p185 = por %p183, %p184
    %p186 = scmp.ne.s32.totalorder %s177, %s178
    %p187 = scmp.eq.s32.totalorder %s20, 0
    %p188 = por %p186, %p187
    %p189 = scmp.ne.s32.totalorder %s177, %s178
    %p190 = scmp.eq.s32.totalorder %s21, 1
    %p191 = por %p189, %p190
    %p193 = scmp.ne.s32.totalorder %s178, %s192
    %p194 = scmp.eq.s32.totalorder %s21, 0
    %p195 = por %p193, %p194
    %s197 = sadd.s32 %s196, 1
    %p200 = scmp.eq.s32.totalorder %s15, 1
    %p201 = scmp.ne.s32.totalorder %s196, %s198
    %p202 = scmp.eq.s32.totalorder %s15, 0
    %p203 = por %p201, %p202
    %p204 = scmp.ne.s32.totalorder %s196, %s198
    %p205 = scmp.eq.s32.totalorder %s20, 1
    %p206 = por %p204, %p205
    %p207 = scmp.ne.s32.totalorder %s198, %s199
    %p208 = scmp.eq.s32.totalorder %s20, 0
    %p209 = por %p207, %p208
    %p210 = scmp.ne.s32.totalorder %s198, %s199
    %p211 = scmp.eq.s32.totalorder %s21, 1
    %p212 = por %p210, %p211
    %p214 = scmp.ne.s32.totalorder %s199, %s213
    %p215 = scmp.eq.s32.totalorder %s21, 0
    %p216 = por %p214, %p215
    %s217 = ssub.s32 %s15, %s22
    %p218 = scmp.eq.s32.totalorder %s217, 0
    %s220 = sadd.s32 %s219, 1
    %s221 = scalar_select %p218, %s219, %s220
    %p224 = pneg %p218
    %p225 = scmp.eq.s32.totalorder %s15, 1
    %p226 = por %p224, %p225
    %p227 = scmp.ne.s32.totalorder %s219, %s222
    %p228 = scmp.eq.s32.totalorder %s15, 0
    %p229 = por %p227, %p228
    %p230 = scmp.ne.s32.totalorder %s219, %s222
    %p231 = scmp.eq.s32.totalorder %s20, 1
    %p232 = por %p230, %p231
    %p233 = scmp.ne.s32.totalorder %s222, %s223
    %p234 = scmp.eq.s32.totalorder %s20, 0
    %p235 = por %p233, %p234
    %p236 = scmp.ne.s32.totalorder %s222, %s223
    %p237 = scmp.eq.s32.totalorder %s21, 1
    %p238 = por %p236, %p237
    %p240 = scmp.ne.s32.totalorder %s223, %s239
    %p241 = scmp.eq.s32.totalorder %s21, 0
    %p242 = por %p240, %p241
    %p243 = scmp.le.s32.totalorder 1, %s15
    %p244 = scmp.lt.s32.totalorder %s15, 3
    %p245 = pnand %p243, %p244
    %p246 = pneg %p245
    // Predicated region
    $region9: #{block_forward.2} parent=5 // pred_check
      _
    $region10: #{block_forward.2} parent=5 // pred_check_branch
      %248 = sbr.rel (%p245) target = $region12
    $region11: #{block_forward.2} parent=5 // pred_region
      %s249 = ssub.s32 %s15, 1
      // Predicated region
      $region13: #{block_forward.2} parent=11 // pred_check
        %p250 = pneg %p62
      $region14: #{block_forward.2} parent=11 // pred_check_branch
        %252 = sbr.rel (%p250) target = $region16
      $region15: #{block_forward.2} parent=11 // pred_region
        _
      $region16: #{block_forward.2} parent=11 // pred_fallthru
        _
      // Predicated region
      $region17: #{block_forward.2} parent=11 // pred_check
        %p253 = pneg %p83
      $region18: #{block_forward.2} parent=11 // pred_check_branch
        %255 = sbr.rel (%p253) target = $region20
      $region19: #{block_forward.2} parent=11 // pred_region
        _
      $region20: #{block_forward.2} parent=11 // pred_fallthru
        _
      // Predicated region
      $region21: #{block_forward.2} parent=11 // pred_check
        %p256 = pneg %p104
      $region22: #{block_forward.2} parent=11 // pred_check_branch
        %258 = sbr.rel (%p256) target = $region24
      $region23: #{block_forward.2} parent=11 // pred_region
        _
      $region24: #{block_forward.2} parent=11 // pred_fallthru
        _
      // Predicated region
      $region25: #{block_forward.2} parent=11 // pred_check
        %p259 = pneg %p125
      $region26: #{block_forward.2} parent=11 // pred_check_branch
        %261 = sbr.rel (%p259) target = $region28
      $region27: #{block_forward.2} parent=11 // pred_region
        _
      $region28: #{block_forward.2} parent=11 // pred_fallthru
        _
      // Predicated region
      $region29: #{block_forward.2} parent=11 // pred_check
        %p262 = pneg %p146
      $region30: #{block_forward.2} parent=11 // pred_check_branch
        %264 = sbr.rel (%p262) target = $region32
      $region31: #{block_forward.2} parent=11 // pred_region
        _
      $region32: #{block_forward.2} parent=11 // pred_fallthru
        _
      // Predicated region
      $region33: #{block_forward.2} parent=11 // pred_check
        %p265 = pneg %p167
      $region34: #{block_forward.2} parent=11 // pred_check_branch
        %267 = sbr.rel (%p265) target = $region36
      $region35: #{block_forward.2} parent=11 // pred_region
        _
      $region36: #{block_forward.2} parent=11 // pred_fallthru
        _
      // Predicated region
      $region37: #{block_forward.2} parent=11 // pred_check
        %p268 = pneg %p188
      $region38: #{block_forward.2} parent=11 // pred_check_branch
        %270 = sbr.rel (%p268) target = $region40
      $region39: #{block_forward.2} parent=11 // pred_region
        _
      $region40: #{block_forward.2} parent=11 // pred_fallthru
        _
      // Predicated region
      $region41: #{block_forward.2} parent=11 // pred_check
        %p271 = pneg %p209
      $region42: #{block_forward.2} parent=11 // pred_check_branch
        %273 = sbr.rel (%p271) target = $region44
      $region43: #{block_forward.2} parent=11 // pred_region
        _
      $region44: #{block_forward.2} parent=11 // pred_fallthru
        _
    $region12: #{block_forward.2} parent=5 // pred_fallthru
      _
    %p274 = scmp.lt.s32.totalorder %s15, 2
    // Predicated region
    $region45: #{block_forward.2} parent=5 // pred_check
      %p275 = pneg %p274
    $region46: #{block_forward.2} parent=5 // pred_check_branch
      %277 = sbr.rel (%p275) target = $region48
    $region47: #{block_forward.2} parent=5 // pred_region
      // Predicated region
      $region49: #{block_forward.2} parent=47 // pred_check
        %p278 = pneg %p35
      $region50: #{block_forward.2} parent=47 // pred_check_branch
        %280 = sbr.rel (%p278) target = $region52
      $region51: #{block_forward.2} parent=47 // pred_region
        %p281 = scmp.lt.s32.totalorder %s15, 1
        %s282 = scalar_select %p281, %s15, 1
        %s283 = smul.addr %s282, 32
        %s284 = smul.addr %s283, 8
        %s285 = scalar_lea.vmem %s0, %s284
      $region52: #{block_forward.2} parent=47 // pred_fallthru
        _
    $region48: #{block_forward.2} parent=5 // pred_fallthru
      _
    %p286 = scmp.le.s32.totalorder 1, %s15
    %p287 = scmp.lt.s32.totalorder %s15, 3
    %p288 = pnand %p286, %p287
    %p289 = pneg %p288
    // Predicated region
    $region53: #{block_forward.2} parent=5 // pred_check
      _
    $region54: #{block_forward.2} parent=5 // pred_check_branch
      %291 = sbr.rel (%p288) target = $region56
    $region55: #{block_forward.2} parent=5 // pred_region
      %s292 = ssub.s32 %s15, 1
      %p293 = scmp.lt.s32.totalorder %s20, 1
      %s294 = scalar_select %p293, %s20, 1
      %s295 = smul.addr %s294, 32
      %s296 = smul.addr %s295, 8
      %s297 = scalar_lea.vmem %s0, %s296
      %p298 = pneg %p41
      %p299 = pneg %p38
      %p300 = pneg %p62
      %p301 = pneg %p59
      %p302 = pneg %p83
      %p303 = pneg %p80
      %p304 = pneg %p104
      %p305 = pneg %p101
      %p306 = pneg %p125
      %p307 = pneg %p122
      %p308 = pneg %p146
      %p309 = pneg %p143
      %p310 = pneg %p167
      %p311 = pneg %p164
      %p312 = pneg %p188
      %p313 = pneg %p185
      %p314 = pneg %p209
      %p315 = pneg %p206
      %p316 = pneg %p235
      %p317 = pneg %p232
      %p318 = scmp.lt.s32.totalorder %s20, 1
      %s319 = scalar_select %p318, %s20, 1
      %s320 = smul.addr %s319, 32
      %s321 = smul.addr %s320, 8
      %s322 = scalar_lea.vmem %s9, %s321
      %p323 = scmp.lt.s32.totalorder %s20, 1
      %s324 = scalar_select %p323, %s20, 1
      %s325 = smul.addr %s324, 32
      %s326 = smul.addr %s325, 8
      %s327 = scalar_lea.vmem %s0, %s326
      %p328 = scmp.lt.s32.totalorder %s20, 1
      %s329 = scalar_select %p328, %s20, 1
      %s330 = smul.addr %s329, 32
      %s331 = smul.addr %s330, 8
      %s332 = scalar_lea.vmem %s9, %s331
      %v333 = vld [vmem:[%s327] sm:$0xff]
      %v334 = vld [vmem:[%s327 + $0x8] sm:$0xff]
      %v335 = vld [vmem:[%s327 + $0x10] sm:$0xff]
      %v336 = vld [vmem:[%s327 + $0x18] sm:$0xff]
      %v337 = vld [vmem:[%s327 + $0x20] sm:$0xff]
      %v338 = vld [vmem:[%s327 + $0x28] sm:$0xff]
      %v339 = vld [vmem:[%s327 + $0x30] sm:$0xff]
      %v340 = vld [vmem:[%s327 + $0x38] sm:$0xff]
      %v341 = vld [vmem:[%s327 + $0x40] sm:$0xff]
      %v342 = vld [vmem:[%s327 + $0x48] sm:$0xff]
      %v343 = vld [vmem:[%s327 + $0x50] sm:$0xff]
      %v344 = vld [vmem:[%s327 + $0x58] sm:$0xff]
      %v345 = vld [vmem:[%s327 + $0x60] sm:$0xff]
      %v346 = vld [vmem:[%s327 + $0x68] sm:$0xff]
      %v347 = vld [vmem:[%s327 + $0x70] sm:$0xff]
      %v348 = vld [vmem:[%s327 + $0x78] sm:$0xff]
      %v349 = vld [vmem:[%s327 + $0x80] sm:$0xff]
      %v350 = vld [vmem:[%s327 + $0x88] sm:$0xff]
      %v351 = vld [vmem:[%s327 + $0x90] sm:$0xff]
      %v352 = vld [vmem:[%s327 + $0x98] sm:$0xff]
      %v353 = vld [vmem:[%s327 + $0xa0] sm:$0xff]
      %v354 = vld [vmem:[%s327 + $0xa8] sm:$0xff]
      %v355 = vld [vmem:[%s327 + $0xb0] sm:$0xff]
      %v356 = vld [vmem:[%s327 + $0xb8] sm:$0xff]
      %v357 = vld [vmem:[%s327 + $0xc0] sm:$0xff]
      %v358 = vld [vmem:[%s327 + $0xc8] sm:$0xff]
      %v359 = vld [vmem:[%s327 + $0xd0] sm:$0xff]
      %v360 = vld [vmem:[%s327 + $0xd8] sm:$0xff]
      %v361 = vld [vmem:[%s327 + $0xe0] sm:$0xff]
      %v362 = vld [vmem:[%s327 + $0xe8] sm:$0xff]
      %v363 = vld [vmem:[%s327 + $0xf0] sm:$0xff]
      %v364 = vld [vmem:[%s327 + $0xf8] sm:$0xff]
      %v365 = vmax.f32 %v333, 0.0
      %v366 = vmax.f32 %v334, 0.0
      %v367 = vmax.f32 %v335, 0.0
      %v368 = vmax.f32 %v336, 0.0
      %v369 = vmax.f32 %v337, 0.0
      %v370 = vmax.f32 %v338, 0.0
      %v371 = vmax.f32 %v339, 0.0
      %v372 = vmax.f32 %v340, 0.0
      %v373 = vmax.f32 %v341, 0.0
      %v374 = vmax.f32 %v342, 0.0
      %v375 = vmax.f32 %v343, 0.0
      %v376 = vmax.f32 %v344, 0.0
      %v377 = vmax.f32 %v345, 0.0
      %v378 = vmax.f32 %v346, 0.0
      %v379 = vmax.f32 %v347, 0.0
      %v380 = vmax.f32 %v348, 0.0
      %v381 = vmax.f32 %v349, 0.0
      %v382 = vmax.f32 %v350, 0.0
      %v383 = vmax.f32 %v351, 0.0
      %v384 = vmax.f32 %v352, 0.0
      %v385 = vmax.f32 %v353, 0.0
      %v386 = vmax.f32 %v354, 0.0
      %v387 = vmax.f32 %v355, 0.0
      %v388 = vmax.f32 %v356, 0.0
      %v389 = vmax.f32 %v357, 0.0
      %v390 = vmax.f32 %v358, 0.0
      %v391 = vmax.f32 %v359, 0.0
      %v392 = vmax.f32 %v360, 0.0
      %v393 = vmax.f32 %v361, 0.0
      %v394 = vmax.f32 %v362, 0.0
      %v395 = vmax.f32 %v363, 0.0
      %v396 = vmax.f32 %v364, 0.0
      %vm397 = vcmask 64512
      %398 = vst.msk [vmem:[#allocation2] sm:$0xff] %vm397, 0.0
      %399 = vst.msk [vmem:[#allocation2 + $0x8] sm:$0xff] %vm397, 0.0
      %400 = vst.msk [vmem:[#allocation2 + $0x10] sm:$0xff] %vm397, 0.0
      %vm401 = vcmask 57344
      %402 = vst.msk [vmem:[#allocation2 + $0x18] sm:$0x1] %vm401, 0.0
      %403 = vst.msk [vmem:[#allocation2 + $0x20] sm:$0xff] %vm397, 0.0
      %404 = vst.msk [vmem:[#allocation2 + $0x28] sm:$0xff] %vm397, 0.0
      %405 = vst.msk [vmem:[#allocation2 + $0x30] sm:$0xff] %vm397, 0.0
      %406 = vst.msk [vmem:[#allocation2 + $0x38] sm:$0x1] %vm401, 0.0
      %407 = vst.msk [vmem:[#allocation2 + $0x40] sm:$0xff] %vm397, 0.0
      %408 = vst.msk [vmem:[#allocation2 + $0x48] sm:$0xff] %vm397, 0.0
      %409 = vst.msk [vmem:[#allocation2 + $0x50] sm:$0xff] %vm397, 0.0
      %410 = vst.msk [vmem:[#allocation2 + $0x58] sm:$0x1] %vm401, 0.0
      %411 = vst.msk [vmem:[#allocation2 + $0x60] sm:$0xff] %vm397, 0.0
      %412 = vst.msk [vmem:[#allocation2 + $0x68] sm:$0xff] %vm397, 0.0
      %413 = vst.msk [vmem:[#allocation2 + $0x70] sm:$0xff] %vm397, 0.0
      %414 = vst.msk [vmem:[#allocation2 + $0x78] sm:$0x1] %vm401, 0.0
      %415 = vst.msk [vmem:[#allocation2 + $0x80] sm:$0xff] %vm397, 0.0
      %416 = vst.msk [vmem:[#allocation2 + $0x88] sm:$0xff] %vm397, 0.0
      %417 = vst.msk [vmem:[#allocation2 + $0x90] sm:$0xff] %vm397, 0.0
      %418 = vst.msk [vmem:[#allocation2 + $0x98] sm:$0x1] %vm401, 0.0
      %419 = vst.msk [vmem:[#allocation2 + $0xa0] sm:$0xff] %vm397, 0.0
      %420 = vst.msk [vmem:[#allocation2 + $0xa8] sm:$0xff] %vm397, 0.0
      %421 = vst.msk [vmem:[#allocation2 + $0xb0] sm:$0xff] %vm397, 0.0
      %422 = vst.msk [vmem:[#allocation2 + $0xb8] sm:$0x1] %vm401, 0.0
      %423 = vst.msk [vmem:[#allocation2 + $0xc0] sm:$0xff] %vm397, 0.0
      %424 = vst.msk [vmem:[#allocation2 + $0xc8] sm:$0xff] %vm397, 0.0
      %425 = vst.msk [vmem:[#allocation2 + $0xd0] sm:$0xff] %vm397, 0.0
      %426 = vst.msk [vmem:[#allocation2 + $0xd8] sm:$0x1] %vm401, 0.0
      %427 = vst.msk [vmem:[#allocation2 + $0xe0] sm:$0xff] %vm397, 0.0
      %428 = vst.msk [vmem:[#allocation2 + $0xe8] sm:$0xff] %vm397, 0.0
      %429 = vst.msk [vmem:[#allocation2 + $0xf0] sm:$0xff] %vm397, 0.0
      %430 = vst.msk [vmem:[#allocation2 + $0xf8] sm:$0x1] %vm401, 0.0
      %431 = vst.msk [vmem:[#allocation2 + $0x100] sm:$0xff] %vm397, 0.0
      %432 = vst.msk [vmem:[#allocation2 + $0x108] sm:$0xff] %vm397, 0.0
      %433 = vst.msk [vmem:[#allocation2 + $0x110] sm:$0xff] %vm397, 0.0
      %434 = vst.msk [vmem:[#allocation2 + $0x118] sm:$0x1] %vm401, 0.0
      %435 = vst.msk [vmem:[#allocation2 + $0x120] sm:$0xff] %vm397, 0.0
      %436 = vst.msk [vmem:[#allocation2 + $0x128] sm:$0xff] %vm397, 0.0
      %437 = vst.msk [vmem:[#allocation2 + $0x130] sm:$0xff] %vm397, 0.0
      %438 = vst.msk [vmem:[#allocation2 + $0x138] sm:$0x1] %vm401, 0.0
      %439 = vst.msk [vmem:[#allocation2 + $0x140] sm:$0xff] %vm397, 0.0
      %440 = vst.msk [vmem:[#allocation2 + $0x148] sm:$0xff] %vm397, 0.0
      %441 = vst.msk [vmem:[#allocation2 + $0x150] sm:$0xff] %vm397, 0.0
      %442 = vst.msk [vmem:[#allocation2 + $0x158] sm:$0x1] %vm401, 0.0
      %443 = vst.msk [vmem:[#allocation2 + $0x160] sm:$0xff] %vm397, 0.0
      %444 = vst.msk [vmem:[#allocation2 + $0x168] sm:$0xff] %vm397, 0.0
      %445 = vst.msk [vmem:[#allocation2 + $0x170] sm:$0xff] %vm397, 0.0
      %446 = vst.msk [vmem:[#allocation2 + $0x178] sm:$0x1] %vm401, 0.0
      %447 = vst.msk [vmem:[#allocation2 + $0x180] sm:$0xff] %vm397, 0.0
      %448 = vst.msk [vmem:[#allocation2 + $0x188] sm:$0xff] %vm397, 0.0
      %449 = vst.msk [vmem:[#allocation2 + $0x190] sm:$0xff] %vm397, 0.0
      %450 = vst.msk [vmem:[#allocation2 + $0x198] sm:$0x1] %vm401, 0.0
      %451 = vst.msk [vmem:[#allocation2 + $0x1a0] sm:$0xff] %vm397, 0.0
      %452 = vst.msk [vmem:[#allocation2 + $0x1a8] sm:$0xff] %vm397, 0.0
      %453 = vst.msk [vmem:[#allocation2 + $0x1b0] sm:$0xff] %vm397, 0.0
      %454 = vst.msk [vmem:[#allocation2 + $0x1b8] sm:$0x1] %vm401, 0.0
      %455 = vst.msk [vmem:[#allocation2 + $0x1c0] sm:$0xff] %vm397, 0.0
      %456 = vst.msk [vmem:[#allocation2 + $0x1c8] sm:$0xff] %vm397, 0.0
      %457 = vst.msk [vmem:[#allocation2 + $0x1d0] sm:$0xff] %vm397, 0.0
      %458 = vst.msk [vmem:[#allocation2 + $0x1d8] sm:$0x1] %vm401, 0.0
      %459 = vst.msk [vmem:[#allocation2 + $0x1e0] sm:$0xff] %vm397, 0.0
      %460 = vst.msk [vmem:[#allocation2 + $0x1e8] sm:$0xff] %vm397, 0.0
      %461 = vst.msk [vmem:[#allocation2 + $0x1f0] sm:$0xff] %vm397, 0.0
      %462 = vst.msk [vmem:[#allocation2 + $0x1f8] sm:$0x1] %vm401, 0.0
      %463 = vst.msk [vmem:[#allocation2 + $0x200] sm:$0xff] %vm397, 0.0
      %464 = vst.msk [vmem:[#allocation2 + $0x208] sm:$0xff] %vm397, 0.0
      %465 = vst.msk [vmem:[#allocation2 + $0x210] sm:$0xff] %vm397, 0.0
      %466 = vst.msk [vmem:[#allocation2 + $0x218] sm:$0x1] %vm401, 0.0
      %467 = vst.msk [vmem:[#allocation2 + $0x220] sm:$0xff] %vm397, 0.0
      %468 = vst.msk [vmem:[#allocation2 + $0x228] sm:$0xff] %vm397, 0.0
      %469 = vst.msk [vmem:[#allocation2 + $0x230] sm:$0xff] %vm397, 0.0
      %470 = vst.msk [vmem:[#allocation2 + $0x238] sm:$0x1] %vm401, 0.0
      %s471 = scalar_lea.vmem [#allocation2], 32
      %472 = vst.msk [vmem:[%s471 + $0x8] sm:$0xff] %vm397, %v365
      %473 = vst.msk [vmem:[%s471 + $0x10] sm:$0xff] %vm397, %v366
      %474 = vst.msk [vmem:[%s471 + $0x28] sm:$0xff] %vm397, %v367
      %475 = vst.msk [vmem:[%s471 + $0x30] sm:$0xff] %vm397, %v368
      %476 = vst.msk [vmem:[%s471 + $0x48] sm:$0xff] %vm397, %v369
      %477 = vst.msk [vmem:[%s471 + $0x50] sm:$0xff] %vm397, %v370
      %478 = vst.msk [vmem:[%s471 + $0x68] sm:$0xff] %vm397, %v371
      %479 = vst.msk [vmem:[%s471 + $0x70] sm:$0xff] %vm397, %v372
      %480 = vst.msk [vmem:[%s471 + $0x88] sm:$0xff] %vm397, %v373
      %481 = vst.msk [vmem:[%s471 + $0x90] sm:$0xff] %vm397, %v374
      %482 = vst.msk [vmem:[%s471 + $0xa8] sm:$0xff] %vm397, %v375
      %483 = vst.msk [vmem:[%s471 + $0xb0] sm:$0xff] %vm397, %v376
      %484 = vst.msk [vmem:[%s471 + $0xc8] sm:$0xff] %vm397, %v377
      %485 = vst.msk [vmem:[%s471 + $0xd0] sm:$0xff] %vm397, %v378
      %486 = vst.msk [vmem:[%s471 + $0xe8] sm:$0xff] %vm397, %v379
      %487 = vst.msk [vmem:[%s471 + $0xf0] sm:$0xff] %vm397, %v380
      %488 = vst.msk [vmem:[%s471 + $0x108] sm:$0xff] %vm397, %v381
      %489 = vst.msk [vmem:[%s471 + $0x110] sm:$0xff] %vm397, %v382
      %490 = vst.msk [vmem:[%s471 + $0x128] sm:$0xff] %vm397, %v383
      %491 = vst.msk [vmem:[%s471 + $0x130] sm:$0xff] %vm397, %v384
      %492 = vst.msk [vmem:[%s471 + $0x148] sm:$0xff] %vm397, %v385
      %493 = vst.msk [vmem:[%s471 + $0x150] sm:$0xff] %vm397, %v386
      %494 = vst.msk [vmem:[%s471 + $0x168] sm:$0xff] %vm397, %v387
      %495 = vst.msk [vmem:[%s471 + $0x170] sm:$0xff] %vm397, %v388
      %496 = vst.msk [vmem:[%s471 + $0x188] sm:$0xff] %vm397, %v389
      %497 = vst.msk [vmem:[%s471 + $0x190] sm:$0xff] %vm397, %v390
      %498 = vst.msk [vmem:[%s471 + $0x1a8] sm:$0xff] %vm397, %v391
      %499 = vst.msk [vmem:[%s471 + $0x1b0] sm:$0xff] %vm397, %v392
      %500 = vst.msk [vmem:[%s471 + $0x1c8] sm:$0xff] %vm397, %v393
      %501 = vst.msk [vmem:[%s471 + $0x1d0] sm:$0xff] %vm397, %v394
      %502 = vst.msk [vmem:[%s471 + $0x1e8] sm:$0xff] %vm397, %v395
      %503 = vst.msk [vmem:[%s471 + $0x1f0] sm:$0xff] %vm397, %v396
      %v504 = vld [vmem:[%s1] sm:$0x1]
      %v505 = vld [vmem:[#allocation2 + $0x7] sm:$0xff]
      %v506 = vld [vmem:[#allocation2 + $0xf] sm:$0xff]
      %v507 = vld [vmem:[#allocation2 + $0x27] sm:$0xff]
      %v508 = vld [vmem:[#allocation2 + $0x2f] sm:$0xff]
      %v509 = vld [vmem:[#allocation2 + $0x47] sm:$0xff]
      %v510 = vld [vmem:[#allocation2 + $0x4f] sm:$0xff]
      %v511 = vld [vmem:[#allocation2 + $0x67] sm:$0xff]
      %v512 = vld [vmem:[#allocation2 + $0x6f] sm:$0xff]
      %v513 = vld [vmem:[#allocation2 + $0x87] sm:$0xff]
      %v514 = vld [vmem:[#allocation2 + $0x8f] sm:$0xff]
      %v515 = vld [vmem:[#allocation2 + $0xa7] sm:$0xff]
      %v516 = vld [vmem:[#allocation2 + $0xaf] sm:$0xff]
      %v517 = vld [vmem:[#allocation2 + $0xc7] sm:$0xff]
      %v518 = vld [vmem:[#allocation2 + $0xcf] sm:$0xff]
      %v519 = vld [vmem:[#allocation2 + $0xe7] sm:$0xff]
      %v520 = vld [vmem:[#allocation2 + $0xef] sm:$0xff]
      %v521 = vld [vmem:[#allocation2 + $0x107] sm:$0xff]
      %v522 = vld [vmem:[#allocation2 + $0x10f] sm:$0xff]
      %v523 = vld [vmem:[#allocation2 + $0x127] sm:$0xff]
      %v524 = vld [vmem:[#allocation2 + $0x12f] sm:$0xff]
      %v525 = vld [vmem:[#allocation2 + $0x147] sm:$0xff]
      %v526 = vld [vmem:[#allocation2 + $0x14f] sm:$0xff]
      %v527 = vld [vmem:[#allocation2 + $0x167] sm:$0xff]
      %v528 = vld [vmem:[#allocation2 + $0x16f] sm:$0xff]
      %v529 = vld [vmem:[#allocation2 + $0x187] sm:$0xff]
      %v530 = vld [vmem:[#allocation2 + $0x18f] sm:$0xff]
      %v531 = vld [vmem:[#allocation2 + $0x1a7] sm:$0xff]
      %v532 = vld [vmem:[#allocation2 + $0x1af] sm:$0xff]
      %v533 = vld [vmem:[#allocation2 + $0x1c7] sm:$0xff]
      %v534 = vld [vmem:[#allocation2 + $0x1cf] sm:$0xff]
      %v535 = vld [vmem:[#allocation2 + $0x1e7] sm:$0xff]
      %v536 = vld [vmem:[#allocation2 + $0x1ef] sm:$0xff]
      %v537 = vlaneseq
      %v538 = vshrl.u32 %v537, 7
      %v539 = vsub.s32 0, %v538
      %v540 = vrot.slane %v504, %v539
      %v541 = vmul.f32 %v505, %v540
      %v542 = vmul.f32 %v506, %v540
      %v543 = vmul.f32 %v507, %v540
      %v544 = vmul.f32 %v508, %v540
      %v545 = vmul.f32 %v509, %v540
      %v546 = vmul.f32 %v510, %v540
      %v547 = vmul.f32 %v511, %v540
      %v548 = vmul.f32 %v512, %v540
      %v549 = vmul.f32 %v513, %v540
      %v550 = vmul.f32 %v514, %v540
      %v551 = vmul.f32 %v515, %v540
      %v552 = vmul.f32 %v516, %v540
      %v553 = vmul.f32 %v517, %v540
      %v554 = vmul.f32 %v518, %v540
      %v555 = vmul.f32 %v519, %v540
      %v556 = vmul.f32 %v520, %v540
      %v557 = vmul.f32 %v521, %v540
      %v558 = vmul.f32 %v522, %v540
      %v559 = vmul.f32 %v523, %v540
      %v560 = vmul.f32 %v524, %v540
      %v561 = vmul.f32 %v525, %v540
      %v562 = vmul.f32 %v526, %v540
      %v563 = vmul.f32 %v527, %v540
      %v564 = vmul.f32 %v528, %v540
      %v565 = vmul.f32 %v529, %v540
      %v566 = vmul.f32 %v530, %v540
      %v567 = vmul.f32 %v531, %v540
      %v568 = vmul.f32 %v532, %v540
      %v569 = vmul.f32 %v533, %v540
      %v570 = vmul.f32 %v534, %v540
      %v571 = vmul.f32 %v535, %v540
      %v572 = vmul.f32 %v536, %v540
      %v573 = vadd.f32 %v541, 0.0
      %v574 = vadd.f32 %v542, 0.0
      %v575 = vadd.f32 %v543, 0.0
      %v576 = vadd.f32 %v544, 0.0
      %v577 = vadd.f32 %v545, 0.0
      %v578 = vadd.f32 %v546, 0.0
      %v579 = vadd.f32 %v547, 0.0
      %v580 = vadd.f32 %v548, 0.0
      %v581 = vadd.f32 %v549, 0.0
      %v582 = vadd.f32 %v550, 0.0
      %v583 = vadd.f32 %v551, 0.0
      %v584 = vadd.f32 %v552, 0.0
      %v585 = vadd.f32 %v553, 0.0
      %v586 = vadd.f32 %v554, 0.0
      %v587 = vadd.f32 %v555, 0.0
      %v588 = vadd.f32 %v556, 0.0
      %v589 = vadd.f32 %v557, 0.0
      %v590 = vadd.f32 %v558, 0.0
      %v591 = vadd.f32 %v559, 0.0
      %v592 = vadd.f32 %v560, 0.0
      %v593 = vadd.f32 %v561, 0.0
      %v594 = vadd.f32 %v562, 0.0
      %v595 = vadd.f32 %v563, 0.0
      %v596 = vadd.f32 %v564, 0.0
      %v597 = vadd.f32 %v565, 0.0
      %v598 = vadd.f32 %v566, 0.0
      %v599 = vadd.f32 %v567, 0.0
      %v600 = vadd.f32 %v568, 0.0
      %v601 = vadd.f32 %v569, 0.0
      %v602 = vadd.f32 %v570, 0.0
      %v603 = vadd.f32 %v571, 0.0
      %v604 = vadd.f32 %v572, 0.0
      %v605 = vld [vmem:[%s1 + $0x1] sm:$0x1]
      %v606 = vld [vmem:[#allocation2 + $0x8] sm:$0xff]
      %v607 = vld [vmem:[#allocation2 + $0x10] sm:$0xff]
      %v608 = vld [vmem:[#allocation2 + $0x28] sm:$0xff]
      %v609 = vld [vmem:[#allocation2 + $0x30] sm:$0xff]
      %v610 = vld [vmem:[#allocation2 + $0x48] sm:$0xff]
      %v611 = vld [vmem:[#allocation2 + $0x50] sm:$0xff]
      %v612 = vld [vmem:[#allocation2 + $0x68] sm:$0xff]
      %v613 = vld [vmem:[#allocation2 + $0x70] sm:$0xff]
      %v614 = vld [vmem:[#allocation2 + $0x88] sm:$0xff]
      %v615 = vld [vmem:[#allocation2 + $0x90] sm:$0xff]
      %v616 = vld [vmem:[#allocation2 + $0xa8] sm:$0xff]
      %v617 = vld [vmem:[#allocation2 + $0xb0] sm:$0xff]
      %v618 = vld [vmem:[#allocation2 + $0xc8] sm:$0xff]
      %v619 = vld [vmem:[#allocation2 + $0xd0] sm:$0xff]
      %v620 = vld [vmem:[#allocation2 + $0xe8] sm:$0xff]
      %v621 = vld [vmem:[#allocation2 + $0xf0] sm:$0xff]
      %v622 = vld [vmem:[#allocation2 + $0x108] sm:$0xff]
      %v623 = vld [vmem:[#allocation2 + $0x110] sm:$0xff]
      %v624 = vld [vmem:[#allocation2 + $0x128] sm:$0xff]
      %v625 = vld [vmem:[#allocation2 + $0x130] sm:$0xff]
      %v626 = vld [vmem:[#allocation2 + $0x148] sm:$0xff]
      %v627 = vld [vmem:[#allocation2 + $0x150] sm:$0xff]
      %v628 = vld [vmem:[#allocation2 + $0x168] sm:$0xff]
      %v629 = vld [vmem:[#allocation2 + $0x170] sm:$0xff]
      %v630 = vld [vmem:[#allocation2 + $0x188] sm:$0xff]
      %v631 = vld [vmem:[#allocation2 + $0x190] sm:$0xff]
      %v632 = vld [vmem:[#allocation2 + $0x1a8] sm:$0xff]
      %v633 = vld [vmem:[#allocation2 + $0x1b0] sm:$0xff]
      %v634 = vld [vmem:[#allocation2 + $0x1c8] sm:$0xff]
      %v635 = vld [vmem:[#allocation2 + $0x1d0] sm:$0xff]
      %v636 = vld [vmem:[#allocation2 + $0x1e8] sm:$0xff]
      %v637 = vld [vmem:[#allocation2 + $0x1f0] sm:$0xff]
      %v638 = vlaneseq
      %v639 = vshrl.u32 %v638, 7
      %v640 = vsub.s32 0, %v639
      %v641 = vrot.slane %v605, %v640
      %v642 = vmul.f32 %v606, %v641
      %v643 = vmul.f32 %v607, %v641
      %v644 = vmul.f32 %v608, %v641
      %v645 = vmul.f32 %v609, %v641
      %v646 = vmul.f32 %v610, %v641
      %v647 = vmul.f32 %v611, %v641
      %v648 = vmul.f32 %v612, %v641
      %v649 = vmul.f32 %v613, %v641
      %v650 = vmul.f32 %v614, %v641
      %v651 = vmul.f32 %v615, %v641
      %v652 = vmul.f32 %v616, %v641
      %v653 = vmul.f32 %v617, %v641
      %v654 = vmul.f32 %v618, %v641
      %v655 = vmul.f32 %v619, %v641
      %v656 = vmul.f32 %v620, %v641
      %v657 = vmul.f32 %v621, %v641
      %v658 = vmul.f32 %v622, %v641
      %v659 = vmul.f32 %v623, %v641
      %v660 = vmul.f32 %v624, %v641
      %v661 = vmul.f32 %v625, %v641
      %v662 = vmul.f32 %v626, %v641
      %v663 = vmul.f32 %v627, %v641
      %v664 = vmul.f32 %v628, %v641
      %v665 = vmul.f32 %v629, %v641
      %v666 = vmul.f32 %v630, %v641
      %v667 = vmul.f32 %v631, %v641
      %v668 = vmul.f32 %v632, %v641
      %v669 = vmul.f32 %v633, %v641
      %v670 = vmul.f32 %v634, %v641
      %v671 = vmul.f32 %v635, %v641
      %v672 = vmul.f32 %v636, %v641
      %v673 = vmul.f32 %v637, %v641
      %v674 = vadd.f32 %v573, %v642
      %v675 = vadd.f32 %v574, %v643
      %v676 = vadd.f32 %v575, %v644
      %v677 = vadd.f32 %v576, %v645
      %v678 = vadd.f32 %v577, %v646
      %v679 = vadd.f32 %v578, %v647
      %v680 = vadd.f32 %v579, %v648
      %v681 = vadd.f32 %v580, %v649
      %v682 = vadd.f32 %v581, %v650
      %v683 = vadd.f32 %v582, %v651
      %v684 = vadd.f32 %v583, %v652
      %v685 = vadd.f32 %v584, %v653
      %v686 = vadd.f32 %v585, %v654
      %v687 = vadd.f32 %v586, %v655
      %v688 = vadd.f32 %v587, %v656
      %v689 = vadd.f32 %v588, %v657
      %v690 = vadd.f32 %v589, %v658
      %v691 = vadd.f32 %v590, %v659
      %v692 = vadd.f32 %v591, %v660
      %v693 = vadd.f32 %v592, %v661
      %v694 = vadd.f32 %v593, %v662
      %v695 = vadd.f32 %v594, %v663
      %v696 = vadd.f32 %v595, %v664
      %v697 = vadd.f32 %v596, %v665
      %v698 = vadd.f32 %v597, %v666
      %v699 = vadd.f32 %v598, %v667
      %v700 = vadd.f32 %v599, %v668
      %v701 = vadd.f32 %v600, %v669
      %v702 = vadd.f32 %v601, %v670
      %v703 = vadd.f32 %v602, %v671
      %v704 = vadd.f32 %v603, %v672
      %v705 = vadd.f32 %v604, %v673
      %v706 = vld [vmem:[%s1 + $0x2] sm:$0x1]
      %v707 = vld [vmem:[#allocation2 + $0x9] sm:$0xff]
      %v708 = vld [vmem:[#allocation2 + $0x11] sm:$0xff]
      %v709 = vld [vmem:[#allocation2 + $0x29] sm:$0xff]
      %v710 = vld [vmem:[#allocation2 + $0x31] sm:$0xff]
      %v711 = vld [vmem:[#allocation2 + $0x49] sm:$0xff]
      %v712 = vld [vmem:[#allocation2 + $0x51] sm:$0xff]
      %v713 = vld [vmem:[#allocation2 + $0x69] sm:$0xff]
      %v714 = vld [vmem:[#allocation2 + $0x71] sm:$0xff]
      %v715 = vld [vmem:[#allocation2 + $0x89] sm:$0xff]
      %v716 = vld [vmem:[#allocation2 + $0x91] sm:$0xff]
      %v717 = vld [vmem:[#allocation2 + $0xa9] sm:$0xff]
      %v718 = vld [vmem:[#allocation2 + $0xb1] sm:$0xff]
      %v719 = vld [vmem:[#allocation2 + $0xc9] sm:$0xff]
      %v720 = vld [vmem:[#allocation2 + $0xd1] sm:$0xff]
      %v721 = vld [vmem:[#allocation2 + $0xe9] sm:$0xff]
      %v722 = vld [vmem:[#allocation2 + $0xf1] sm:$0xff]
      %v723 = vld [vmem:[#allocation2 + $0x109] sm:$0xff]
      %v724 = vld [vmem:[#allocation2 + $0x111] sm:$0xff]
      %v725 = vld [vmem:[#allocation2 + $0x129] sm:$0xff]
      %v726 = vld [vmem:[#allocation2 + $0x131] sm:$0xff]
      %v727 = vld [vmem:[#allocation2 + $0x149] sm:$0xff]
      %v728 = vld [vmem:[#allocation2 + $0x151] sm:$0xff]
      %v729 = vld [vmem:[#allocation2 + $0x169] sm:$0xff]
      %v730 = vld [vmem:[#allocation2 + $0x171] sm:$0xff]
      %v731 = vld [vmem:[#allocation2 + $0x189] sm:$0xff]
      %v732 = vld [vmem:[#allocation2 + $0x191] sm:$0xff]
      %v733 = vld [vmem:[#allocation2 + $0x1a9] sm:$0xff]
      %v734 = vld [vmem:[#allocation2 + $0x1b1] sm:$0xff]
      %v735 = vld [vmem:[#allocation2 + $0x1c9] sm:$0xff]
      %v736 = vld [vmem:[#allocation2 + $0x1d1] sm:$0xff]
      %v737 = vld [vmem:[#allocation2 + $0x1e9] sm:$0xff]
      %v738 = vld [vmem:[#allocation2 + $0x1f1] sm:$0xff]
      %v739 = vlaneseq
      %v740 = vshrl.u32 %v739, 7
      %v741 = vsub.s32 0, %v740
      %v742 = vrot.slane %v706, %v741
      %v743 = vmul.f32 %v707, %v742
      %v744 = vmul.f32 %v708, %v742
      %v745 = vmul.f32 %v709, %v742
      %v746 = vmul.f32 %v710, %v742
      %v747 = vmul.f32 %v711, %v742
      %v748 = vmul.f32 %v712, %v742
      %v749 = vmul.f32 %v713, %v742
      %v750 = vmul.f32 %v714, %v742
      %v751 = vmul.f32 %v715, %v742
      %v752 = vmul.f32 %v716, %v742
      %v753 = vmul.f32 %v717, %v742
      %v754 = vmul.f32 %v718, %v742
      %v755 = vmul.f32 %v719, %v742
      %v756 = vmul.f32 %v720, %v742
      %v757 = vmul.f32 %v721, %v742
      %v758 = vmul.f32 %v722, %v742
      %v759 = vmul.f32 %v723, %v742
      %v760 = vmul.f32 %v724, %v742
      %v761 = vmul.f32 %v725, %v742
      %v762 = vmul.f32 %v726, %v742
      %v763 = vmul.f32 %v727, %v742
      %v764 = vmul.f32 %v728, %v742
      %v765 = vmul.f32 %v729, %v742
      %v766 = vmul.f32 %v730, %v742
      %v767 = vmul.f32 %v731, %v742
      %v768 = vmul.f32 %v732, %v742
      %v769 = vmul.f32 %v733, %v742
      %v770 = vmul.f32 %v734, %v742
      %v771 = vmul.f32 %v735, %v742
      %v772 = vmul.f32 %v736, %v742
      %v773 = vmul.f32 %v737, %v742
      %v774 = vmul.f32 %v738, %v742
      %v775 = vadd.f32 %v674, %v743
      %v776 = vadd.f32 %v675, %v744
      %v777 = vadd.f32 %v676, %v745
      %v778 = vadd.f32 %v677, %v746
      %v779 = vadd.f32 %v678, %v747
      %v780 = vadd.f32 %v679, %v748
      %v781 = vadd.f32 %v680, %v749
      %v782 = vadd.f32 %v681, %v750
      %v783 = vadd.f32 %v682, %v751
      %v784 = vadd.f32 %v683, %v752
      %v785 = vadd.f32 %v684, %v753
      %v786 = vadd.f32 %v685, %v754
      %v787 = vadd.f32 %v686, %v755
      %v788 = vadd.f32 %v687, %v756
      %v789 = vadd.f32 %v688, %v757
      %v790 = vadd.f32 %v689, %v758
      %v791 = vadd.f32 %v690, %v759
      %v792 = vadd.f32 %v691, %v760
      %v793 = vadd.f32 %v692, %v761
      %v794 = vadd.f32 %v693, %v762
      %v795 = vadd.f32 %v694, %v763
      %v796 = vadd.f32 %v695, %v764
      %v797 = vadd.f32 %v696, %v765
      %v798 = vadd.f32 %v697, %v766
      %v799 = vadd.f32 %v698, %v767
      %v800 = vadd.f32 %v699, %v768
      %v801 = vadd.f32 %v700, %v769
      %v802 = vadd.f32 %v701, %v770
      %v803 = vadd.f32 %v702, %v771
      %v804 = vadd.f32 %v703, %v772
      %v805 = vadd.f32 %v704, %v773
      %v806 = vadd.f32 %v705, %v774
      %s807 = scalar_lea.vmem %s1, 4
      %v808 = vld [vmem:[%s807] sm:$0x1]
      %v809 = vld [vmem:[%s471 + $0x7] sm:$0xff]
      %v810 = vld [vmem:[%s471 + $0xf] sm:$0xff]
      %v811 = vld [vmem:[%s471 + $0x27] sm:$0xff]
      %v812 = vld [vmem:[%s471 + $0x2f] sm:$0xff]
      %v813 = vld [vmem:[%s471 + $0x47] sm:$0xff]
      %v814 = vld [vmem:[%s471 + $0x4f] sm:$0xff]
      %v815 = vld [vmem:[%s471 + $0x67] sm:$0xff]
      %v816 = vld [vmem:[%s471 + $0x6f] sm:$0xff]
      %v817 = vld [vmem:[%s471 + $0x87] sm:$0xff]
      %v818 = vld [vmem:[%s471 + $0x8f] sm:$0xff]
      %v819 = vld [vmem:[%s471 + $0xa7] sm:$0xff]
      %v820 = vld [vmem:[%s471 + $0xaf] sm:$0xff]
      %v821 = vld [vmem:[%s471 + $0xc7] sm:$0xff]
      %v822 = vld [vmem:[%s471 + $0xcf] sm:$0xff]
      %v823 = vld [vmem:[%s471 + $0xe7] sm:$0xff]
      %v824 = vld [vmem:[%s471 + $0xef] sm:$0xff]
      %v825 = vld [vmem:[%s471 + $0x107] sm:$0xff]
      %v826 = vld [vmem:[%s471 + $0x10f] sm:$0xff]
      %v827 = vld [vmem:[%s471 + $0x127] sm:$0xff]
      %v828 = vld [vmem:[%s471 + $0x12f] sm:$0xff]
      %v829 = vld [vmem:[%s471 + $0x147] sm:$0xff]
      %v830 = vld [vmem:[%s471 + $0x14f] sm:$0xff]
      %v831 = vld [vmem:[%s471 + $0x167] sm:$0xff]
      %v832 = vld [vmem:[%s471 + $0x16f] sm:$0xff]
      %v833 = vld [vmem:[%s471 + $0x187] sm:$0xff]
      %v834 = vld [vmem:[%s471 + $0x18f] sm:$0xff]
      %v835 = vld [vmem:[%s471 + $0x1a7] sm:$0xff]
      %v836 = vld [vmem:[%s471 + $0x1af] sm:$0xff]
      %v837 = vld [vmem:[%s471 + $0x1c7] sm:$0xff]
      %v838 = vld [vmem:[%s471 + $0x1cf] sm:$0xff]
      %v839 = vld [vmem:[%s471 + $0x1e7] sm:$0xff]
      %v840 = vld [vmem:[%s471 + $0x1ef] sm:$0xff]
      %v841 = vlaneseq
      %v842 = vshrl.u32 %v841, 7
      %v843 = vsub.s32 0, %v842
      %v844 = vrot.slane %v808, %v843
      %v845 = vmul.f32 %v809, %v844
      %v846 = vmul.f32 %v810, %v844
      %v847 = vmul.f32 %v811, %v844
      %v848 = vmul.f32 %v812, %v844
      %v849 = vmul.f32 %v813, %v844
      %v850 = vmul.f32 %v814, %v844
      %v851 = vmul.f32 %v815, %v844
      %v852 = vmul.f32 %v816, %v844
      %v853 = vmul.f32 %v817, %v844
      %v854 = vmul.f32 %v818, %v844
      %v855 = vmul.f32 %v819, %v844
      %v856 = vmul.f32 %v820, %v844
      %v857 = vmul.f32 %v821, %v844
      %v858 = vmul.f32 %v822, %v844
      %v859 = vmul.f32 %v823, %v844
      %v860 = vmul.f32 %v824, %v844
      %v861 = vmul.f32 %v825, %v844
      %v862 = vmul.f32 %v826, %v844
      %v863 = vmul.f32 %v827, %v844
      %v864 = vmul.f32 %v828, %v844
      %v865 = vmul.f32 %v829, %v844
      %v866 = vmul.f32 %v830, %v844
      %v867 = vmul.f32 %v831, %v844
      %v868 = vmul.f32 %v832, %v844
      %v869 = vmul.f32 %v833, %v844
      %v870 = vmul.f32 %v834, %v844
      %v871 = vmul.f32 %v835, %v844
      %v872 = vmul.f32 %v836, %v844
      %v873 = vmul.f32 %v837, %v844
      %v874 = vmul.f32 %v838, %v844
      %v875 = vmul.f32 %v839, %v844
      %v876 = vmul.f32 %v840, %v844
      %v877 = vadd.f32 %v775, %v845
      %v878 = vadd.f32 %v776, %v846
      %v879 = vadd.f32 %v777, %v847
      %v880 = vadd.f32 %v778, %v848
      %v881 = vadd.f32 %v779, %v849
      %v882 = vadd.f32 %v780, %v850
      %v883 = vadd.f32 %v781, %v851
      %v884 = vadd.f32 %v782, %v852
      %v885 = vadd.f32 %v783, %v853
      %v886 = vadd.f32 %v784, %v854
      %v887 = vadd.f32 %v785, %v855
      %v888 = vadd.f32 %v786, %v856
      %v889 = vadd.f32 %v787, %v857
      %v890 = vadd.f32 %v788, %v858
      %v891 = vadd.f32 %v789, %v859
      %v892 = vadd.f32 %v790, %v860
      %v893 = vadd.f32 %v791, %v861
      %v894 = vadd.f32 %v792, %v862
      %v895 = vadd.f32 %v793, %v863
      %v896 = vadd.f32 %v794, %v864
      %v897 = vadd.f32 %v795, %v865
      %v898 = vadd.f32 %v796, %v866
      %v899 = vadd.f32 %v797, %v867
      %v900 = vadd.f32 %v798, %v868
      %v901 = vadd.f32 %v799, %v869
      %v902 = vadd.f32 %v800, %v870
      %v903 = vadd.f32 %v801, %v871
      %v904 = vadd.f32 %v802, %v872
      %v905 = vadd.f32 %v803, %v873
      %v906 = vadd.f32 %v804, %v874
      %v907 = vadd.f32 %v805, %v875
      %v908 = vadd.f32 %v806, %v876
      %v909 = vld [vmem:[%s807 + $0x1] sm:$0x1]
      %v910 = vld [vmem:[%s471 + $0x8] sm:$0xff]
      %v911 = vld [vmem:[%s471 + $0x10] sm:$0xff]
      %v912 = vld [vmem:[%s471 + $0x28] sm:$0xff]
      %v913 = vld [vmem:[%s471 + $0x30] sm:$0xff]
      %v914 = vld [vmem:[%s471 + $0x48] sm:$0xff]
      %v915 = vld [vmem:[%s471 + $0x50] sm:$0xff]
      %v916 = vld [vmem:[%s471 + $0x68] sm:$0xff]
      %v917 = vld [vmem:[%s471 + $0x70] sm:$0xff]
      %v918 = vld [vmem:[%s471 + $0x88] sm:$0xff]
      %v919 = vld [vmem:[%s471 + $0x90] sm:$0xff]
      %v920 = vld [vmem:[%s471 + $0xa8] sm:$0xff]
      %v921 = vld [vmem:[%s471 + $0xb0] sm:$0xff]
      %v922 = vld [vmem:[%s471 + $0xc8] sm:$0xff]
      %v923 = vld [vmem:[%s471 + $0xd0] sm:$0xff]
      %v924 = vld [vmem:[%s471 + $0xe8] sm:$0xff]
      %v925 = vld [vmem:[%s471 + $0xf0] sm:$0xff]
      %v926 = vld [vmem:[%s471 + $0x108] sm:$0xff]
      %v927 = vld [vmem:[%s471 + $0x110] sm:$0xff]
      %v928 = vld [vmem:[%s471 + $0x128] sm:$0xff]
      %v929 = vld [vmem:[%s471 + $0x130] sm:$0xff]
      %v930 = vld [vmem:[%s471 + $0x148] sm:$0xff]
      %v931 = vld [vmem:[%s471 + $0x150] sm:$0xff]
      %v932 = vld [vmem:[%s471 + $0x168] sm:$0xff]
      %v933 = vld [vmem:[%s471 + $0x170] sm:$0xff]
      %v934 = vld [vmem:[%s471 + $0x188] sm:$0xff]
      %v935 = vld [vmem:[%s471 + $0x190] sm:$0xff]
      %v936 = vld [vmem:[%s471 + $0x1a8] sm:$0xff]
      %v937 = vld [vmem:[%s471 + $0x1b0] sm:$0xff]
      %v938 = vld [vmem:[%s471 + $0x1c8] sm:$0xff]
      %v939 = vld [vmem:[%s471 + $0x1d0] sm:$0xff]
      %v940 = vld [vmem:[%s471 + $0x1e8] sm:$0xff]
      %v941 = vld [vmem:[%s471 + $0x1f0] sm:$0xff]
      %v942 = vlaneseq
      %v943 = vshrl.u32 %v942, 7
      %v944 = vsub.s32 0, %v943
      %v945 = vrot.slane %v909, %v944
      %v946 = vmul.f32 %v910, %v945
      %v947 = vmul.f32 %v911, %v945
      %v948 = vmul.f32 %v912, %v945
      %v949 = vmul.f32 %v913, %v945
      %v950 = vmul.f32 %v914, %v945
      %v951 = vmul.f32 %v915, %v945
      %v952 = vmul.f32 %v916, %v945
      %v953 = vmul.f32 %v917, %v945
      %v954 = vmul.f32 %v918, %v945
      %v955 = vmul.f32 %v919, %v945
      %v956 = vmul.f32 %v920, %v945
      %v957 = vmul.f32 %v921, %v945
      %v958 = vmul.f32 %v922, %v945
      %v959 = vmul.f32 %v923, %v945
      %v960 = vmul.f32 %v924, %v945
      %v961 = vmul.f32 %v925, %v945
      %v962 = vmul.f32 %v926, %v945
      %v963 = vmul.f32 %v927, %v945
      %v964 = vmul.f32 %v928, %v945
      %v965 = vmul.f32 %v929, %v945
      %v966 = vmul.f32 %v930, %v945
      %v967 = vmul.f32 %v931, %v945
      %v968 = vmul.f32 %v932, %v945
      %v969 = vmul.f32 %v933, %v945
      %v970 = vmul.f32 %v934, %v945
      %v971 = vmul.f32 %v935, %v945
      %v972 = vmul.f32 %v936, %v945
      %v973 = vmul.f32 %v937, %v945
      %v974 = vmul.f32 %v938, %v945
      %v975 = vmul.f32 %v939, %v945
      %v976 = vmul.f32 %v940, %v945
      %v977 = vmul.f32 %v941, %v945
      %v978 = vadd.f32 %v877, %v946
      %v979 = vadd.f32 %v878, %v947
      %v980 = vadd.f32 %v879, %v948
      %v981 = vadd.f32 %v880, %v949
      %v982 = vadd.f32 %v881, %v950
      %v983 = vadd.f32 %v882, %v951
      %v984 = vadd.f32 %v883, %v952
      %v985 = vadd.f32 %v884, %v953
      %v986 = vadd.f32 %v885, %v954
      %v987 = vadd.f32 %v886, %v955
      %v988 = vadd.f32 %v887, %v956
      %v989 = vadd.f32 %v888, %v957
      %v990 = vadd.f32 %v889, %v958
      %v991 = vadd.f32 %v890, %v959
      %v992 = vadd.f32 %v891, %v960
      %v993 = vadd.f32 %v892, %v961
      %v994 = vadd.f32 %v893, %v962
      %v995 = vadd.f32 %v894, %v963
      %v996 = vadd.f32 %v895, %v964
      %v997 = vadd.f32 %v896, %v965
      %v998 = vadd.f32 %v897, %v966
      %v999 = vadd.f32 %v898, %v967
      %v1000 = vadd.f32 %v899, %v968
      %v1001 = vadd.f32 %v900, %v969
      %v1002 = vadd.f32 %v901, %v970
      %v1003 = vadd.f32 %v902, %v971
      %v1004 = vadd.f32 %v903, %v972
      %v1005 = vadd.f32 %v904, %v973
      %v1006 = vadd.f32 %v905, %v974
      %v1007 = vadd.f32 %v906, %v975
      %v1008 = vadd.f32 %v907, %v976
      %v1009 = vadd.f32 %v908, %v977
      %v1010 = vld [vmem:[%s807 + $0x2] sm:$0x1]
      %v1011 = vld [vmem:[%s471 + $0x9] sm:$0xff]
      %v1012 = vld [vmem:[%s471 + $0x11] sm:$0xff]
      %v1013 = vld [vmem:[%s471 + $0x29] sm:$0xff]
      %v1014 = vld [vmem:[%s471 + $0x31] sm:$0xff]
      %v1015 = vld [vmem:[%s471 + $0x49] sm:$0xff]
      %v1016 = vld [vmem:[%s471 + $0x51] sm:$0xff]
      %v1017 = vld [vmem:[%s471 + $0x69] sm:$0xff]
      %v1018 = vld [vmem:[%s471 + $0x71] sm:$0xff]
      %v1019 = vld [vmem:[%s471 + $0x89] sm:$0xff]
      %v1020 = vld [vmem:[%s471 + $0x91] sm:$0xff]
      %v1021 = vld [vmem:[%s471 + $0xa9] sm:$0xff]
      %v1022 = vld [vmem:[%s471 + $0xb1] sm:$0xff]
      %v1023 = vld [vmem:[%s471 + $0xc9] sm:$0xff]
      %v1024 = vld [vmem:[%s471 + $0xd1] sm:$0xff]
      %v1025 = vld [vmem:[%s471 + $0xe9] sm:$0xff]
      %v1026 = vld [vmem:[%s471 + $0xf1] sm:$0xff]
      %v1027 = vld [vmem:[%s471 + $0x109] sm:$0xff]
      %v1028 = vld [vmem:[%s471 + $0x111] sm:$0xff]
      %v1029 = vld [vmem:[%s471 + $0x129] sm:$0xff]
      %v1030 = vld [vmem:[%s471 + $0x131] sm:$0xff]
      %v1031 = vld [vmem:[%s471 + $0x149] sm:$0xff]
      %v1032 = vld [vmem:[%s471 + $0x151] sm:$0xff]
      %v1033 = vld [vmem:[%s471 + $0x169] sm:$0xff]
      %v1034 = vld [vmem:[%s471 + $0x171] sm:$0xff]
      %v1035 = vld [vmem:[%s471 + $0x189] sm:$0xff]
      %v1036 = vld [vmem:[%s471 + $0x191] sm:$0xff]
      %v1037 = vld [vmem:[%s471 + $0x1a9] sm:$0xff]
      %v1038 = vld [vmem:[%s471 + $0x1b1] sm:$0xff]
      %v1039 = vld [vmem:[%s471 + $0x1c9] sm:$0xff]
      %v1040 = vld [vmem:[%s471 + $0x1d1] sm:$0xff]
      %v1041 = vld [vmem:[%s471 + $0x1e9] sm:$0xff]
      %v1042 = vld [vmem:[%s471 + $0x1f1] sm:$0xff]
      %v1043 = vlaneseq
      %v1044 = vshrl.u32 %v1043, 7
      %v1045 = vsub.s32 0, %v1044
      %v1046 = vrot.slane %v1010, %v1045
      %v1047 = vmul.f32 %v1011, %v1046
      %v1048 = vmul.f32 %v1012, %v1046
      %v1049 = vmul.f32 %v1013, %v1046
      %v1050 = vmul.f32 %v1014, %v1046
      %v1051 = vmul.f32 %v1015, %v1046
      %v1052 = vmul.f32 %v1016, %v1046
      %v1053 = vmul.f32 %v1017, %v1046
      %v1054 = vmul.f32 %v1018, %v1046
      %v1055 = vmul.f32 %v1019, %v1046
      %v1056 = vmul.f32 %v1020, %v1046
      %v1057 = vmul.f32 %v1021, %v1046
      %v1058 = vmul.f32 %v1022, %v1046
      %v1059 = vmul.f32 %v1023, %v1046
      %v1060 = vmul.f32 %v1024, %v1046
      %v1061 = vmul.f32 %v1025, %v1046
      %v1062 = vmul.f32 %v1026, %v1046
      %v1063 = vmul.f32 %v1027, %v1046
      %v1064 = vmul.f32 %v1028, %v1046
      %v1065 = vmul.f32 %v1029, %v1046
      %v1066 = vmul.f32 %v1030, %v1046
      %v1067 = vmul.f32 %v1031, %v1046
      %v1068 = vmul.f32 %v1032, %v1046
      %v1069 = vmul.f32 %v1033, %v1046
      %v1070 = vmul.f32 %v1034, %v1046
      %v1071 = vmul.f32 %v1035, %v1046
      %v1072 = vmul.f32 %v1036, %v1046
      %v1073 = vmul.f32 %v1037, %v1046
      %v1074 = vmul.f32 %v1038, %v1046
      %v1075 = vmul.f32 %v1039, %v1046
      %v1076 = vmul.f32 %v1040, %v1046
      %v1077 = vmul.f32 %v1041, %v1046
      %v1078 = vmul.f32 %v1042, %v1046
      %v1079 = vadd.f32 %v978, %v1047
      %v1080 = vadd.f32 %v979, %v1048
      %v1081 = vadd.f32 %v980, %v1049
      %v1082 = vadd.f32 %v981, %v1050
      %v1083 = vadd.f32 %v982, %v1051
      %v1084 = vadd.f32 %v983, %v1052
      %v1085 = vadd.f32 %v984, %v1053
      %v1086 = vadd.f32 %v985, %v1054
      %v1087 = vadd.f32 %v986, %v1055
      %v1088 = vadd.f32 %v987, %v1056
      %v1089 = vadd.f32 %v988, %v1057
      %v1090 = vadd.f32 %v989, %v1058
      %v1091 = vadd.f32 %v990, %v1059
      %v1092 = vadd.f32 %v991, %v1060
      %v1093 = vadd.f32 %v992, %v1061
      %v1094 = vadd.f32 %v993, %v1062
      %v1095 = vadd.f32 %v994, %v1063
      %v1096 = vadd.f32 %v995, %v1064
      %v1097 = vadd.f32 %v996, %v1065
      %v1098 = vadd.f32 %v997, %v1066
      %v1099 = vadd.f32 %v998, %v1067
      %v1100 = vadd.f32 %v999, %v1068
      %v1101 = vadd.f32 %v1000, %v1069
      %v1102 = vadd.f32 %v1001, %v1070
      %v1103 = vadd.f32 %v1002, %v1071
      %v1104 = vadd.f32 %v1003, %v1072
      %v1105 = vadd.f32 %v1004, %v1073
      %v1106 = vadd.f32 %v1005, %v1074
      %v1107 = vadd.f32 %v1006, %v1075
      %v1108 = vadd.f32 %v1007, %v1076
      %v1109 = vadd.f32 %v1008, %v1077
      %v1110 = vadd.f32 %v1009, %v1078
      %s1111 = scalar_lea.vmem %s1, 8
      %v1112 = vld [vmem:[%s1111] sm:$0x1]
      %s1113 = scalar_lea.vmem [#allocation2], 64
      %v1114 = vld [vmem:[%s1113 + $0x7] sm:$0xff]
      %v1115 = vld [vmem:[%s1113 + $0xf] sm:$0xff]
      %v1116 = vld [vmem:[%s1113 + $0x27] sm:$0xff]
      %v1117 = vld [vmem:[%s1113 + $0x2f] sm:$0xff]
      %v1118 = vld [vmem:[%s1113 + $0x47] sm:$0xff]
      %v1119 = vld [vmem:[%s1113 + $0x4f] sm:$0xff]
      %v1120 = vld [vmem:[%s1113 + $0x67] sm:$0xff]
      %v1121 = vld [vmem:[%s1113 + $0x6f] sm:$0xff]
      %v1122 = vld [vmem:[%s1113 + $0x87] sm:$0xff]
      %v1123 = vld [vmem:[%s1113 + $0x8f] sm:$0xff]
      %v1124 = vld [vmem:[%s1113 + $0xa7] sm:$0xff]
      %v1125 = vld [vmem:[%s1113 + $0xaf] sm:$0xff]
      %v1126 = vld [vmem:[%s1113 + $0xc7] sm:$0xff]
      %v1127 = vld [vmem:[%s1113 + $0xcf] sm:$0xff]
      %v1128 = vld [vmem:[%s1113 + $0xe7] sm:$0xff]
      %v1129 = vld [vmem:[%s1113 + $0xef] sm:$0xff]
      %v1130 = vld [vmem:[%s1113 + $0x107] sm:$0xff]
      %v1131 = vld [vmem:[%s1113 + $0x10f] sm:$0xff]
      %v1132 = vld [vmem:[%s1113 + $0x127] sm:$0xff]
      %v1133 = vld [vmem:[%s1113 + $0x12f] sm:$0xff]
      %v1134 = vld [vmem:[%s1113 + $0x147] sm:$0xff]
      %v1135 = vld [vmem:[%s1113 + $0x14f] sm:$0xff]
      %v1136 = vld [vmem:[%s1113 + $0x167] sm:$0xff]
      %v1137 = vld [vmem:[%s1113 + $0x16f] sm:$0xff]
      %v1138 = vld [vmem:[%s1113 + $0x187] sm:$0xff]
      %v1139 = vld [vmem:[%s1113 + $0x18f] sm:$0xff]
      %v1140 = vld [vmem:[%s1113 + $0x1a7] sm:$0xff]
      %v1141 = vld [vmem:[%s1113 + $0x1af] sm:$0xff]
      %v1142 = vld [vmem:[%s1113 + $0x1c7] sm:$0xff]
      %v1143 = vld [vmem:[%s1113 + $0x1cf] sm:$0xff]
      %v1144 = vld [vmem:[%s1113 + $0x1e7] sm:$0xff]
      %v1145 = vld [vmem:[%s1113 + $0x1ef] sm:$0xff]
      %v1146 = vlaneseq
      %v1147 = vshrl.u32 %v1146, 7
      %v1148 = vsub.s32 0, %v1147
      %v1149 = vrot.slane %v1112, %v1148
      %v1150 = vmul.f32 %v1114, %v1149
      %v1151 = vmul.f32 %v1115, %v1149
      %v1152 = vmul.f32 %v1116, %v1149
      %v1153 = vmul.f32 %v1117, %v1149
      %v1154 = vmul.f32 %v1118, %v1149
      %v1155 = vmul.f32 %v1119, %v1149
      %v1156 = vmul.f32 %v1120, %v1149
      %v1157 = vmul.f32 %v1121, %v1149
      %v1158 = vmul.f32 %v1122, %v1149
      %v1159 = vmul.f32 %v1123, %v1149
      %v1160 = vmul.f32 %v1124, %v1149
      %v1161 = vmul.f32 %v1125, %v1149
      %v1162 = vmul.f32 %v1126, %v1149
      %v1163 = vmul.f32 %v1127, %v1149
      %v1164 = vmul.f32 %v1128, %v1149
      %v1165 = vmul.f32 %v1129, %v1149
      %v1166 = vmul.f32 %v1130, %v1149
      %v1167 = vmul.f32 %v1131, %v1149
      %v1168 = vmul.f32 %v1132, %v1149
      %v1169 = vmul.f32 %v1133, %v1149
      %v1170 = vmul.f32 %v1134, %v1149
      %v1171 = vmul.f32 %v1135, %v1149
      %v1172 = vmul.f32 %v1136, %v1149
      %v1173 = vmul.f32 %v1137, %v1149
      %v1174 = vmul.f32 %v1138, %v1149
      %v1175 = vmul.f32 %v1139, %v1149
      %v1176 = vmul.f32 %v1140, %v1149
      %v1177 = vmul.f32 %v1141, %v1149
      %v1178 = vmul.f32 %v1142, %v1149
      %v1179 = vmul.f32 %v1143, %v1149
      %v1180 = vmul.f32 %v1144, %v1149
      %v1181 = vmul.f32 %v1145, %v1149
      %v1182 = vadd.f32 %v1079, %v1150
      %v1183 = vadd.f32 %v1080, %v1151
      %v1184 = vadd.f32 %v1081, %v1152
      %v1185 = vadd.f32 %v1082, %v1153
      %v1186 = vadd.f32 %v1083, %v1154
      %v1187 = vadd.f32 %v1084, %v1155
      %v1188 = vadd.f32 %v1085, %v1156
      %v1189 = vadd.f32 %v1086, %v1157
      %v1190 = vadd.f32 %v1087, %v1158
      %v1191 = vadd.f32 %v1088, %v1159
      %v1192 = vadd.f32 %v1089, %v1160
      %v1193 = vadd.f32 %v1090, %v1161
      %v1194 = vadd.f32 %v1091, %v1162
      %v1195 = vadd.f32 %v1092, %v1163
      %v1196 = vadd.f32 %v1093, %v1164
      %v1197 = vadd.f32 %v1094, %v1165
      %v1198 = vadd.f32 %v1095, %v1166
      %v1199 = vadd.f32 %v1096, %v1167
      %v1200 = vadd.f32 %v1097, %v1168
      %v1201 = vadd.f32 %v1098, %v1169
      %v1202 = vadd.f32 %v1099, %v1170
      %v1203 = vadd.f32 %v1100, %v1171
      %v1204 = vadd.f32 %v1101, %v1172
      %v1205 = vadd.f32 %v1102, %v1173
      %v1206 = vadd.f32 %v1103, %v1174
      %v1207 = vadd.f32 %v1104, %v1175
      %v1208 = vadd.f32 %v1105, %v1176
      %v1209 = vadd.f32 %v1106, %v1177
      %v1210 = vadd.f32 %v1107, %v1178
      %v1211 = vadd.f32 %v1108, %v1179
      %v1212 = vadd.f32 %v1109, %v1180
      %v1213 = vadd.f32 %v1110, %v1181
      %v1214 = vld [vmem:[%s1111 + $0x1] sm:$0x1]
      %v1215 = vld [vmem:[%s1113 + $0x8] sm:$0xff]
      %v1216 = vld [vmem:[%s1113 + $0x10] sm:$0xff]
      %v1217 = vld [vmem:[%s1113 + $0x28] sm:$0xff]
      %v1218 = vld [vmem:[%s1113 + $0x30] sm:$0xff]
      %v1219 = vld [vmem:[%s1113 + $0x48] sm:$0xff]
      %v1220 = vld [vmem:[%s1113 + $0x50] sm:$0xff]
      %v1221 = vld [vmem:[%s1113 + $0x68] sm:$0xff]
      %v1222 = vld [vmem:[%s1113 + $0x70] sm:$0xff]
      %v1223 = vld [vmem:[%s1113 + $0x88] sm:$0xff]
      %v1224 = vld [vmem:[%s1113 + $0x90] sm:$0xff]
      %v1225 = vld [vmem:[%s1113 + $0xa8] sm:$0xff]
      %v1226 = vld [vmem:[%s1113 + $0xb0] sm:$0xff]
      %v1227 = vld [vmem:[%s1113 + $0xc8] sm:$0xff]
      %v1228 = vld [vmem:[%s1113 + $0xd0] sm:$0xff]
      %v1229 = vld [vmem:[%s1113 + $0xe8] sm:$0xff]
      %v1230 = vld [vmem:[%s1113 + $0xf0] sm:$0xff]
      %v1231 = vld [vmem:[%s1113 + $0x108] sm:$0xff]
      %v1232 = vld [vmem:[%s1113 + $0x110] sm:$0xff]
      %v1233 = vld [vmem:[%s1113 + $0x128] sm:$0xff]
      %v1234 = vld [vmem:[%s1113 + $0x130] sm:$0xff]
      %v1235 = vld [vmem:[%s1113 + $0x148] sm:$0xff]
      %v1236 = vld [vmem:[%s1113 + $0x150] sm:$0xff]
      %v1237 = vld [vmem:[%s1113 + $0x168] sm:$0xff]
      %v1238 = vld [vmem:[%s1113 + $0x170] sm:$0xff]
      %v1239 = vld [vmem:[%s1113 + $0x188] sm:$0xff]
      %v1240 = vld [vmem:[%s1113 + $0x190] sm:$0xff]
      %v1241 = vld [vmem:[%s1113 + $0x1a8] sm:$0xff]
      %v1242 = vld [vmem:[%s1113 + $0x1b0] sm:$0xff]
      %v1243 = vld [vmem:[%s1113 + $0x1c8] sm:$0xff]
      %v1244 = vld [vmem:[%s1113 + $0x1d0] sm:$0xff]
      %v1245 = vld [vmem:[%s1113 + $0x1e8] sm:$0xff]
      %v1246 = vld [vmem:[%s1113 + $0x1f0] sm:$0xff]
      %v1247 = vlaneseq
      %v1248 = vshrl.u32 %v1247, 7
      %v1249 = vsub.s32 0, %v1248
      %v1250 = vrot.slane %v1214, %v1249
      %v1251 = vmul.f32 %v1215, %v1250
      %v1252 = vmul.f32 %v1216, %v1250
      %v1253 = vmul.f32 %v1217, %v1250
      %v1254 = vmul.f32 %v1218, %v1250
      %v1255 = vmul.f32 %v1219, %v1250
      %v1256 = vmul.f32 %v1220, %v1250
      %v1257 = vmul.f32 %v1221, %v1250
      %v1258 = vmul.f32 %v1222, %v1250
      %v1259 = vmul.f32 %v1223, %v1250
      %v1260 = vmul.f32 %v1224, %v1250
      %v1261 = vmul.f32 %v1225, %v1250
      %v1262 = vmul.f32 %v1226, %v1250
      %v1263 = vmul.f32 %v1227, %v1250
      %v1264 = vmul.f32 %v1228, %v1250
      %v1265 = vmul.f32 %v1229, %v1250
      %v1266 = vmul.f32 %v1230, %v1250
      %v1267 = vmul.f32 %v1231, %v1250
      %v1268 = vmul.f32 %v1232, %v1250
      %v1269 = vmul.f32 %v1233, %v1250
      %v1270 = vmul.f32 %v1234, %v1250
      %v1271 = vmul.f32 %v1235, %v1250
      %v1272 = vmul.f32 %v1236, %v1250
      %v1273 = vmul.f32 %v1237, %v1250
      %v1274 = vmul.f32 %v1238, %v1250
      %v1275 = vmul.f32 %v1239, %v1250
      %v1276 = vmul.f32 %v1240, %v1250
      %v1277 = vmul.f32 %v1241, %v1250
      %v1278 = vmul.f32 %v1242, %v1250
      %v1279 = vmul.f32 %v1243, %v1250
      %v1280 = vmul.f32 %v1244, %v1250
      %v1281 = vmul.f32 %v1245, %v1250
      %v1282 = vmul.f32 %v1246, %v1250
      %v1283 = vadd.f32 %v1182, %v1251
      %v1284 = vadd.f32 %v1183, %v1252
      %v1285 = vadd.f32 %v1184, %v1253
      %v1286 = vadd.f32 %v1185, %v1254
      %v1287 = vadd.f32 %v1186, %v1255
      %v1288 = vadd.f32 %v1187, %v1256
      %v1289 = vadd.f32 %v1188, %v1257
      %v1290 = vadd.f32 %v1189, %v1258
      %v1291 = vadd.f32 %v1190, %v1259
      %v1292 = vadd.f32 %v1191, %v1260
      %v1293 = vadd.f32 %v1192, %v1261
      %v1294 = vadd.f32 %v1193, %v1262
      %v1295 = vadd.f32 %v1194, %v1263
      %v1296 = vadd.f32 %v1195, %v1264
      %v1297 = vadd.f32 %v1196, %v1265
      %v1298 = vadd.f32 %v1197, %v1266
      %v1299 = vadd.f32 %v1198, %v1267
      %v1300 = vadd.f32 %v1199, %v1268
      %v1301 = vadd.f32 %v1200, %v1269
      %v1302 = vadd.f32 %v1201, %v1270
      %v1303 = vadd.f32 %v1202, %v1271
      %v1304 = vadd.f32 %v1203, %v1272
      %v1305 = vadd.f32 %v1204, %v1273
      %v1306 = vadd.f32 %v1205, %v1274
      %v1307 = vadd.f32 %v1206, %v1275
      %v1308 = vadd.f32 %v1207, %v1276
      %v1309 = vadd.f32 %v1208, %v1277
      %v1310 = vadd.f32 %v1209, %v1278
      %v1311 = vadd.f32 %v1210, %v1279
      %v1312 = vadd.f32 %v1211, %v1280
      %v1313 = vadd.f32 %v1212, %v1281
      %v1314 = vadd.f32 %v1213, %v1282
      %v1315 = vld [vmem:[%s1111 + $0x2] sm:$0x1]
      %v1316 = vld [vmem:[%s1113 + $0x9] sm:$0xff]
      %v1317 = vld [vmem:[%s1113 + $0x11] sm:$0xff]
      %v1318 = vld [vmem:[%s1113 + $0x29] sm:$0xff]
      %v1319 = vld [vmem:[%s1113 + $0x31] sm:$0xff]
      %v1320 = vld [vmem:[%s1113 + $0x49] sm:$0xff]
      %v1321 = vld [vmem:[%s1113 + $0x51] sm:$0xff]
      %v1322 = vld [vmem:[%s1113 + $0x69] sm:$0xff]
      %v1323 = vld [vmem:[%s1113 + $0x71] sm:$0xff]
      %v1324 = vld [vmem:[%s1113 + $0x89] sm:$0xff]
      %v1325 = vld [vmem:[%s1113 + $0x91] sm:$0xff]
      %v1326 = vld [vmem:[%s1113 + $0xa9] sm:$0xff]
      %v1327 = vld [vmem:[%s1113 + $0xb1] sm:$0xff]
      %v1328 = vld [vmem:[%s1113 + $0xc9] sm:$0xff]
      %v1329 = vld [vmem:[%s1113 + $0xd1] sm:$0xff]
      %v1330 = vld [vmem:[%s1113 + $0xe9] sm:$0xff]
      %v1331 = vld [vmem:[%s1113 + $0xf1] sm:$0xff]
      %v1332 = vld [vmem:[%s1113 + $0x109] sm:$0xff]
      %v1333 = vld [vmem:[%s1113 + $0x111] sm:$0xff]
      %v1334 = vld [vmem:[%s1113 + $0x129] sm:$0xff]
      %v1335 = vld [vmem:[%s1113 + $0x131] sm:$0xff]
      %v1336 = vld [vmem:[%s1113 + $0x149] sm:$0xff]
      %v1337 = vld [vmem:[%s1113 + $0x151] sm:$0xff]
      %v1338 = vld [vmem:[%s1113 + $0x169] sm:$0xff]
      %v1339 = vld [vmem:[%s1113 + $0x171] sm:$0xff]
      %v1340 = vld [vmem:[%s1113 + $0x189] sm:$0xff]
      %v1341 = vld [vmem:[%s1113 + $0x191] sm:$0xff]
      %v1342 = vld [vmem:[%s1113 + $0x1a9] sm:$0xff]
      %v1343 = vld [vmem:[%s1113 + $0x1b1] sm:$0xff]
      %v1344 = vld [vmem:[%s1113 + $0x1c9] sm:$0xff]
      %v1345 = vld [vmem:[%s1113 + $0x1d1] sm:$0xff]
      %v1346 = vld [vmem:[%s1113 + $0x1e9] sm:$0xff]
      %v1347 = vld [vmem:[%s1113 + $0x1f1] sm:$0xff]
      %v1348 = vlaneseq
      %v1349 = vshrl.u32 %v1348, 7
      %v1350 = vsub.s32 0, %v1349
      %v1351 = vrot.slane %v1315, %v1350
      %v1352 = vmul.f32 %v1316, %v1351
      %v1353 = vmul.f32 %v1317, %v1351
      %v1354 = vmul.f32 %v1318, %v1351
      %v1355 = vmul.f32 %v1319, %v1351
      %v1356 = vmul.f32 %v1320, %v1351
      %v1357 = vmul.f32 %v1321, %v1351
      %v1358 = vmul.f32 %v1322, %v1351
      %v1359 = vmul.f32 %v1323, %v1351
      %v1360 = vmul.f32 %v1324, %v1351
      %v1361 = vmul.f32 %v1325, %v1351
      %v1362 = vmul.f32 %v1326, %v1351
      %v1363 = vmul.f32 %v1327, %v1351
      %v1364 = vmul.f32 %v1328, %v1351
      %v1365 = vmul.f32 %v1329, %v1351
      %v1366 = vmul.f32 %v1330, %v1351
      %v1367 = vmul.f32 %v1331, %v1351
      %v1368 = vmul.f32 %v1332, %v1351
      %v1369 = vmul.f32 %v1333, %v1351
      %v1370 = vmul.f32 %v1334, %v1351
      %v1371 = vmul.f32 %v1335, %v1351
      %v1372 = vmul.f32 %v1336, %v1351
      %v1373 = vmul.f32 %v1337, %v1351
      %v1374 = vmul.f32 %v1338, %v1351
      %v1375 = vmul.f32 %v1339, %v1351
      %v1376 = vmul.f32 %v1340, %v1351
      %v1377 = vmul.f32 %v1341, %v1351
      %v1378 = vmul.f32 %v1342, %v1351
      %v1379 = vmul.f32 %v1343, %v1351
      %v1380 = vmul.f32 %v1344, %v1351
      %v1381 = vmul.f32 %v1345, %v1351
      %v1382 = vmul.f32 %v1346, %v1351
      %v1383 = vmul.f32 %v1347, %v1351
      %v1384 = vadd.f32 %v1283, %v1352
      %v1385 = vadd.f32 %v1284, %v1353
      %v1386 = vadd.f32 %v1285, %v1354
      %v1387 = vadd.f32 %v1286, %v1355
      %v1388 = vadd.f32 %v1287, %v1356
      %v1389 = vadd.f32 %v1288, %v1357
      %v1390 = vadd.f32 %v1289, %v1358
      %v1391 = vadd.f32 %v1290, %v1359
      %v1392 = vadd.f32 %v1291, %v1360
      %v1393 = vadd.f32 %v1292, %v1361
      %v1394 = vadd.f32 %v1293, %v1362
      %v1395 = vadd.f32 %v1294, %v1363
      %v1396 = vadd.f32 %v1295, %v1364
      %v1397 = vadd.f32 %v1296, %v1365
      %v1398 = vadd.f32 %v1297, %v1366
      %v1399 = vadd.f32 %v1298, %v1367
      %v1400 = vadd.f32 %v1299, %v1368
      %v1401 = vadd.f32 %v1300, %v1369
      %v1402 = vadd.f32 %v1301, %v1370
      %v1403 = vadd.f32 %v1302, %v1371
      %v1404 = vadd.f32 %v1303, %v1372
      %v1405 = vadd.f32 %v1304, %v1373
      %v1406 = vadd.f32 %v1305, %v1374
      %v1407 = vadd.f32 %v1306, %v1375
      %v1408 = vadd.f32 %v1307, %v1376
      %v1409 = vadd.f32 %v1308, %v1377
      %v1410 = vadd.f32 %v1309, %v1378
      %v1411 = vadd.f32 %v1310, %v1379
      %v1412 = vadd.f32 %v1311, %v1380
      %v1413 = vadd.f32 %v1312, %v1381
      %v1414 = vadd.f32 %v1313, %v1382
      %v1415 = vadd.f32 %v1314, %v1383
      %v1416 = vld [vmem:[%s2] sm:$0xff]
      %v1418 = vsel %vm397, %v1384, 0
      %v1421 = vsel %vm397, %v1385, 0
      %v1424 = vsel %vm397, %v1386, 0
      %v1427 = vsel %vm397, %v1387, 0
      %v1430 = vsel %vm397, %v1388, 0
      %v1433 = vsel %vm397, %v1389, 0
      %v1436 = vsel %vm397, %v1390, 0
      %v1439 = vsel %vm397, %v1391, 0
      %v1442 = vsel %vm397, %v1392, 0
      %v1445 = vsel %vm397, %v1393, 0
      %v1448 = vsel %vm397, %v1394, 0
      %v1451 = vsel %vm397, %v1395, 0
      %v1454 = vsel %vm397, %v1396, 0
      %v1457 = vsel %vm397, %v1397, 0
      %v1460 = vsel %vm397, %v1398, 0
      %v1463 = vsel %vm397, %v1399, 0
      %v1466 = vsel %vm397, %v1400, 0
      %v1469 = vsel %vm397, %v1401, 0
      %v1472 = vsel %vm397, %v1402, 0
      %v1475 = vsel %vm397, %v1403, 0
      %v1478 = vsel %vm397, %v1404, 0
      %v1481 = vsel %vm397, %v1405, 0
      %v1484 = vsel %vm397, %v1406, 0
      %v1487 = vsel %vm397, %v1407, 0
      %v1490 = vsel %vm397, %v1408, 0
      %v1493 = vsel %vm397, %v1409, 0
      %v1496 = vsel %vm397, %v1410, 0
      %v1499 = vsel %vm397, %v1411, 0
      %v1502 = vsel %vm397, %v1412, 0
      %v1505 = vsel %vm397, %v1413, 0
      %v1508 = vsel %vm397, %v1414, 0
      %v1511 = vsel %vm397, %v1415, 0
      %1513 = vmatprep.subr.mxu0 0.0
      %1514 = vmatpush1.msra.mxu0 0.0
      %1515 = vmatprep.subr.mxu0 0.0
      %1516 = vmatpush1.msra.mxu0 0.0
      %1517 = vmatprep.subr.mxu0 0.0
      %1518 = vmatpush1.msra.mxu0 0.0
      %1519 = vmatprep.subr.mxu0 0.0
      %1520 = vmatpush1.msra.mxu0 0.0
      %1521 = vmatprep.subr.mxu0 0.0
      %1522 = vmatpush1.msra.mxu0 0.0
      %1523 = vmatprep.subr.mxu0 0.0
      %1524 = vmatpush1.msra.mxu0 0.0
      %1525 = vmatprep.subr.mxu0 0.0
      %1526 = vmatpush1.msra.mxu0 0.0
      %1527 = vmatprep.subr.mxu0 0.0
      %1528 = vmatpush1.msra.mxu0 0.0
      %1529 = vmatprep.subr.mxu0 0.0
      %1530 = vmatpush1.msra.mxu0 0.0
      %1531 = vmatprep.subr.mxu0 0.0
      %1532 = vmatpush1.msra.mxu0 0.0
      %1533 = vmatprep.subr.mxu0 0.0
      %1534 = vmatpush1.msra.mxu0 0.0
      %1535 = vmatprep.subr.mxu0 0.0
      %1536 = vmatpush1.msra.mxu0 0.0
      %1537 = vmatprep.subr.mxu0 0.0
      %1538 = vmatpush1.msra.mxu0 0.0
      %1539 = vmatprep.subr.mxu0 0.0
      %1540 = vmatpush1.msra.mxu0 0.0
      %1541 = vmatprep.subr.mxu0 0.0
      %1542 = vmatpush1.msra.mxu0 0.0
      %1543 = vmatprep.subr.mxu0 0.0
      %1544 = vmatpush1.msra.mxu0 %v1416
      %1545 = vmatprep.subr.mxu0 0.0
      %1546 = vmatpush2.msra.mxu0 0.0
      %1547 = vmatprep.subr.mxu0 0.0
      %1548 = vmatpush2.msra.mxu0 0.0
      %1549 = vmatprep.subr.mxu0 0.0
      %1550 = vmatpush2.msra.mxu0 0.0
      %1551 = vmatprep.subr.mxu0 0.0
      %1552 = vmatpush2.msra.mxu0 0.0
      %1553 = vmatprep.subr.mxu0 0.0
      %1554 = vmatpush2.msra.mxu0 0.0
      %1555 = vmatprep.subr.mxu0 0.0
      %1556 = vmatpush2.msra.mxu0 0.0
      %1557 = vmatprep.subr.mxu0 0.0
      %1558 = vmatpush2.msra.mxu0 0.0
      %1559 = vmatprep.subr.mxu0 0.0
      %1560 = vmatpush2.msra.mxu0 0.0
      %1561 = vmatprep.subr.mxu0 0.0
      %1562 = vmatpush2.msra.mxu0 0.0
      %1563 = vmatprep.subr.mxu0 0.0
      %1564 = vmatpush2.msra.mxu0 0.0
      %1565 = vmatprep.subr.mxu0 0.0
      %1566 = vmatpush2.msra.mxu0 0.0
      %1567 = vmatprep.subr.mxu0 0.0
      %1568 = vmatpush2.msra.mxu0 0.0
      %1569 = vmatprep.subr.mxu0 0.0
      %1570 = vmatpush2.msra.mxu0 0.0
      %1571 = vmatprep.subr.mxu0 0.0
      %1572 = vmatpush2.msra.mxu0 0.0
      %1573 = vmatprep.subr.mxu0 0.0
      %1574 = vmatpush2.msra.mxu0 0.0
      %1575 = vmatprep.subr.mxu0 0.0
      %1576 = vmatpush2.msra.mxu0 0.0
      %1577 = vmatprep.mubr.f32.mxu0 0.0
      %1578 = vmatmul.mubr.f32.gmra.mxu0 %v1418
      %v1579 = vpop.f32.mrf.mxu0
      %v1580 = vadd.f32 0.0, %v1579
      %v1581 = vpop.f32.mrf.mxu0
      %1582 = vmatprep.mubr.f32.mxu0 0.0
      %1583 = vmatmul.mubr.f32.gmra.mxu0 %v1421
      %v1584 = vpop.f32.mrf.mxu0
      %v1585 = vadd.f32 0.0, %v1584
      %v1586 = vpop.f32.mrf.mxu0
      %1587 = vmatprep.mubr.f32.mxu0 0.0
      %1588 = vmatmul.mubr.f32.gmra.mxu0 %v1424
      %v1589 = vpop.f32.mrf.mxu0
      %v1590 = vadd.f32 0.0, %v1589
      %v1591 = vpop.f32.mrf.mxu0
      %1592 = vmatprep.mubr.f32.mxu0 0.0
      %1593 = vmatmul.mubr.f32.gmra.mxu0 %v1427
      %v1594 = vpop.f32.mrf.mxu0
      %v1595 = vadd.f32 0.0, %v1594
      %v1596 = vpop.f32.mrf.mxu0
      %1597 = vmatprep.mubr.f32.mxu0 0.0
      %1598 = vmatmul.mubr.f32.gmra.mxu0 %v1430
      %v1599 = vpop.f32.mrf.mxu0
      %v1600 = vadd.f32 0.0, %v1599
      %v1601 = vpop.f32.mrf.mxu0
      %1602 = vmatprep.mubr.f32.mxu0 0.0
      %1603 = vmatmul.mubr.f32.gmra.mxu0 %v1433
      %v1604 = vpop.f32.mrf.mxu0
      %v1605 = vadd.f32 0.0, %v1604
      %v1606 = vpop.f32.mrf.mxu0
      %1607 = vmatprep.mubr.f32.mxu0 0.0
      %1608 = vmatmul.mubr.f32.gmra.mxu0 %v1436
      %v1609 = vpop.f32.mrf.mxu0
      %v1610 = vadd.f32 0.0, %v1609
      %v1611 = vpop.f32.mrf.mxu0
      %1612 = vmatprep.mubr.f32.mxu0 0.0
      %1613 = vmatmul.mubr.f32.gmra.mxu0 %v1439
      %v1614 = vpop.f32.mrf.mxu0
      %v1615 = vadd.f32 0.0, %v1614
      %v1616 = vpop.f32.mrf.mxu0
      %1617 = vmatprep.mubr.f32.mxu0 0.0
      %1618 = vmatmul.mubr.f32.gmra.mxu0 %v1442
      %v1619 = vpop.f32.mrf.mxu0
      %v1620 = vadd.f32 0.0, %v1619
      %v1621 = vpop.f32.mrf.mxu0
      %1622 = vmatprep.mubr.f32.mxu0 0.0
      %1623 = vmatmul.mubr.f32.gmra.mxu0 %v1445
      %v1624 = vpop.f32.mrf.mxu0
      %v1625 = vadd.f32 0.0, %v1624
      %v1626 = vpop.f32.mrf.mxu0
      %1627 = vmatprep.mubr.f32.mxu0 0.0
      %1628 = vmatmul.mubr.f32.gmra.mxu0 %v1448
      %v1629 = vpop.f32.mrf.mxu0
      %v1630 = vadd.f32 0.0, %v1629
      %v1631 = vpop.f32.mrf.mxu0
      %1632 = vmatprep.mubr.f32.mxu0 0.0
      %1633 = vmatmul.mubr.f32.gmra.mxu0 %v1451
      %v1634 = vpop.f32.mrf.mxu0
      %v1635 = vadd.f32 0.0, %v1634
      %v1636 = vpop.f32.mrf.mxu0
      %1637 = vmatprep.mubr.f32.mxu0 0.0
      %1638 = vmatmul.mubr.f32.gmra.mxu0 %v1454
      %v1639 = vpop.f32.mrf.mxu0
      %v1640 = vadd.f32 0.0, %v1639
      %v1641 = vpop.f32.mrf.mxu0
      %1642 = vmatprep.mubr.f32.mxu0 0.0
      %1643 = vmatmul.mubr.f32.gmra.mxu0 %v1457
      %v1644 = vpop.f32.mrf.mxu0
      %v1645 = vadd.f32 0.0, %v1644
      %v1646 = vpop.f32.mrf.mxu0
      %1647 = vmatprep.mubr.f32.mxu0 0.0
      %1648 = vmatmul.mubr.f32.gmra.mxu0 %v1460
      %v1649 = vpop.f32.mrf.mxu0
      %v1650 = vadd.f32 0.0, %v1649
      %v1651 = vpop.f32.mrf.mxu0
      %1652 = vmatprep.mubr.f32.mxu0 0.0
      %1653 = vmatmul.mubr.f32.gmra.mxu0 %v1463
      %v1654 = vpop.f32.mrf.mxu0
      %v1655 = vadd.f32 0.0, %v1654
      %v1656 = vpop.f32.mrf.mxu0
      %1657 = vmatprep.mubr.f32.mxu0 0.0
      %1658 = vmatmul.mubr.f32.gmra.mxu0 %v1466
      %v1659 = vpop.f32.mrf.mxu0
      %v1660 = vadd.f32 0.0, %v1659
      %v1661 = vpop.f32.mrf.mxu0
      %1662 = vmatprep.mubr.f32.mxu0 0.0
      %1663 = vmatmul.mubr.f32.gmra.mxu0 %v1469
      %v1664 = vpop.f32.mrf.mxu0
      %v1665 = vadd.f32 0.0, %v1664
      %v1666 = vpop.f32.mrf.mxu0
      %1667 = vmatprep.mubr.f32.mxu0 0.0
      %1668 = vmatmul.mubr.f32.gmra.mxu0 %v1472
      %v1669 = vpop.f32.mrf.mxu0
      %v1670 = vadd.f32 0.0, %v1669
      %v1671 = vpop.f32.mrf.mxu0
      %1672 = vmatprep.mubr.f32.mxu0 0.0
      %1673 = vmatmul.mubr.f32.gmra.mxu0 %v1475
      %v1674 = vpop.f32.mrf.mxu0
      %v1675 = vadd.f32 0.0, %v1674
      %v1676 = vpop.f32.mrf.mxu0
      %1677 = vmatprep.mubr.f32.mxu0 0.0
      %1678 = vmatmul.mubr.f32.gmra.mxu0 %v1478
      %v1679 = vpop.f32.mrf.mxu0
      %v1680 = vadd.f32 0.0, %v1679
      %v1681 = vpop.f32.mrf.mxu0
      %1682 = vmatprep.mubr.f32.mxu0 0.0
      %1683 = vmatmul.mubr.f32.gmra.mxu0 %v1481
      %v1684 = vpop.f32.mrf.mxu0
      %v1685 = vadd.f32 0.0, %v1684
      %v1686 = vpop.f32.mrf.mxu0
      %1687 = vmatprep.mubr.f32.mxu0 0.0
      %1688 = vmatmul.mubr.f32.gmra.mxu0 %v1484
      %v1689 = vpop.f32.mrf.mxu0
      %v1690 = vadd.f32 0.0, %v1689
      %v1691 = vpop.f32.mrf.mxu0
      %1692 = vmatprep.mubr.f32.mxu0 0.0
      %1693 = vmatmul.mubr.f32.gmra.mxu0 %v1487
      %v1694 = vpop.f32.mrf.mxu0
      %v1695 = vadd.f32 0.0, %v1694
      %v1696 = vpop.f32.mrf.mxu0
      %1697 = vmatprep.mubr.f32.mxu0 0.0
      %1698 = vmatmul.mubr.f32.gmra.mxu0 %v1490
      %v1699 = vpop.f32.mrf.mxu0
      %v1700 = vadd.f32 0.0, %v1699
      %v1701 = vpop.f32.mrf.mxu0
      %1702 = vmatprep.mubr.f32.mxu0 0.0
      %1703 = vmatmul.mubr.f32.gmra.mxu0 %v1493
      %v1704 = vpop.f32.mrf.mxu0
      %v1705 = vadd.f32 0.0, %v1704
      %v1706 = vpop.f32.mrf.mxu0
      %1707 = vmatprep.mubr.f32.mxu0 0.0
      %1708 = vmatmul.mubr.f32.gmra.mxu0 %v1496
      %v1709 = vpop.f32.mrf.mxu0
      %v1710 = vadd.f32 0.0, %v1709
      %v1711 = vpop.f32.mrf.mxu0
      %1712 = vmatprep.mubr.f32.mxu0 0.0
      %1713 = vmatmul.mubr.f32.gmra.mxu0 %v1499
      %v1714 = vpop.f32.mrf.mxu0
      %v1715 = vadd.f32 0.0, %v1714
      %v1716 = vpop.f32.mrf.mxu0
      %1717 = vmatprep.mubr.f32.mxu0 0.0
      %1718 = vmatmul.mubr.f32.gmra.mxu0 %v1502
      %v1719 = vpop.f32.mrf.mxu0
      %v1720 = vadd.f32 0.0, %v1719
      %v1721 = vpop.f32.mrf.mxu0
      %1722 = vmatprep.mubr.f32.mxu0 0.0
      %1723 = vmatmul.mubr.f32.gmra.mxu0 %v1505
      %v1724 = vpop.f32.mrf.mxu0
      %v1725 = vadd.f32 0.0, %v1724
      %v1726 = vpop.f32.mrf.mxu0
      %1727 = vmatprep.mubr.f32.mxu0 0.0
      %1728 = vmatmul.mubr.f32.gmra.mxu0 %v1508
      %v1729 = vpop.f32.mrf.mxu0
      %v1730 = vadd.f32 0.0, %v1729
      %v1731 = vpop.f32.mrf.mxu0
      %1732 = vmatprep.mubr.f32.mxu0 0.0
      %1733 = vmatmul.mubr.f32.gmra.mxu0 %v1511
      %v1734 = vpop.f32.mrf.mxu0
      %v1735 = vadd.f32 0.0, %v1734
      %v1736 = vpop.f32.mrf.mxu0
      %1737 = vdwg.mxu0
      %v1738 = vld [vmem:[%s3] sm:$0x1]
      %v1740 = vlaneseq
      %v1741 = vshrl.u32 %v1740, 7
      %v1742 = vsub.s32 0, %v1741
      %v1743 = vrot.slane %v1738, %v1742
      %v1745 = vmul.f32 %v1580, %v1743
      %v1746 = vmul.f32 %v1585, %v1743
      %v1747 = vmul.f32 %v1590, %v1743
      %v1748 = vmul.f32 %v1595, %v1743
      %v1749 = vmul.f32 %v1600, %v1743
      %v1750 = vmul.f32 %v1605, %v1743
      %v1751 = vmul.f32 %v1610, %v1743
      %v1752 = vmul.f32 %v1615, %v1743
      %v1753 = vmul.f32 %v1620, %v1743
      %v1754 = vmul.f32 %v1625, %v1743
      %v1755 = vmul.f32 %v1630, %v1743
      %v1756 = vmul.f32 %v1635, %v1743
      %v1757 = vmul.f32 %v1640, %v1743
      %v1758 = vmul.f32 %v1645, %v1743
      %v1759 = vmul.f32 %v1650, %v1743
      %v1760 = vmul.f32 %v1655, %v1743
      %v1761 = vmul.f32 %v1660, %v1743
      %v1762 = vmul.f32 %v1665, %v1743
      %v1763 = vmul.f32 %v1670, %v1743
      %v1764 = vmul.f32 %v1675, %v1743
      %v1765 = vmul.f32 %v1680, %v1743
      %v1766 = vmul.f32 %v1685, %v1743
      %v1767 = vmul.f32 %v1690, %v1743
      %v1768 = vmul.f32 %v1695, %v1743
      %v1769 = vmul.f32 %v1700, %v1743
      %v1770 = vmul.f32 %v1705, %v1743
      %v1771 = vmul.f32 %v1710, %v1743
      %v1772 = vmul.f32 %v1715, %v1743
      %v1773 = vmul.f32 %v1720, %v1743
      %v1774 = vmul.f32 %v1725, %v1743
      %v1775 = vmul.f32 %v1730, %v1743
      %v1776 = vmul.f32 %v1735, %v1743
      %v1777 = vld [vmem:[%s4] sm:$0x1]
      %v1779 = vlaneseq
      %v1780 = vshrl.u32 %v1779, 7
      %v1781 = vsub.s32 0, %v1780
      %v1782 = vrot.slane %v1777, %v1781
      %v1784 = vadd.f32 %v1745, %v1782
      %v1785 = vadd.f32 %v1746, %v1782
      %v1786 = vadd.f32 %v1747, %v1782
      %v1787 = vadd.f32 %v1748, %v1782
      %v1788 = vadd.f32 %v1749, %v1782
      %v1789 = vadd.f32 %v1750, %v1782
      %v1790 = vadd.f32 %v1751, %v1782
      %v1791 = vadd.f32 %v1752, %v1782
      %v1792 = vadd.f32 %v1753, %v1782
      %v1793 = vadd.f32 %v1754, %v1782
      %v1794 = vadd.f32 %v1755, %v1782
      %v1795 = vadd.f32 %v1756, %v1782
      %v1796 = vadd.f32 %v1757, %v1782
      %v1797 = vadd.f32 %v1758, %v1782
      %v1798 = vadd.f32 %v1759, %v1782
      %v1799 = vadd.f32 %v1760, %v1782
      %v1800 = vadd.f32 %v1761, %v1782
      %v1801 = vadd.f32 %v1762, %v1782
      %v1802 = vadd.f32 %v1763, %v1782
      %v1803 = vadd.f32 %v1764, %v1782
      %v1804 = vadd.f32 %v1765, %v1782
      %v1805 = vadd.f32 %v1766, %v1782
      %v1806 = vadd.f32 %v1767, %v1782
      %v1807 = vadd.f32 %v1768, %v1782
      %v1808 = vadd.f32 %v1769, %v1782
      %v1809 = vadd.f32 %v1770, %v1782
      %v1810 = vadd.f32 %v1771, %v1782
      %v1811 = vadd.f32 %v1772, %v1782
      %v1812 = vadd.f32 %v1773, %v1782
      %v1813 = vadd.f32 %v1774, %v1782
      %v1814 = vadd.f32 %v1775, %v1782
      %v1815 = vadd.f32 %v1776, %v1782
      %v1816 = vmax.f32 %v1784, 0.0
      %v1817 = vmax.f32 %v1785, 0.0
      %v1818 = vmax.f32 %v1786, 0.0
      %v1819 = vmax.f32 %v1787, 0.0
      %v1820 = vmax.f32 %v1788, 0.0
      %v1821 = vmax.f32 %v1789, 0.0
      %v1822 = vmax.f32 %v1790, 0.0
      %v1823 = vmax.f32 %v1791, 0.0
      %v1824 = vmax.f32 %v1792, 0.0
      %v1825 = vmax.f32 %v1793, 0.0
      %v1826 = vmax.f32 %v1794, 0.0
      %v1827 = vmax.f32 %v1795, 0.0
      %v1828 = vmax.f32 %v1796, 0.0
      %v1829 = vmax.f32 %v1797, 0.0
      %v1830 = vmax.f32 %v1798, 0.0
      %v1831 = vmax.f32 %v1799, 0.0
      %v1832 = vmax.f32 %v1800, 0.0
      %v1833 = vmax.f32 %v1801, 0.0
      %v1834 = vmax.f32 %v1802, 0.0
      %v1835 = vmax.f32 %v1803, 0.0
      %v1836 = vmax.f32 %v1804, 0.0
      %v1837 = vmax.f32 %v1805, 0.0
      %v1838 = vmax.f32 %v1806, 0.0
      %v1839 = vmax.f32 %v1807, 0.0
      %v1840 = vmax.f32 %v1808, 0.0
      %v1841 = vmax.f32 %v1809, 0.0
      %v1842 = vmax.f32 %v1810, 0.0
      %v1843 = vmax.f32 %v1811, 0.0
      %v1844 = vmax.f32 %v1812, 0.0
      %v1845 = vmax.f32 %v1813, 0.0
      %v1846 = vmax.f32 %v1814, 0.0
      %v1847 = vmax.f32 %v1815, 0.0
      %vm1848 = vcmask 130048
      %1849 = vst.msk [vmem:[#allocation3] sm:$0xff] %vm1848, 0.0
      %1850 = vst.msk [vmem:[#allocation3 + $0x8] sm:$0xff] %vm1848, 0.0
      %1851 = vst.msk [vmem:[#allocation3 + $0x10] sm:$0xff] %vm1848, 0.0
      %vm1852 = vcmask 122880
      %1853 = vst.msk [vmem:[#allocation3 + $0x18] sm:$0x1] %vm1852, 0.0
      %1854 = vst.msk [vmem:[#allocation3 + $0x20] sm:$0xff] %vm1848, 0.0
      %1855 = vst.msk [vmem:[#allocation3 + $0x28] sm:$0xff] %vm1848, 0.0
      %1856 = vst.msk [vmem:[#allocation3 + $0x30] sm:$0xff] %vm1848, 0.0
      %1857 = vst.msk [vmem:[#allocation3 + $0x38] sm:$0x1] %vm1852, 0.0
      %1858 = vst.msk [vmem:[#allocation3 + $0x40] sm:$0xff] %vm1848, 0.0
      %1859 = vst.msk [vmem:[#allocation3 + $0x48] sm:$0xff] %vm1848, 0.0
      %1860 = vst.msk [vmem:[#allocation3 + $0x50] sm:$0xff] %vm1848, 0.0
      %1861 = vst.msk [vmem:[#allocation3 + $0x58] sm:$0x1] %vm1852, 0.0
      %1862 = vst.msk [vmem:[#allocation3 + $0x60] sm:$0xff] %vm1848, 0.0
      %1863 = vst.msk [vmem:[#allocation3 + $0x68] sm:$0xff] %vm1848, 0.0
      %1864 = vst.msk [vmem:[#allocation3 + $0x70] sm:$0xff] %vm1848, 0.0
      %1865 = vst.msk [vmem:[#allocation3 + $0x78] sm:$0x1] %vm1852, 0.0
      %1866 = vst.msk [vmem:[#allocation3 + $0x80] sm:$0xff] %vm1848, 0.0
      %1867 = vst.msk [vmem:[#allocation3 + $0x88] sm:$0xff] %vm1848, 0.0
      %1868 = vst.msk [vmem:[#allocation3 + $0x90] sm:$0xff] %vm1848, 0.0
      %1869 = vst.msk [vmem:[#allocation3 + $0x98] sm:$0x1] %vm1852, 0.0
      %1870 = vst.msk [vmem:[#allocation3 + $0xa0] sm:$0xff] %vm1848, 0.0
      %1871 = vst.msk [vmem:[#allocation3 + $0xa8] sm:$0xff] %vm1848, 0.0
      %1872 = vst.msk [vmem:[#allocation3 + $0xb0] sm:$0xff] %vm1848, 0.0
      %1873 = vst.msk [vmem:[#allocation3 + $0xb8] sm:$0x1] %vm1852, 0.0
      %1874 = vst.msk [vmem:[#allocation3 + $0xc0] sm:$0xff] %vm1848, 0.0
      %1875 = vst.msk [vmem:[#allocation3 + $0xc8] sm:$0xff] %vm1848, 0.0
      %1876 = vst.msk [vmem:[#allocation3 + $0xd0] sm:$0xff] %vm1848, 0.0
      %1877 = vst.msk [vmem:[#allocation3 + $0xd8] sm:$0x1] %vm1852, 0.0
      %1878 = vst.msk [vmem:[#allocation3 + $0xe0] sm:$0xff] %vm1848, 0.0
      %1879 = vst.msk [vmem:[#allocation3 + $0xe8] sm:$0xff] %vm1848, 0.0
      %1880 = vst.msk [vmem:[#allocation3 + $0xf0] sm:$0xff] %vm1848, 0.0
      %1881 = vst.msk [vmem:[#allocation3 + $0xf8] sm:$0x1] %vm1852, 0.0
      %1882 = vst.msk [vmem:[#allocation3 + $0x100] sm:$0xff] %vm1848, 0.0
      %1883 = vst.msk [vmem:[#allocation3 + $0x108] sm:$0xff] %vm1848, 0.0
      %1884 = vst.msk [vmem:[#allocation3 + $0x110] sm:$0xff] %vm1848, 0.0
      %1885 = vst.msk [vmem:[#allocation3 + $0x118] sm:$0x1] %vm1852, 0.0
      %1886 = vst.msk [vmem:[#allocation3 + $0x120] sm:$0xff] %vm1848, 0.0
      %1887 = vst.msk [vmem:[#allocation3 + $0x128] sm:$0xff] %vm1848, 0.0
      %1888 = vst.msk [vmem:[#allocation3 + $0x130] sm:$0xff] %vm1848, 0.0
      %1889 = vst.msk [vmem:[#allocation3 + $0x138] sm:$0x1] %vm1852, 0.0
      %1890 = vst.msk [vmem:[#allocation3 + $0x140] sm:$0xff] %vm1848, 0.0
      %1891 = vst.msk [vmem:[#allocation3 + $0x148] sm:$0xff] %vm1848, 0.0
      %1892 = vst.msk [vmem:[#allocation3 + $0x150] sm:$0xff] %vm1848, 0.0
      %1893 = vst.msk [vmem:[#allocation3 + $0x158] sm:$0x1] %vm1852, 0.0
      %1894 = vst.msk [vmem:[#allocation3 + $0x160] sm:$0xff] %vm1848, 0.0
      %1895 = vst.msk [vmem:[#allocation3 + $0x168] sm:$0xff] %vm1848, 0.0
      %1896 = vst.msk [vmem:[#allocation3 + $0x170] sm:$0xff] %vm1848, 0.0
      %1897 = vst.msk [vmem:[#allocation3 + $0x178] sm:$0x1] %vm1852, 0.0
      %1898 = vst.msk [vmem:[#allocation3 + $0x180] sm:$0xff] %vm1848, 0.0
      %1899 = vst.msk [vmem:[#allocation3 + $0x188] sm:$0xff] %vm1848, 0.0
      %1900 = vst.msk [vmem:[#allocation3 + $0x190] sm:$0xff] %vm1848, 0.0
      %1901 = vst.msk [vmem:[#allocation3 + $0x198] sm:$0x1] %vm1852, 0.0
      %1902 = vst.msk [vmem:[#allocation3 + $0x1a0] sm:$0xff] %vm1848, 0.0
      %1903 = vst.msk [vmem:[#allocation3 + $0x1a8] sm:$0xff] %vm1848, 0.0
      %1904 = vst.msk [vmem:[#allocation3 + $0x1b0] sm:$0xff] %vm1848, 0.0
      %1905 = vst.msk [vmem:[#allocation3 + $0x1b8] sm:$0x1] %vm1852, 0.0
      %1906 = vst.msk [vmem:[#allocation3 + $0x1c0] sm:$0xff] %vm1848, 0.0
      %1907 = vst.msk [vmem:[#allocation3 + $0x1c8] sm:$0xff] %vm1848, 0.0
      %1908 = vst.msk [vmem:[#allocation3 + $0x1d0] sm:$0xff] %vm1848, 0.0
      %1909 = vst.msk [vmem:[#allocation3 + $0x1d8] sm:$0x1] %vm1852, 0.0
      %1910 = vst.msk [vmem:[#allocation3 + $0x1e0] sm:$0xff] %vm1848, 0.0
      %1911 = vst.msk [vmem:[#allocation3 + $0x1e8] sm:$0xff] %vm1848, 0.0
      %1912 = vst.msk [vmem:[#allocation3 + $0x1f0] sm:$0xff] %vm1848, 0.0
      %1913 = vst.msk [vmem:[#allocation3 + $0x1f8] sm:$0x1] %vm1852, 0.0
      %1914 = vst.msk [vmem:[#allocation3 + $0x200] sm:$0xff] %vm1848, 0.0
      %1915 = vst.msk [vmem:[#allocation3 + $0x208] sm:$0xff] %vm1848, 0.0
      %1916 = vst.msk [vmem:[#allocation3 + $0x210] sm:$0xff] %vm1848, 0.0
      %1917 = vst.msk [vmem:[#allocation3 + $0x218] sm:$0x1] %vm1852, 0.0
      %1918 = vst.msk [vmem:[#allocation3 + $0x220] sm:$0xff] %vm1848, 0.0
      %1919 = vst.msk [vmem:[#allocation3 + $0x228] sm:$0xff] %vm1848, 0.0
      %1920 = vst.msk [vmem:[#allocation3 + $0x230] sm:$0xff] %vm1848, 0.0
      %1921 = vst.msk [vmem:[#allocation3 + $0x238] sm:$0x1] %vm1852, 0.0
      %s1922 = scalar_lea.vmem [#allocation3], 32
      %1923 = vst.msk [vmem:[%s1922 + $0x8] sm:$0xff] %vm1848, %v1816
      %1924 = vst.msk [vmem:[%s1922 + $0x10] sm:$0xff] %vm1848, %v1817
      %1925 = vst.msk [vmem:[%s1922 + $0x28] sm:$0xff] %vm1848, %v1818
      %1926 = vst.msk [vmem:[%s1922 + $0x30] sm:$0xff] %vm1848, %v1819
      %1927 = vst.msk [vmem:[%s1922 + $0x48] sm:$0xff] %vm1848, %v1820
      %1928 = vst.msk [vmem:[%s1922 + $0x50] sm:$0xff] %vm1848, %v1821
      %1929 = vst.msk [vmem:[%s1922 + $0x68] sm:$0xff] %vm1848, %v1822
      %1930 = vst.msk [vmem:[%s1922 + $0x70] sm:$0xff] %vm1848, %v1823
      %1931 = vst.msk [vmem:[%s1922 + $0x88] sm:$0xff] %vm1848, %v1824
      %1932 = vst.msk [vmem:[%s1922 + $0x90] sm:$0xff] %vm1848, %v1825
      %1933 = vst.msk [vmem:[%s1922 + $0xa8] sm:$0xff] %vm1848, %v1826
      %1934 = vst.msk [vmem:[%s1922 + $0xb0] sm:$0xff] %vm1848, %v1827
      %1935 = vst.msk [vmem:[%s1922 + $0xc8] sm:$0xff] %vm1848, %v1828
      %1936 = vst.msk [vmem:[%s1922 + $0xd0] sm:$0xff] %vm1848, %v1829
      %1937 = vst.msk [vmem:[%s1922 + $0xe8] sm:$0xff] %vm1848, %v1830
      %1938 = vst.msk [vmem:[%s1922 + $0xf0] sm:$0xff] %vm1848, %v1831
      %1939 = vst.msk [vmem:[%s1922 + $0x108] sm:$0xff] %vm1848, %v1832
      %1940 = vst.msk [vmem:[%s1922 + $0x110] sm:$0xff] %vm1848, %v1833
      %1941 = vst.msk [vmem:[%s1922 + $0x128] sm:$0xff] %vm1848, %v1834
      %1942 = vst.msk [vmem:[%s1922 + $0x130] sm:$0xff] %vm1848, %v1835
      %1943 = vst.msk [vmem:[%s1922 + $0x148] sm:$0xff] %vm1848, %v1836
      %1944 = vst.msk [vmem:[%s1922 + $0x150] sm:$0xff] %vm1848, %v1837
      %1945 = vst.msk [vmem:[%s1922 + $0x168] sm:$0xff] %vm1848, %v1838
      %1946 = vst.msk [vmem:[%s1922 + $0x170] sm:$0xff] %vm1848, %v1839
      %1947 = vst.msk [vmem:[%s1922 + $0x188] sm:$0xff] %vm1848, %v1840
      %1948 = vst.msk [vmem:[%s1922 + $0x190] sm:$0xff] %vm1848, %v1841
      %1949 = vst.msk [vmem:[%s1922 + $0x1a8] sm:$0xff] %vm1848, %v1842
      %1950 = vst.msk [vmem:[%s1922 + $0x1b0] sm:$0xff] %vm1848, %v1843
      %1951 = vst.msk [vmem:[%s1922 + $0x1c8] sm:$0xff] %vm1848, %v1844
      %1952 = vst.msk [vmem:[%s1922 + $0x1d0] sm:$0xff] %vm1848, %v1845
      %1953 = vst.msk [vmem:[%s1922 + $0x1e8] sm:$0xff] %vm1848, %v1846
      %1954 = vst.msk [vmem:[%s1922 + $0x1f0] sm:$0xff] %vm1848, %v1847
      %v1955 = vld [vmem:[%s5] sm:$0x1]
      %v1956 = vld [vmem:[#allocation3 + $0x7] sm:$0xff]
      %v1957 = vld [vmem:[#allocation3 + $0xf] sm:$0xff]
      %v1958 = vld [vmem:[#allocation3 + $0x27] sm:$0xff]
      %v1959 = vld [vmem:[#allocation3 + $0x2f] sm:$0xff]
      %v1960 = vld [vmem:[#allocation3 + $0x47] sm:$0xff]
      %v1961 = vld [vmem:[#allocation3 + $0x4f] sm:$0xff]
      %v1962 = vld [vmem:[#allocation3 + $0x67] sm:$0xff]
      %v1963 = vld [vmem:[#allocation3 + $0x6f] sm:$0xff]
      %v1964 = vld [vmem:[#allocation3 + $0x87] sm:$0xff]
      %v1965 = vld [vmem:[#allocation3 + $0x8f] sm:$0xff]
      %v1966 = vld [vmem:[#allocation3 + $0xa7] sm:$0xff]
      %v1967 = vld [vmem:[#allocation3 + $0xaf] sm:$0xff]
      %v1968 = vld [vmem:[#allocation3 + $0xc7] sm:$0xff]
      %v1969 = vld [vmem:[#allocation3 + $0xcf] sm:$0xff]
      %v1970 = vld [vmem:[#allocation3 + $0xe7] sm:$0xff]
      %v1971 = vld [vmem:[#allocation3 + $0xef] sm:$0xff]
      %v1972 = vld [vmem:[#allocation3 + $0x107] sm:$0xff]
      %v1973 = vld [vmem:[#allocation3 + $0x10f] sm:$0xff]
      %v1974 = vld [vmem:[#allocation3 + $0x127] sm:$0xff]
      %v1975 = vld [vmem:[#allocation3 + $0x12f] sm:$0xff]
      %v1976 = vld [vmem:[#allocation3 + $0x147] sm:$0xff]
      %v1977 = vld [vmem:[#allocation3 + $0x14f] sm:$0xff]
      %v1978 = vld [vmem:[#allocation3 + $0x167] sm:$0xff]
      %v1979 = vld [vmem:[#allocation3 + $0x16f] sm:$0xff]
      %v1980 = vld [vmem:[#allocation3 + $0x187] sm:$0xff]
      %v1981 = vld [vmem:[#allocation3 + $0x18f] sm:$0xff]
      %v1982 = vld [vmem:[#allocation3 + $0x1a7] sm:$0xff]
      %v1983 = vld [vmem:[#allocation3 + $0x1af] sm:$0xff]
      %v1984 = vld [vmem:[#allocation3 + $0x1c7] sm:$0xff]
      %v1985 = vld [vmem:[#allocation3 + $0x1cf] sm:$0xff]
      %v1986 = vld [vmem:[#allocation3 + $0x1e7] sm:$0xff]
      %v1987 = vld [vmem:[#allocation3 + $0x1ef] sm:$0xff]
      %v1988 = vlaneseq
      %v1989 = vshrl.u32 %v1988, 7
      %v1990 = vsub.s32 0, %v1989
      %v1991 = vrot.slane %v1955, %v1990
      %v1992 = vmul.f32 %v1956, %v1991
      %v1993 = vmul.f32 %v1957, %v1991
      %v1994 = vmul.f32 %v1958, %v1991
      %v1995 = vmul.f32 %v1959, %v1991
      %v1996 = vmul.f32 %v1960, %v1991
      %v1997 = vmul.f32 %v1961, %v1991
      %v1998 = vmul.f32 %v1962, %v1991
      %v1999 = vmul.f32 %v1963, %v1991
      %v2000 = vmul.f32 %v1964, %v1991
      %v2001 = vmul.f32 %v1965, %v1991
      %v2002 = vmul.f32 %v1966, %v1991
      %v2003 = vmul.f32 %v1967, %v1991
      %v2004 = vmul.f32 %v1968, %v1991
      %v2005 = vmul.f32 %v1969, %v1991
      %v2006 = vmul.f32 %v1970, %v1991
      %v2007 = vmul.f32 %v1971, %v1991
      %v2008 = vmul.f32 %v1972, %v1991
      %v2009 = vmul.f32 %v1973, %v1991
      %v2010 = vmul.f32 %v1974, %v1991
      %v2011 = vmul.f32 %v1975, %v1991
      %v2012 = vmul.f32 %v1976, %v1991
      %v2013 = vmul.f32 %v1977, %v1991
      %v2014 = vmul.f32 %v1978, %v1991
      %v2015 = vmul.f32 %v1979, %v1991
      %v2016 = vmul.f32 %v1980, %v1991
      %v2017 = vmul.f32 %v1981, %v1991
      %v2018 = vmul.f32 %v1982, %v1991
      %v2019 = vmul.f32 %v1983, %v1991
      %v2020 = vmul.f32 %v1984, %v1991
      %v2021 = vmul.f32 %v1985, %v1991
      %v2022 = vmul.f32 %v1986, %v1991
      %v2023 = vmul.f32 %v1987, %v1991
      %v2024 = vadd.f32 %v1992, 0.0
      %v2025 = vadd.f32 %v1993, 0.0
      %v2026 = vadd.f32 %v1994, 0.0
      %v2027 = vadd.f32 %v1995, 0.0
      %v2028 = vadd.f32 %v1996, 0.0
      %v2029 = vadd.f32 %v1997, 0.0
      %v2030 = vadd.f32 %v1998, 0.0
      %v2031 = vadd.f32 %v1999, 0.0
      %v2032 = vadd.f32 %v2000, 0.0
      %v2033 = vadd.f32 %v2001, 0.0
      %v2034 = vadd.f32 %v2002, 0.0
      %v2035 = vadd.f32 %v2003, 0.0
      %v2036 = vadd.f32 %v2004, 0.0
      %v2037 = vadd.f32 %v2005, 0.0
      %v2038 = vadd.f32 %v2006, 0.0
      %v2039 = vadd.f32 %v2007, 0.0
      %v2040 = vadd.f32 %v2008, 0.0
      %v2041 = vadd.f32 %v2009, 0.0
      %v2042 = vadd.f32 %v2010, 0.0
      %v2043 = vadd.f32 %v2011, 0.0
      %v2044 = vadd.f32 %v2012, 0.0
      %v2045 = vadd.f32 %v2013, 0.0
      %v2046 = vadd.f32 %v2014, 0.0
      %v2047 = vadd.f32 %v2015, 0.0
      %v2048 = vadd.f32 %v2016, 0.0
      %v2049 = vadd.f32 %v2017, 0.0
      %v2050 = vadd.f32 %v2018, 0.0
      %v2051 = vadd.f32 %v2019, 0.0
      %v2052 = vadd.f32 %v2020, 0.0
      %v2053 = vadd.f32 %v2021, 0.0
      %v2054 = vadd.f32 %v2022, 0.0
      %v2055 = vadd.f32 %v2023, 0.0
      %v2056 = vld [vmem:[%s5 + $0x1] sm:$0x1]
      %v2057 = vld [vmem:[#allocation3 + $0x8] sm:$0xff]
      %v2058 = vld [vmem:[#allocation3 + $0x10] sm:$0xff]
      %v2059 = vld [vmem:[#allocation3 + $0x28] sm:$0xff]
      %v2060 = vld [vmem:[#allocation3 + $0x30] sm:$0xff]
      %v2061 = vld [vmem:[#allocation3 + $0x48] sm:$0xff]
      %v2062 = vld [vmem:[#allocation3 + $0x50] sm:$0xff]
      %v2063 = vld [vmem:[#allocation3 + $0x68] sm:$0xff]
      %v2064 = vld [vmem:[#allocation3 + $0x70] sm:$0xff]
      %v2065 = vld [vmem:[#allocation3 + $0x88] sm:$0xff]
      %v2066 = vld [vmem:[#allocation3 + $0x90] sm:$0xff]
      %v2067 = vld [vmem:[#allocation3 + $0xa8] sm:$0xff]
      %v2068 = vld [vmem:[#allocation3 + $0xb0] sm:$0xff]
      %v2069 = vld [vmem:[#allocation3 + $0xc8] sm:$0xff]
      %v2070 = vld [vmem:[#allocation3 + $0xd0] sm:$0xff]
      %v2071 = vld [vmem:[#allocation3 + $0xe8] sm:$0xff]
      %v2072 = vld [vmem:[#allocation3 + $0xf0] sm:$0xff]
      %v2073 = vld [vmem:[#allocation3 + $0x108] sm:$0xff]
      %v2074 = vld [vmem:[#allocation3 + $0x110] sm:$0xff]
      %v2075 = vld [vmem:[#allocation3 + $0x128] sm:$0xff]
      %v2076 = vld [vmem:[#allocation3 + $0x130] sm:$0xff]
      %v2077 = vld [vmem:[#allocation3 + $0x148] sm:$0xff]
      %v2078 = vld [vmem:[#allocation3 + $0x150] sm:$0xff]
      %v2079 = vld [vmem:[#allocation3 + $0x168] sm:$0xff]
      %v2080 = vld [vmem:[#allocation3 + $0x170] sm:$0xff]
      %v2081 = vld [vmem:[#allocation3 + $0x188] sm:$0xff]
      %v2082 = vld [vmem:[#allocation3 + $0x190] sm:$0xff]
      %v2083 = vld [vmem:[#allocation3 + $0x1a8] sm:$0xff]
      %v2084 = vld [vmem:[#allocation3 + $0x1b0] sm:$0xff]
      %v2085 = vld [vmem:[#allocation3 + $0x1c8] sm:$0xff]
      %v2086 = vld [vmem:[#allocation3 + $0x1d0] sm:$0xff]
      %v2087 = vld [vmem:[#allocation3 + $0x1e8] sm:$0xff]
      %v2088 = vld [vmem:[#allocation3 + $0x1f0] sm:$0xff]
      %v2089 = vlaneseq
      %v2090 = vshrl.u32 %v2089, 7
      %v2091 = vsub.s32 0, %v2090
      %v2092 = vrot.slane %v2056, %v2091
      %v2093 = vmul.f32 %v2057, %v2092
      %v2094 = vmul.f32 %v2058, %v2092
      %v2095 = vmul.f32 %v2059, %v2092
      %v2096 = vmul.f32 %v2060, %v2092
      %v2097 = vmul.f32 %v2061, %v2092
      %v2098 = vmul.f32 %v2062, %v2092
      %v2099 = vmul.f32 %v2063, %v2092
      %v2100 = vmul.f32 %v2064, %v2092
      %v2101 = vmul.f32 %v2065, %v2092
      %v2102 = vmul.f32 %v2066, %v2092
      %v2103 = vmul.f32 %v2067, %v2092
      %v2104 = vmul.f32 %v2068, %v2092
      %v2105 = vmul.f32 %v2069, %v2092
      %v2106 = vmul.f32 %v2070, %v2092
      %v2107 = vmul.f32 %v2071, %v2092
      %v2108 = vmul.f32 %v2072, %v2092
      %v2109 = vmul.f32 %v2073, %v2092
      %v2110 = vmul.f32 %v2074, %v2092
      %v2111 = vmul.f32 %v2075, %v2092
      %v2112 = vmul.f32 %v2076, %v2092
      %v2113 = vmul.f32 %v2077, %v2092
      %v2114 = vmul.f32 %v2078, %v2092
      %v2115 = vmul.f32 %v2079, %v2092
      %v2116 = vmul.f32 %v2080, %v2092
      %v2117 = vmul.f32 %v2081, %v2092
      %v2118 = vmul.f32 %v2082, %v2092
      %v2119 = vmul.f32 %v2083, %v2092
      %v2120 = vmul.f32 %v2084, %v2092
      %v2121 = vmul.f32 %v2085, %v2092
      %v2122 = vmul.f32 %v2086, %v2092
      %v2123 = vmul.f32 %v2087, %v2092
      %v2124 = vmul.f32 %v2088, %v2092
      %v2125 = vadd.f32 %v2024, %v2093
      %v2126 = vadd.f32 %v2025, %v2094
      %v2127 = vadd.f32 %v2026, %v2095
      %v2128 = vadd.f32 %v2027, %v2096
      %v2129 = vadd.f32 %v2028, %v2097
      %v2130 = vadd.f32 %v2029, %v2098
      %v2131 = vadd.f32 %v2030, %v2099
      %v2132 = vadd.f32 %v2031, %v2100
      %v2133 = vadd.f32 %v2032, %v2101
      %v2134 = vadd.f32 %v2033, %v2102
      %v2135 = vadd.f32 %v2034, %v2103
      %v2136 = vadd.f32 %v2035, %v2104
      %v2137 = vadd.f32 %v2036, %v2105
      %v2138 = vadd.f32 %v2037, %v2106
      %v2139 = vadd.f32 %v2038, %v2107
      %v2140 = vadd.f32 %v2039, %v2108
      %v2141 = vadd.f32 %v2040, %v2109
      %v2142 = vadd.f32 %v2041, %v2110
      %v2143 = vadd.f32 %v2042, %v2111
      %v2144 = vadd.f32 %v2043, %v2112
      %v2145 = vadd.f32 %v2044, %v2113
      %v2146 = vadd.f32 %v2045, %v2114
      %v2147 = vadd.f32 %v2046, %v2115
      %v2148 = vadd.f32 %v2047, %v2116
      %v2149 = vadd.f32 %v2048, %v2117
      %v2150 = vadd.f32 %v2049, %v2118
      %v2151 = vadd.f32 %v2050, %v2119
      %v2152 = vadd.f32 %v2051, %v2120
      %v2153 = vadd.f32 %v2052, %v2121
      %v2154 = vadd.f32 %v2053, %v2122
      %v2155 = vadd.f32 %v2054, %v2123
      %v2156 = vadd.f32 %v2055, %v2124
      %v2157 = vld [vmem:[%s5 + $0x2] sm:$0x1]
      %v2158 = vld [vmem:[#allocation3 + $0x9] sm:$0xff]
      %v2159 = vld [vmem:[#allocation3 + $0x11] sm:$0xff]
      %v2160 = vld [vmem:[#allocation3 + $0x29] sm:$0xff]
      %v2161 = vld [vmem:[#allocation3 + $0x31] sm:$0xff]
      %v2162 = vld [vmem:[#allocation3 + $0x49] sm:$0xff]
      %v2163 = vld [vmem:[#allocation3 + $0x51] sm:$0xff]
      %v2164 = vld [vmem:[#allocation3 + $0x69] sm:$0xff]
      %v2165 = vld [vmem:[#allocation3 + $0x71] sm:$0xff]
      %v2166 = vld [vmem:[#allocation3 + $0x89] sm:$0xff]
      %v2167 = vld [vmem:[#allocation3 + $0x91] sm:$0xff]
      %v2168 = vld [vmem:[#allocation3 + $0xa9] sm:$0xff]
      %v2169 = vld [vmem:[#allocation3 + $0xb1] sm:$0xff]
      %v2170 = vld [vmem:[#allocation3 + $0xc9] sm:$0xff]
      %v2171 = vld [vmem:[#allocation3 + $0xd1] sm:$0xff]
      %v2172 = vld [vmem:[#allocation3 + $0xe9] sm:$0xff]
      %v2173 = vld [vmem:[#allocation3 + $0xf1] sm:$0xff]
      %v2174 = vld [vmem:[#allocation3 + $0x109] sm:$0xff]
      %v2175 = vld [vmem:[#allocation3 + $0x111] sm:$0xff]
      %v2176 = vld [vmem:[#allocation3 + $0x129] sm:$0xff]
      %v2177 = vld [vmem:[#allocation3 + $0x131] sm:$0xff]
      %v2178 = vld [vmem:[#allocation3 + $0x149] sm:$0xff]
      %v2179 = vld [vmem:[#allocation3 + $0x151] sm:$0xff]
      %v2180 = vld [vmem:[#allocation3 + $0x169] sm:$0xff]
      %v2181 = vld [vmem:[#allocation3 + $0x171] sm:$0xff]
      %v2182 = vld [vmem:[#allocation3 + $0x189] sm:$0xff]
      %v2183 = vld [vmem:[#allocation3 + $0x191] sm:$0xff]
      %v2184 = vld [vmem:[#allocation3 + $0x1a9] sm:$0xff]
      %v2185 = vld [vmem:[#allocation3 + $0x1b1] sm:$0xff]
      %v2186 = vld [vmem:[#allocation3 + $0x1c9] sm:$0xff]
      %v2187 = vld [vmem:[#allocation3 + $0x1d1] sm:$0xff]
      %v2188 = vld [vmem:[#allocation3 + $0x1e9] sm:$0xff]
      %v2189 = vld [vmem:[#allocation3 + $0x1f1] sm:$0xff]
      %v2190 = vlaneseq
      %v2191 = vshrl.u32 %v2190, 7
      %v2192 = vsub.s32 0, %v2191
      %v2193 = vrot.slane %v2157, %v2192
      %v2194 = vmul.f32 %v2158, %v2193
      %v2195 = vmul.f32 %v2159, %v2193
      %v2196 = vmul.f32 %v2160, %v2193
      %v2197 = vmul.f32 %v2161, %v2193
      %v2198 = vmul.f32 %v2162, %v2193
      %v2199 = vmul.f32 %v2163, %v2193
      %v2200 = vmul.f32 %v2164, %v2193
      %v2201 = vmul.f32 %v2165, %v2193
      %v2202 = vmul.f32 %v2166, %v2193
      %v2203 = vmul.f32 %v2167, %v2193
      %v2204 = vmul.f32 %v2168, %v2193
      %v2205 = vmul.f32 %v2169, %v2193
      %v2206 = vmul.f32 %v2170, %v2193
      %v2207 = vmul.f32 %v2171, %v2193
      %v2208 = vmul.f32 %v2172, %v2193
      %v2209 = vmul.f32 %v2173, %v2193
      %v2210 = vmul.f32 %v2174, %v2193
      %v2211 = vmul.f32 %v2175, %v2193
      %v2212 = vmul.f32 %v2176, %v2193
      %v2213 = vmul.f32 %v2177, %v2193
      %v2214 = vmul.f32 %v2178, %v2193
      %v2215 = vmul.f32 %v2179, %v2193
      %v2216 = vmul.f32 %v2180, %v2193
      %v2217 = vmul.f32 %v2181, %v2193
      %v2218 = vmul.f32 %v2182, %v2193
      %v2219 = vmul.f32 %v2183, %v2193
      %v2220 = vmul.f32 %v2184, %v2193
      %v2221 = vmul.f32 %v2185, %v2193
      %v2222 = vmul.f32 %v2186, %v2193
      %v2223 = vmul.f32 %v2187, %v2193
      %v2224 = vmul.f32 %v2188, %v2193
      %v2225 = vmul.f32 %v2189, %v2193
      %v2226 = vadd.f32 %v2125, %v2194
      %v2227 = vadd.f32 %v2126, %v2195
      %v2228 = vadd.f32 %v2127, %v2196
      %v2229 = vadd.f32 %v2128, %v2197
      %v2230 = vadd.f32 %v2129, %v2198
      %v2231 = vadd.f32 %v2130, %v2199
      %v2232 = vadd.f32 %v2131, %v2200
      %v2233 = vadd.f32 %v2132, %v2201
      %v2234 = vadd.f32 %v2133, %v2202
      %v2235 = vadd.f32 %v2134, %v2203
      %v2236 = vadd.f32 %v2135, %v2204
      %v2237 = vadd.f32 %v2136, %v2205
      %v2238 = vadd.f32 %v2137, %v2206
      %v2239 = vadd.f32 %v2138, %v2207
      %v2240 = vadd.f32 %v2139, %v2208
      %v2241 = vadd.f32 %v2140, %v2209
      %v2242 = vadd.f32 %v2141, %v2210
      %v2243 = vadd.f32 %v2142, %v2211
      %v2244 = vadd.f32 %v2143, %v2212
      %v2245 = vadd.f32 %v2144, %v2213
      %v2246 = vadd.f32 %v2145, %v2214
      %v2247 = vadd.f32 %v2146, %v2215
      %v2248 = vadd.f32 %v2147, %v2216
      %v2249 = vadd.f32 %v2148, %v2217
      %v2250 = vadd.f32 %v2149, %v2218
      %v2251 = vadd.f32 %v2150, %v2219
      %v2252 = vadd.f32 %v2151, %v2220
      %v2253 = vadd.f32 %v2152, %v2221
      %v2254 = vadd.f32 %v2153, %v2222
      %v2255 = vadd.f32 %v2154, %v2223
      %v2256 = vadd.f32 %v2155, %v2224
      %v2257 = vadd.f32 %v2156, %v2225
      %s2258 = scalar_lea.vmem %s5, 4
      %v2259 = vld [vmem:[%s2258] sm:$0x1]
      %v2260 = vld [vmem:[%s1922 + $0x7] sm:$0xff]
      %v2261 = vld [vmem:[%s1922 + $0xf] sm:$0xff]
      %v2262 = vld [vmem:[%s1922 + $0x27] sm:$0xff]
      %v2263 = vld [vmem:[%s1922 + $0x2f] sm:$0xff]
      %v2264 = vld [vmem:[%s1922 + $0x47] sm:$0xff]
      %v2265 = vld [vmem:[%s1922 + $0x4f] sm:$0xff]
      %v2266 = vld [vmem:[%s1922 + $0x67] sm:$0xff]
      %v2267 = vld [vmem:[%s1922 + $0x6f] sm:$0xff]
      %v2268 = vld [vmem:[%s1922 + $0x87] sm:$0xff]
      %v2269 = vld [vmem:[%s1922 + $0x8f] sm:$0xff]
      %v2270 = vld [vmem:[%s1922 + $0xa7] sm:$0xff]
      %v2271 = vld [vmem:[%s1922 + $0xaf] sm:$0xff]
      %v2272 = vld [vmem:[%s1922 + $0xc7] sm:$0xff]
      %v2273 = vld [vmem:[%s1922 + $0xcf] sm:$0xff]
      %v2274 = vld [vmem:[%s1922 + $0xe7] sm:$0xff]
      %v2275 = vld [vmem:[%s1922 + $0xef] sm:$0xff]
      %v2276 = vld [vmem:[%s1922 + $0x107] sm:$0xff]
      %v2277 = vld [vmem:[%s1922 + $0x10f] sm:$0xff]
      %v2278 = vld [vmem:[%s1922 + $0x127] sm:$0xff]
      %v2279 = vld [vmem:[%s1922 + $0x12f] sm:$0xff]
      %v2280 = vld [vmem:[%s1922 + $0x147] sm:$0xff]
      %v2281 = vld [vmem:[%s1922 + $0x14f] sm:$0xff]
      %v2282 = vld [vmem:[%s1922 + $0x167] sm:$0xff]
      %v2283 = vld [vmem:[%s1922 + $0x16f] sm:$0xff]
      %v2284 = vld [vmem:[%s1922 + $0x187] sm:$0xff]
      %v2285 = vld [vmem:[%s1922 + $0x18f] sm:$0xff]
      %v2286 = vld [vmem:[%s1922 + $0x1a7] sm:$0xff]
      %v2287 = vld [vmem:[%s1922 + $0x1af] sm:$0xff]
      %v2288 = vld [vmem:[%s1922 + $0x1c7] sm:$0xff]
      %v2289 = vld [vmem:[%s1922 + $0x1cf] sm:$0xff]
      %v2290 = vld [vmem:[%s1922 + $0x1e7] sm:$0xff]
      %v2291 = vld [vmem:[%s1922 + $0x1ef] sm:$0xff]
      %v2292 = vlaneseq
      %v2293 = vshrl.u32 %v2292, 7
      %v2294 = vsub.s32 0, %v2293
      %v2295 = vrot.slane %v2259, %v2294
      %v2296 = vmul.f32 %v2260, %v2295
      %v2297 = vmul.f32 %v2261, %v2295
      %v2298 = vmul.f32 %v2262, %v2295
      %v2299 = vmul.f32 %v2263, %v2295
      %v2300 = vmul.f32 %v2264, %v2295
      %v2301 = vmul.f32 %v2265, %v2295
      %v2302 = vmul.f32 %v2266, %v2295
      %v2303 = vmul.f32 %v2267, %v2295
      %v2304 = vmul.f32 %v2268, %v2295
      %v2305 = vmul.f32 %v2269, %v2295
      %v2306 = vmul.f32 %v2270, %v2295
      %v2307 = vmul.f32 %v2271, %v2295
      %v2308 = vmul.f32 %v2272, %v2295
      %v2309 = vmul.f32 %v2273, %v2295
      %v2310 = vmul.f32 %v2274, %v2295
      %v2311 = vmul.f32 %v2275, %v2295
      %v2312 = vmul.f32 %v2276, %v2295
      %v2313 = vmul.f32 %v2277, %v2295
      %v2314 = vmul.f32 %v2278, %v2295
      %v2315 = vmul.f32 %v2279, %v2295
      %v2316 = vmul.f32 %v2280, %v2295
      %v2317 = vmul.f32 %v2281, %v2295
      %v2318 = vmul.f32 %v2282, %v2295
      %v2319 = vmul.f32 %v2283, %v2295
      %v2320 = vmul.f32 %v2284, %v2295
      %v2321 = vmul.f32 %v2285, %v2295
      %v2322 = vmul.f32 %v2286, %v2295
      %v2323 = vmul.f32 %v2287, %v2295
      %v2324 = vmul.f32 %v2288, %v2295
      %v2325 = vmul.f32 %v2289, %v2295
      %v2326 = vmul.f32 %v2290, %v2295
      %v2327 = vmul.f32 %v2291, %v2295
      %v2328 = vadd.f32 %v2226, %v2296
      %v2329 = vadd.f32 %v2227, %v2297
      %v2330 = vadd.f32 %v2228, %v2298
      %v2331 = vadd.f32 %v2229, %v2299
      %v2332 = vadd.f32 %v2230, %v2300
      %v2333 = vadd.f32 %v2231, %v2301
      %v2334 = vadd.f32 %v2232, %v2302
      %v2335 = vadd.f32 %v2233, %v2303
      %v2336 = vadd.f32 %v2234, %v2304
      %v2337 = vadd.f32 %v2235, %v2305
      %v2338 = vadd.f32 %v2236, %v2306
      %v2339 = vadd.f32 %v2237, %v2307
      %v2340 = vadd.f32 %v2238, %v2308
      %v2341 = vadd.f32 %v2239, %v2309
      %v2342 = vadd.f32 %v2240, %v2310
      %v2343 = vadd.f32 %v2241, %v2311
      %v2344 = vadd.f32 %v2242, %v2312
      %v2345 = vadd.f32 %v2243, %v2313
      %v2346 = vadd.f32 %v2244, %v2314
      %v2347 = vadd.f32 %v2245, %v2315
      %v2348 = vadd.f32 %v2246, %v2316
      %v2349 = vadd.f32 %v2247, %v2317
      %v2350 = vadd.f32 %v2248, %v2318
      %v2351 = vadd.f32 %v2249, %v2319
      %v2352 = vadd.f32 %v2250, %v2320
      %v2353 = vadd.f32 %v2251, %v2321
      %v2354 = vadd.f32 %v2252, %v2322
      %v2355 = vadd.f32 %v2253, %v2323
      %v2356 = vadd.f32 %v2254, %v2324
      %v2357 = vadd.f32 %v2255, %v2325
      %v2358 = vadd.f32 %v2256, %v2326
      %v2359 = vadd.f32 %v2257, %v2327
      %v2360 = vld [vmem:[%s2258 + $0x1] sm:$0x1]
      %v2361 = vld [vmem:[%s1922 + $0x8] sm:$0xff]
      %v2362 = vld [vmem:[%s1922 + $0x10] sm:$0xff]
      %v2363 = vld [vmem:[%s1922 + $0x28] sm:$0xff]
      %v2364 = vld [vmem:[%s1922 + $0x30] sm:$0xff]
      %v2365 = vld [vmem:[%s1922 + $0x48] sm:$0xff]
      %v2366 = vld [vmem:[%s1922 + $0x50] sm:$0xff]
      %v2367 = vld [vmem:[%s1922 + $0x68] sm:$0xff]
      %v2368 = vld [vmem:[%s1922 + $0x70] sm:$0xff]
      %v2369 = vld [vmem:[%s1922 + $0x88] sm:$0xff]
      %v2370 = vld [vmem:[%s1922 + $0x90] sm:$0xff]
      %v2371 = vld [vmem:[%s1922 + $0xa8] sm:$0xff]
      %v2372 = vld [vmem:[%s1922 + $0xb0] sm:$0xff]
      %v2373 = vld [vmem:[%s1922 + $0xc8] sm:$0xff]
      %v2374 = vld [vmem:[%s1922 + $0xd0] sm:$0xff]
      %v2375 = vld [vmem:[%s1922 + $0xe8] sm:$0xff]
      %v2376 = vld [vmem:[%s1922 + $0xf0] sm:$0xff]
      %v2377 = vld [vmem:[%s1922 + $0x108] sm:$0xff]
      %v2378 = vld [vmem:[%s1922 + $0x110] sm:$0xff]
      %v2379 = vld [vmem:[%s1922 + $0x128] sm:$0xff]
      %v2380 = vld [vmem:[%s1922 + $0x130] sm:$0xff]
      %v2381 = vld [vmem:[%s1922 + $0x148] sm:$0xff]
      %v2382 = vld [vmem:[%s1922 + $0x150] sm:$0xff]
      %v2383 = vld [vmem:[%s1922 + $0x168] sm:$0xff]
      %v2384 = vld [vmem:[%s1922 + $0x170] sm:$0xff]
      %v2385 = vld [vmem:[%s1922 + $0x188] sm:$0xff]
      %v2386 = vld [vmem:[%s1922 + $0x190] sm:$0xff]
      %v2387 = vld [vmem:[%s1922 + $0x1a8] sm:$0xff]
      %v2388 = vld [vmem:[%s1922 + $0x1b0] sm:$0xff]
      %v2389 = vld [vmem:[%s1922 + $0x1c8] sm:$0xff]
      %v2390 = vld [vmem:[%s1922 + $0x1d0] sm:$0xff]
      %v2391 = vld [vmem:[%s1922 + $0x1e8] sm:$0xff]
      %v2392 = vld [vmem:[%s1922 + $0x1f0] sm:$0xff]
      %v2393 = vlaneseq
      %v2394 = vshrl.u32 %v2393, 7
      %v2395 = vsub.s32 0, %v2394
      %v2396 = vrot.slane %v2360, %v2395
      %v2397 = vmul.f32 %v2361, %v2396
      %v2398 = vmul.f32 %v2362, %v2396
      %v2399 = vmul.f32 %v2363, %v2396
      %v2400 = vmul.f32 %v2364, %v2396
      %v2401 = vmul.f32 %v2365, %v2396
      %v2402 = vmul.f32 %v2366, %v2396
      %v2403 = vmul.f32 %v2367, %v2396
      %v2404 = vmul.f32 %v2368, %v2396
      %v2405 = vmul.f32 %v2369, %v2396
      %v2406 = vmul.f32 %v2370, %v2396
      %v2407 = vmul.f32 %v2371, %v2396
      %v2408 = vmul.f32 %v2372, %v2396
      %v2409 = vmul.f32 %v2373, %v2396
      %v2410 = vmul.f32 %v2374, %v2396
      %v2411 = vmul.f32 %v2375, %v2396
      %v2412 = vmul.f32 %v2376, %v2396
      %v2413 = vmul.f32 %v2377, %v2396
      %v2414 = vmul.f32 %v2378, %v2396
      %v2415 = vmul.f32 %v2379, %v2396
      %v2416 = vmul.f32 %v2380, %v2396
      %v2417 = vmul.f32 %v2381, %v2396
      %v2418 = vmul.f32 %v2382, %v2396
      %v2419 = vmul.f32 %v2383, %v2396
      %v2420 = vmul.f32 %v2384, %v2396
      %v2421 = vmul.f32 %v2385, %v2396
      %v2422 = vmul.f32 %v2386, %v2396
      %v2423 = vmul.f32 %v2387, %v2396
      %v2424 = vmul.f32 %v2388, %v2396
      %v2425 = vmul.f32 %v2389, %v2396
      %v2426 = vmul.f32 %v2390, %v2396
      %v2427 = vmul.f32 %v2391, %v2396
      %v2428 = vmul.f32 %v2392, %v2396
      %v2429 = vadd.f32 %v2328, %v2397
      %v2430 = vadd.f32 %v2329, %v2398
      %v2431 = vadd.f32 %v2330, %v2399
      %v2432 = vadd.f32 %v2331, %v2400
      %v2433 = vadd.f32 %v2332, %v2401
      %v2434 = vadd.f32 %v2333, %v2402
      %v2435 = vadd.f32 %v2334, %v2403
      %v2436 = vadd.f32 %v2335, %v2404
      %v2437 = vadd.f32 %v2336, %v2405
      %v2438 = vadd.f32 %v2337, %v2406
      %v2439 = vadd.f32 %v2338, %v2407
      %v2440 = vadd.f32 %v2339, %v2408
      %v2441 = vadd.f32 %v2340, %v2409
      %v2442 = vadd.f32 %v2341, %v2410
      %v2443 = vadd.f32 %v2342, %v2411
      %v2444 = vadd.f32 %v2343, %v2412
      %v2445 = vadd.f32 %v2344, %v2413
      %v2446 = vadd.f32 %v2345, %v2414
      %v2447 = vadd.f32 %v2346, %v2415
      %v2448 = vadd.f32 %v2347, %v2416
      %v2449 = vadd.f32 %v2348, %v2417
      %v2450 = vadd.f32 %v2349, %v2418
      %v2451 = vadd.f32 %v2350, %v2419
      %v2452 = vadd.f32 %v2351, %v2420
      %v2453 = vadd.f32 %v2352, %v2421
      %v2454 = vadd.f32 %v2353, %v2422
      %v2455 = vadd.f32 %v2354, %v2423
      %v2456 = vadd.f32 %v2355, %v2424
      %v2457 = vadd.f32 %v2356, %v2425
      %v2458 = vadd.f32 %v2357, %v2426
      %v2459 = vadd.f32 %v2358, %v2427
      %v2460 = vadd.f32 %v2359, %v2428
      %v2461 = vld [vmem:[%s2258 + $0x2] sm:$0x1]
      %v2462 = vld [vmem:[%s1922 + $0x9] sm:$0xff]
      %v2463 = vld [vmem:[%s1922 + $0x11] sm:$0xff]
      %v2464 = vld [vmem:[%s1922 + $0x29] sm:$0xff]
      %v2465 = vld [vmem:[%s1922 + $0x31] sm:$0xff]
      %v2466 = vld [vmem:[%s1922 + $0x49] sm:$0xff]
      %v2467 = vld [vmem:[%s1922 + $0x51] sm:$0xff]
      %v2468 = vld [vmem:[%s1922 + $0x69] sm:$0xff]
      %v2469 = vld [vmem:[%s1922 + $0x71] sm:$0xff]
      %v2470 = vld [vmem:[%s1922 + $0x89] sm:$0xff]
      %v2471 = vld [vmem:[%s1922 + $0x91] sm:$0xff]
      %v2472 = vld [vmem:[%s1922 + $0xa9] sm:$0xff]
      %v2473 = vld [vmem:[%s1922 + $0xb1] sm:$0xff]
      %v2474 = vld [vmem:[%s1922 + $0xc9] sm:$0xff]
      %v2475 = vld [vmem:[%s1922 + $0xd1] sm:$0xff]
      %v2476 = vld [vmem:[%s1922 + $0xe9] sm:$0xff]
      %v2477 = vld [vmem:[%s1922 + $0xf1] sm:$0xff]
      %v2478 = vld [vmem:[%s1922 + $0x109] sm:$0xff]
      %v2479 = vld [vmem:[%s1922 + $0x111] sm:$0xff]
      %v2480 = vld [vmem:[%s1922 + $0x129] sm:$0xff]
      %v2481 = vld [vmem:[%s1922 + $0x131] sm:$0xff]
      %v2482 = vld [vmem:[%s1922 + $0x149] sm:$0xff]
      %v2483 = vld [vmem:[%s1922 + $0x151] sm:$0xff]
      %v2484 = vld [vmem:[%s1922 + $0x169] sm:$0xff]
      %v2485 = vld [vmem:[%s1922 + $0x171] sm:$0xff]
      %v2486 = vld [vmem:[%s1922 + $0x189] sm:$0xff]
      %v2487 = vld [vmem:[%s1922 + $0x191] sm:$0xff]
      %v2488 = vld [vmem:[%s1922 + $0x1a9] sm:$0xff]
      %v2489 = vld [vmem:[%s1922 + $0x1b1] sm:$0xff]
      %v2490 = vld [vmem:[%s1922 + $0x1c9] sm:$0xff]
      %v2491 = vld [vmem:[%s1922 + $0x1d1] sm:$0xff]
      %v2492 = vld [vmem:[%s1922 + $0x1e9] sm:$0xff]
      %v2493 = vld [vmem:[%s1922 + $0x1f1] sm:$0xff]
      %v2494 = vlaneseq
      %v2495 = vshrl.u32 %v2494, 7
      %v2496 = vsub.s32 0, %v2495
      %v2497 = vrot.slane %v2461, %v2496
      %v2498 = vmul.f32 %v2462, %v2497
      %v2499 = vmul.f32 %v2463, %v2497
      %v2500 = vmul.f32 %v2464, %v2497
      %v2501 = vmul.f32 %v2465, %v2497
      %v2502 = vmul.f32 %v2466, %v2497
      %v2503 = vmul.f32 %v2467, %v2497
      %v2504 = vmul.f32 %v2468, %v2497
      %v2505 = vmul.f32 %v2469, %v2497
      %v2506 = vmul.f32 %v2470, %v2497
      %v2507 = vmul.f32 %v2471, %v2497
      %v2508 = vmul.f32 %v2472, %v2497
      %v2509 = vmul.f32 %v2473, %v2497
      %v2510 = vmul.f32 %v2474, %v2497
      %v2511 = vmul.f32 %v2475, %v2497
      %v2512 = vmul.f32 %v2476, %v2497
      %v2513 = vmul.f32 %v2477, %v2497
      %v2514 = vmul.f32 %v2478, %v2497
      %v2515 = vmul.f32 %v2479, %v2497
      %v2516 = vmul.f32 %v2480, %v2497
      %v2517 = vmul.f32 %v2481, %v2497
      %v2518 = vmul.f32 %v2482, %v2497
      %v2519 = vmul.f32 %v2483, %v2497
      %v2520 = vmul.f32 %v2484, %v2497
      %v2521 = vmul.f32 %v2485, %v2497
      %v2522 = vmul.f32 %v2486, %v2497
      %v2523 = vmul.f32 %v2487, %v2497
      %v2524 = vmul.f32 %v2488, %v2497
      %v2525 = vmul.f32 %v2489, %v2497
      %v2526 = vmul.f32 %v2490, %v2497
      %v2527 = vmul.f32 %v2491, %v2497
      %v2528 = vmul.f32 %v2492, %v2497
      %v2529 = vmul.f32 %v2493, %v2497
      %v2530 = vadd.f32 %v2429, %v2498
      %v2531 = vadd.f32 %v2430, %v2499
      %v2532 = vadd.f32 %v2431, %v2500
      %v2533 = vadd.f32 %v2432, %v2501
      %v2534 = vadd.f32 %v2433, %v2502
      %v2535 = vadd.f32 %v2434, %v2503
      %v2536 = vadd.f32 %v2435, %v2504
      %v2537 = vadd.f32 %v2436, %v2505
      %v2538 = vadd.f32 %v2437, %v2506
      %v2539 = vadd.f32 %v2438, %v2507
      %v2540 = vadd.f32 %v2439, %v2508
      %v2541 = vadd.f32 %v2440, %v2509
      %v2542 = vadd.f32 %v2441, %v2510
      %v2543 = vadd.f32 %v2442, %v2511
      %v2544 = vadd.f32 %v2443, %v2512
      %v2545 = vadd.f32 %v2444, %v2513
      %v2546 = vadd.f32 %v2445, %v2514
      %v2547 = vadd.f32 %v2446, %v2515
      %v2548 = vadd.f32 %v2447, %v2516
      %v2549 = vadd.f32 %v2448, %v2517
      %v2550 = vadd.f32 %v2449, %v2518
      %v2551 = vadd.f32 %v2450, %v2519
      %v2552 = vadd.f32 %v2451, %v2520
      %v2553 = vadd.f32 %v2452, %v2521
      %v2554 = vadd.f32 %v2453, %v2522
      %v2555 = vadd.f32 %v2454, %v2523
      %v2556 = vadd.f32 %v2455, %v2524
      %v2557 = vadd.f32 %v2456, %v2525
      %v2558 = vadd.f32 %v2457, %v2526
      %v2559 = vadd.f32 %v2458, %v2527
      %v2560 = vadd.f32 %v2459, %v2528
      %v2561 = vadd.f32 %v2460, %v2529
      %s2562 = scalar_lea.vmem %s5, 8
      %v2563 = vld [vmem:[%s2562] sm:$0x1]
      %s2564 = scalar_lea.vmem [#allocation3], 64
      %v2565 = vld [vmem:[%s2564 + $0x7] sm:$0xff]
      %v2566 = vld [vmem:[%s2564 + $0xf] sm:$0xff]
      %v2567 = vld [vmem:[%s2564 + $0x27] sm:$0xff]
      %v2568 = vld [vmem:[%s2564 + $0x2f] sm:$0xff]
      %v2569 = vld [vmem:[%s2564 + $0x47] sm:$0xff]
      %v2570 = vld [vmem:[%s2564 + $0x4f] sm:$0xff]
      %v2571 = vld [vmem:[%s2564 + $0x67] sm:$0xff]
      %v2572 = vld [vmem:[%s2564 + $0x6f] sm:$0xff]
      %v2573 = vld [vmem:[%s2564 + $0x87] sm:$0xff]
      %v2574 = vld [vmem:[%s2564 + $0x8f] sm:$0xff]
      %v2575 = vld [vmem:[%s2564 + $0xa7] sm:$0xff]
      %v2576 = vld [vmem:[%s2564 + $0xaf] sm:$0xff]
      %v2577 = vld [vmem:[%s2564 + $0xc7] sm:$0xff]
      %v2578 = vld [vmem:[%s2564 + $0xcf] sm:$0xff]
      %v2579 = vld [vmem:[%s2564 + $0xe7] sm:$0xff]
      %v2580 = vld [vmem:[%s2564 + $0xef] sm:$0xff]
      %v2581 = vld [vmem:[%s2564 + $0x107] sm:$0xff]
      %v2582 = vld [vmem:[%s2564 + $0x10f] sm:$0xff]
      %v2583 = vld [vmem:[%s2564 + $0x127] sm:$0xff]
      %v2584 = vld [vmem:[%s2564 + $0x12f] sm:$0xff]
      %v2585 = vld [vmem:[%s2564 + $0x147] sm:$0xff]
      %v2586 = vld [vmem:[%s2564 + $0x14f] sm:$0xff]
      %v2587 = vld [vmem:[%s2564 + $0x167] sm:$0xff]
      %v2588 = vld [vmem:[%s2564 + $0x16f] sm:$0xff]
      %v2589 = vld [vmem:[%s2564 + $0x187] sm:$0xff]
      %v2590 = vld [vmem:[%s2564 + $0x18f] sm:$0xff]
      %v2591 = vld [vmem:[%s2564 + $0x1a7] sm:$0xff]
      %v2592 = vld [vmem:[%s2564 + $0x1af] sm:$0xff]
      %v2593 = vld [vmem:[%s2564 + $0x1c7] sm:$0xff]
      %v2594 = vld [vmem:[%s2564 + $0x1cf] sm:$0xff]
      %v2595 = vld [vmem:[%s2564 + $0x1e7] sm:$0xff]
      %v2596 = vld [vmem:[%s2564 + $0x1ef] sm:$0xff]
      %v2597 = vlaneseq
      %v2598 = vshrl.u32 %v2597, 7
      %v2599 = vsub.s32 0, %v2598
      %v2600 = vrot.slane %v2563, %v2599
      %v2601 = vmul.f32 %v2565, %v2600
      %v2602 = vmul.f32 %v2566, %v2600
      %v2603 = vmul.f32 %v2567, %v2600
      %v2604 = vmul.f32 %v2568, %v2600
      %v2605 = vmul.f32 %v2569, %v2600
      %v2606 = vmul.f32 %v2570, %v2600
      %v2607 = vmul.f32 %v2571, %v2600
      %v2608 = vmul.f32 %v2572, %v2600
      %v2609 = vmul.f32 %v2573, %v2600
      %v2610 = vmul.f32 %v2574, %v2600
      %v2611 = vmul.f32 %v2575, %v2600
      %v2612 = vmul.f32 %v2576, %v2600
      %v2613 = vmul.f32 %v2577, %v2600
      %v2614 = vmul.f32 %v2578, %v2600
      %v2615 = vmul.f32 %v2579, %v2600
      %v2616 = vmul.f32 %v2580, %v2600
      %v2617 = vmul.f32 %v2581, %v2600
      %v2618 = vmul.f32 %v2582, %v2600
      %v2619 = vmul.f32 %v2583, %v2600
      %v2620 = vmul.f32 %v2584, %v2600
      %v2621 = vmul.f32 %v2585, %v2600
      %v2622 = vmul.f32 %v2586, %v2600
      %v2623 = vmul.f32 %v2587, %v2600
      %v2624 = vmul.f32 %v2588, %v2600
      %v2625 = vmul.f32 %v2589, %v2600
      %v2626 = vmul.f32 %v2590, %v2600
      %v2627 = vmul.f32 %v2591, %v2600
      %v2628 = vmul.f32 %v2592, %v2600
      %v2629 = vmul.f32 %v2593, %v2600
      %v2630 = vmul.f32 %v2594, %v2600
      %v2631 = vmul.f32 %v2595, %v2600
      %v2632 = vmul.f32 %v2596, %v2600
      %v2633 = vadd.f32 %v2530, %v2601
      %v2634 = vadd.f32 %v2531, %v2602
      %v2635 = vadd.f32 %v2532, %v2603
      %v2636 = vadd.f32 %v2533, %v2604
      %v2637 = vadd.f32 %v2534, %v2605
      %v2638 = vadd.f32 %v2535, %v2606
      %v2639 = vadd.f32 %v2536, %v2607
      %v2640 = vadd.f32 %v2537, %v2608
      %v2641 = vadd.f32 %v2538, %v2609
      %v2642 = vadd.f32 %v2539, %v2610
      %v2643 = vadd.f32 %v2540, %v2611
      %v2644 = vadd.f32 %v2541, %v2612
      %v2645 = vadd.f32 %v2542, %v2613
      %v2646 = vadd.f32 %v2543, %v2614
      %v2647 = vadd.f32 %v2544, %v2615
      %v2648 = vadd.f32 %v2545, %v2616
      %v2649 = vadd.f32 %v2546, %v2617
      %v2650 = vadd.f32 %v2547, %v2618
      %v2651 = vadd.f32 %v2548, %v2619
      %v2652 = vadd.f32 %v2549, %v2620
      %v2653 = vadd.f32 %v2550, %v2621
      %v2654 = vadd.f32 %v2551, %v2622
      %v2655 = vadd.f32 %v2552, %v2623
      %v2656 = vadd.f32 %v2553, %v2624
      %v2657 = vadd.f32 %v2554, %v2625
      %v2658 = vadd.f32 %v2555, %v2626
      %v2659 = vadd.f32 %v2556, %v2627
      %v2660 = vadd.f32 %v2557, %v2628
      %v2661 = vadd.f32 %v2558, %v2629
      %v2662 = vadd.f32 %v2559, %v2630
      %v2663 = vadd.f32 %v2560, %v2631
      %v2664 = vadd.f32 %v2561, %v2632
      %v2665 = vld [vmem:[%s2562 + $0x1] sm:$0x1]
      %v2666 = vld [vmem:[%s2564 + $0x8] sm:$0xff]
      %v2667 = vld [vmem:[%s2564 + $0x10] sm:$0xff]
      %v2668 = vld [vmem:[%s2564 + $0x28] sm:$0xff]
      %v2669 = vld [vmem:[%s2564 + $0x30] sm:$0xff]
      %v2670 = vld [vmem:[%s2564 + $0x48] sm:$0xff]
      %v2671 = vld [vmem:[%s2564 + $0x50] sm:$0xff]
      %v2672 = vld [vmem:[%s2564 + $0x68] sm:$0xff]
      %v2673 = vld [vmem:[%s2564 + $0x70] sm:$0xff]
      %v2674 = vld [vmem:[%s2564 + $0x88] sm:$0xff]
      %v2675 = vld [vmem:[%s2564 + $0x90] sm:$0xff]
      %v2676 = vld [vmem:[%s2564 + $0xa8] sm:$0xff]
      %v2677 = vld [vmem:[%s2564 + $0xb0] sm:$0xff]
      %v2678 = vld [vmem:[%s2564 + $0xc8] sm:$0xff]
      %v2679 = vld [vmem:[%s2564 + $0xd0] sm:$0xff]
      %v2680 = vld [vmem:[%s2564 + $0xe8] sm:$0xff]
      %v2681 = vld [vmem:[%s2564 + $0xf0] sm:$0xff]
      %v2682 = vld [vmem:[%s2564 + $0x108] sm:$0xff]
      %v2683 = vld [vmem:[%s2564 + $0x110] sm:$0xff]
      %v2684 = vld [vmem:[%s2564 + $0x128] sm:$0xff]
      %v2685 = vld [vmem:[%s2564 + $0x130] sm:$0xff]
      %v2686 = vld [vmem:[%s2564 + $0x148] sm:$0xff]
      %v2687 = vld [vmem:[%s2564 + $0x150] sm:$0xff]
      %v2688 = vld [vmem:[%s2564 + $0x168] sm:$0xff]
      %v2689 = vld [vmem:[%s2564 + $0x170] sm:$0xff]
      %v2690 = vld [vmem:[%s2564 + $0x188] sm:$0xff]
      %v2691 = vld [vmem:[%s2564 + $0x190] sm:$0xff]
      %v2692 = vld [vmem:[%s2564 + $0x1a8] sm:$0xff]
      %v2693 = vld [vmem:[%s2564 + $0x1b0] sm:$0xff]
      %v2694 = vld [vmem:[%s2564 + $0x1c8] sm:$0xff]
      %v2695 = vld [vmem:[%s2564 + $0x1d0] sm:$0xff]
      %v2696 = vld [vmem:[%s2564 + $0x1e8] sm:$0xff]
      %v2697 = vld [vmem:[%s2564 + $0x1f0] sm:$0xff]
      %v2698 = vlaneseq
      %v2699 = vshrl.u32 %v2698, 7
      %v2700 = vsub.s32 0, %v2699
      %v2701 = vrot.slane %v2665, %v2700
      %v2702 = vmul.f32 %v2666, %v2701
      %v2703 = vmul.f32 %v2667, %v2701
      %v2704 = vmul.f32 %v2668, %v2701
      %v2705 = vmul.f32 %v2669, %v2701
      %v2706 = vmul.f32 %v2670, %v2701
      %v2707 = vmul.f32 %v2671, %v2701
      %v2708 = vmul.f32 %v2672, %v2701
      %v2709 = vmul.f32 %v2673, %v2701
      %v2710 = vmul.f32 %v2674, %v2701
      %v2711 = vmul.f32 %v2675, %v2701
      %v2712 = vmul.f32 %v2676, %v2701
      %v2713 = vmul.f32 %v2677, %v2701
      %v2714 = vmul.f32 %v2678, %v2701
      %v2715 = vmul.f32 %v2679, %v2701
      %v2716 = vmul.f32 %v2680, %v2701
      %v2717 = vmul.f32 %v2681, %v2701
      %v2718 = vmul.f32 %v2682, %v2701
      %v2719 = vmul.f32 %v2683, %v2701
      %v2720 = vmul.f32 %v2684, %v2701
      %v2721 = vmul.f32 %v2685, %v2701
      %v2722 = vmul.f32 %v2686, %v2701
      %v2723 = vmul.f32 %v2687, %v2701
      %v2724 = vmul.f32 %v2688, %v2701
      %v2725 = vmul.f32 %v2689, %v2701
      %v2726 = vmul.f32 %v2690, %v2701
      %v2727 = vmul.f32 %v2691, %v2701
      %v2728 = vmul.f32 %v2692, %v2701
      %v2729 = vmul.f32 %v2693, %v2701
      %v2730 = vmul.f32 %v2694, %v2701
      %v2731 = vmul.f32 %v2695, %v2701
      %v2732 = vmul.f32 %v2696, %v2701
      %v2733 = vmul.f32 %v2697, %v2701
      %v2734 = vadd.f32 %v2633, %v2702
      %v2735 = vadd.f32 %v2634, %v2703
      %v2736 = vadd.f32 %v2635, %v2704
      %v2737 = vadd.f32 %v2636, %v2705
      %v2738 = vadd.f32 %v2637, %v2706
      %v2739 = vadd.f32 %v2638, %v2707
      %v2740 = vadd.f32 %v2639, %v2708
      %v2741 = vadd.f32 %v2640, %v2709
      %v2742 = vadd.f32 %v2641, %v2710
      %v2743 = vadd.f32 %v2642, %v2711
      %v2744 = vadd.f32 %v2643, %v2712
      %v2745 = vadd.f32 %v2644, %v2713
      %v2746 = vadd.f32 %v2645, %v2714
      %v2747 = vadd.f32 %v2646, %v2715
      %v2748 = vadd.f32 %v2647, %v2716
      %v2749 = vadd.f32 %v2648, %v2717
      %v2750 = vadd.f32 %v2649, %v2718
      %v2751 = vadd.f32 %v2650, %v2719
      %v2752 = vadd.f32 %v2651, %v2720
      %v2753 = vadd.f32 %v2652, %v2721
      %v2754 = vadd.f32 %v2653, %v2722
      %v2755 = vadd.f32 %v2654, %v2723
      %v2756 = vadd.f32 %v2655, %v2724
      %v2757 = vadd.f32 %v2656, %v2725
      %v2758 = vadd.f32 %v2657, %v2726
      %v2759 = vadd.f32 %v2658, %v2727
      %v2760 = vadd.f32 %v2659, %v2728
      %v2761 = vadd.f32 %v2660, %v2729
      %v2762 = vadd.f32 %v2661, %v2730
      %v2763 = vadd.f32 %v2662, %v2731
      %v2764 = vadd.f32 %v2663, %v2732
      %v2765 = vadd.f32 %v2664, %v2733
      %v2766 = vld [vmem:[%s2562 + $0x2] sm:$0x1]
      %v2767 = vld [vmem:[%s2564 + $0x9] sm:$0xff]
      %v2768 = vld [vmem:[%s2564 + $0x11] sm:$0xff]
      %v2769 = vld [vmem:[%s2564 + $0x29] sm:$0xff]
      %v2770 = vld [vmem:[%s2564 + $0x31] sm:$0xff]
      %v2771 = vld [vmem:[%s2564 + $0x49] sm:$0xff]
      %v2772 = vld [vmem:[%s2564 + $0x51] sm:$0xff]
      %v2773 = vld [vmem:[%s2564 + $0x69] sm:$0xff]
      %v2774 = vld [vmem:[%s2564 + $0x71] sm:$0xff]
      %v2775 = vld [vmem:[%s2564 + $0x89] sm:$0xff]
      %v2776 = vld [vmem:[%s2564 + $0x91] sm:$0xff]
      %v2777 = vld [vmem:[%s2564 + $0xa9] sm:$0xff]
      %v2778 = vld [vmem:[%s2564 + $0xb1] sm:$0xff]
      %v2779 = vld [vmem:[%s2564 + $0xc9] sm:$0xff]
      %v2780 = vld [vmem:[%s2564 + $0xd1] sm:$0xff]
      %v2781 = vld [vmem:[%s2564 + $0xe9] sm:$0xff]
      %v2782 = vld [vmem:[%s2564 + $0xf1] sm:$0xff]
      %v2783 = vld [vmem:[%s2564 + $0x109] sm:$0xff]
      %v2784 = vld [vmem:[%s2564 + $0x111] sm:$0xff]
      %v2785 = vld [vmem:[%s2564 + $0x129] sm:$0xff]
      %v2786 = vld [vmem:[%s2564 + $0x131] sm:$0xff]
      %v2787 = vld [vmem:[%s2564 + $0x149] sm:$0xff]
      %v2788 = vld [vmem:[%s2564 + $0x151] sm:$0xff]
      %v2789 = vld [vmem:[%s2564 + $0x169] sm:$0xff]
      %v2790 = vld [vmem:[%s2564 + $0x171] sm:$0xff]
      %v2791 = vld [vmem:[%s2564 + $0x189] sm:$0xff]
      %v2792 = vld [vmem:[%s2564 + $0x191] sm:$0xff]
      %v2793 = vld [vmem:[%s2564 + $0x1a9] sm:$0xff]
      %v2794 = vld [vmem:[%s2564 + $0x1b1] sm:$0xff]
      %v2795 = vld [vmem:[%s2564 + $0x1c9] sm:$0xff]
      %v2796 = vld [vmem:[%s2564 + $0x1d1] sm:$0xff]
      %v2797 = vld [vmem:[%s2564 + $0x1e9] sm:$0xff]
      %v2798 = vld [vmem:[%s2564 + $0x1f1] sm:$0xff]
      %v2799 = vlaneseq
      %v2800 = vshrl.u32 %v2799, 7
      %v2801 = vsub.s32 0, %v2800
      %v2802 = vrot.slane %v2766, %v2801
      %v2803 = vmul.f32 %v2767, %v2802
      %v2804 = vmul.f32 %v2768, %v2802
      %v2805 = vmul.f32 %v2769, %v2802
      %v2806 = vmul.f32 %v2770, %v2802
      %v2807 = vmul.f32 %v2771, %v2802
      %v2808 = vmul.f32 %v2772, %v2802
      %v2809 = vmul.f32 %v2773, %v2802
      %v2810 = vmul.f32 %v2774, %v2802
      %v2811 = vmul.f32 %v2775, %v2802
      %v2812 = vmul.f32 %v2776, %v2802
      %v2813 = vmul.f32 %v2777, %v2802
      %v2814 = vmul.f32 %v2778, %v2802
      %v2815 = vmul.f32 %v2779, %v2802
      %v2816 = vmul.f32 %v2780, %v2802
      %v2817 = vmul.f32 %v2781, %v2802
      %v2818 = vmul.f32 %v2782, %v2802
      %v2819 = vmul.f32 %v2783, %v2802
      %v2820 = vmul.f32 %v2784, %v2802
      %v2821 = vmul.f32 %v2785, %v2802
      %v2822 = vmul.f32 %v2786, %v2802
      %v2823 = vmul.f32 %v2787, %v2802
      %v2824 = vmul.f32 %v2788, %v2802
      %v2825 = vmul.f32 %v2789, %v2802
      %v2826 = vmul.f32 %v2790, %v2802
      %v2827 = vmul.f32 %v2791, %v2802
      %v2828 = vmul.f32 %v2792, %v2802
      %v2829 = vmul.f32 %v2793, %v2802
      %v2830 = vmul.f32 %v2794, %v2802
      %v2831 = vmul.f32 %v2795, %v2802
      %v2832 = vmul.f32 %v2796, %v2802
      %v2833 = vmul.f32 %v2797, %v2802
      %v2834 = vmul.f32 %v2798, %v2802
      %v2835 = vadd.f32 %v2734, %v2803
      %v2836 = vadd.f32 %v2735, %v2804
      %v2837 = vadd.f32 %v2736, %v2805
      %v2838 = vadd.f32 %v2737, %v2806
      %v2839 = vadd.f32 %v2738, %v2807
      %v2840 = vadd.f32 %v2739, %v2808
      %v2841 = vadd.f32 %v2740, %v2809
      %v2842 = vadd.f32 %v2741, %v2810
      %v2843 = vadd.f32 %v2742, %v2811
      %v2844 = vadd.f32 %v2743, %v2812
      %v2845 = vadd.f32 %v2744, %v2813
      %v2846 = vadd.f32 %v2745, %v2814
      %v2847 = vadd.f32 %v2746, %v2815
      %v2848 = vadd.f32 %v2747, %v2816
      %v2849 = vadd.f32 %v2748, %v2817
      %v2850 = vadd.f32 %v2749, %v2818
      %v2851 = vadd.f32 %v2750, %v2819
      %v2852 = vadd.f32 %v2751, %v2820
      %v2853 = vadd.f32 %v2752, %v2821
      %v2854 = vadd.f32 %v2753, %v2822
      %v2855 = vadd.f32 %v2754, %v2823
      %v2856 = vadd.f32 %v2755, %v2824
      %v2857 = vadd.f32 %v2756, %v2825
      %v2858 = vadd.f32 %v2757, %v2826
      %v2859 = vadd.f32 %v2758, %v2827
      %v2860 = vadd.f32 %v2759, %v2828
      %v2861 = vadd.f32 %v2760, %v2829
      %v2862 = vadd.f32 %v2761, %v2830
      %v2863 = vadd.f32 %v2762, %v2831
      %v2864 = vadd.f32 %v2763, %v2832
      %v2865 = vadd.f32 %v2764, %v2833
      %v2866 = vadd.f32 %v2765, %v2834
      %v2867 = vld [vmem:[%s6] sm:$0xff]
      %v2868 = vld [vmem:[%s6 + $0x8] sm:$0xff]
      %v2870 = vsel %vm1848, %v2835, 0
      %v2873 = vsel %vm1848, %v2836, 0
      %v2876 = vsel %vm1848, %v2837, 0
      %v2879 = vsel %vm1848, %v2838, 0
      %v2882 = vsel %vm1848, %v2839, 0
      %v2885 = vsel %vm1848, %v2840, 0
      %v2888 = vsel %vm1848, %v2841, 0
      %v2891 = vsel %vm1848, %v2842, 0
      %v2894 = vsel %vm1848, %v2843, 0
      %v2897 = vsel %vm1848, %v2844, 0
      %v2900 = vsel %vm1848, %v2845, 0
      %v2903 = vsel %vm1848, %v2846, 0
      %v2906 = vsel %vm1848, %v2847, 0
      %v2909 = vsel %vm1848, %v2848, 0
      %v2912 = vsel %vm1848, %v2849, 0
      %v2915 = vsel %vm1848, %v2850, 0
      %v2918 = vsel %vm1848, %v2851, 0
      %v2921 = vsel %vm1848, %v2852, 0
      %v2924 = vsel %vm1848, %v2853, 0
      %v2927 = vsel %vm1848, %v2854, 0
      %v2930 = vsel %vm1848, %v2855, 0
      %v2933 = vsel %vm1848, %v2856, 0
      %v2936 = vsel %vm1848, %v2857, 0
      %v2939 = vsel %vm1848, %v2858, 0
      %v2942 = vsel %vm1848, %v2859, 0
      %v2945 = vsel %vm1848, %v2860, 0
      %v2948 = vsel %vm1848, %v2861, 0
      %v2951 = vsel %vm1848, %v2862, 0
      %v2954 = vsel %vm1848, %v2863, 0
      %v2957 = vsel %vm1848, %v2864, 0
      %v2960 = vsel %vm1848, %v2865, 0
      %v2963 = vsel %vm1848, %v2866, 0
      %2965 = vmatprep.subr.mxu0 0.0
      %2966 = vmatpush1.msra.mxu0 0.0
      %2967 = vmatprep.subr.mxu0 0.0
      %2968 = vmatpush1.msra.mxu0 0.0
      %2969 = vmatprep.subr.mxu0 0.0
      %2970 = vmatpush1.msra.mxu0 0.0
      %2971 = vmatprep.subr.mxu0 0.0
      %2972 = vmatpush1.msra.mxu0 0.0
      %2973 = vmatprep.subr.mxu0 0.0
      %2974 = vmatpush1.msra.mxu0 0.0
      %2975 = vmatprep.subr.mxu0 0.0
      %2976 = vmatpush1.msra.mxu0 0.0
      %2977 = vmatprep.subr.mxu0 0.0
      %2978 = vmatpush1.msra.mxu0 0.0
      %2979 = vmatprep.subr.mxu0 0.0
      %2980 = vmatpush1.msra.mxu0 0.0
      %2981 = vmatprep.subr.mxu0 0.0
      %2982 = vmatpush1.msra.mxu0 0.0
      %2983 = vmatprep.subr.mxu0 0.0
      %2984 = vmatpush1.msra.mxu0 0.0
      %2985 = vmatprep.subr.mxu0 0.0
      %2986 = vmatpush1.msra.mxu0 0.0
      %2987 = vmatprep.subr.mxu0 0.0
      %2988 = vmatpush1.msra.mxu0 0.0
      %2989 = vmatprep.subr.mxu0 0.0
      %2990 = vmatpush1.msra.mxu0 0.0
      %2991 = vmatprep.subr.mxu0 0.0
      %2992 = vmatpush1.msra.mxu0 0.0
      %2993 = vmatprep.subr.mxu0 0.0
      %2994 = vmatpush1.msra.mxu0 %v2868
      %2995 = vmatprep.subr.mxu0 0.0
      %2996 = vmatpush1.msra.mxu0 %v2867
      %2997 = vmatprep.subr.mxu0 0.0
      %2998 = vmatpush2.msra.mxu0 0.0
      %2999 = vmatprep.subr.mxu0 0.0
      %3000 = vmatpush2.msra.mxu0 0.0
      %3001 = vmatprep.subr.mxu0 0.0
      %3002 = vmatpush2.msra.mxu0 0.0
      %3003 = vmatprep.subr.mxu0 0.0
      %3004 = vmatpush2.msra.mxu0 0.0
      %3005 = vmatprep.subr.mxu0 0.0
      %3006 = vmatpush2.msra.mxu0 0.0
      %3007 = vmatprep.subr.mxu0 0.0
      %3008 = vmatpush2.msra.mxu0 0.0
      %3009 = vmatprep.subr.mxu0 0.0
      %3010 = vmatpush2.msra.mxu0 0.0
      %3011 = vmatprep.subr.mxu0 0.0
      %3012 = vmatpush2.msra.mxu0 0.0
      %3013 = vmatprep.subr.mxu0 0.0
      %3014 = vmatpush2.msra.mxu0 0.0
      %3015 = vmatprep.subr.mxu0 0.0
      %3016 = vmatpush2.msra.mxu0 0.0
      %3017 = vmatprep.subr.mxu0 0.0
      %3018 = vmatpush2.msra.mxu0 0.0
      %3019 = vmatprep.subr.mxu0 0.0
      %3020 = vmatpush2.msra.mxu0 0.0
      %3021 = vmatprep.subr.mxu0 0.0
      %3022 = vmatpush2.msra.mxu0 0.0
      %3023 = vmatprep.subr.mxu0 0.0
      %3024 = vmatpush2.msra.mxu0 0.0
      %3025 = vmatprep.subr.mxu0 0.0
      %3026 = vmatpush2.msra.mxu0 0.0
      %3027 = vmatprep.subr.mxu0 0.0
      %3028 = vmatpush2.msra.mxu0 0.0
      %3029 = vmatprep.mubr.f32.mxu0 0.0
      %3030 = vmatmul.mubr.f32.gmra.mxu0 %v2870
      %v3031 = vpop.f32.mrf.mxu0
      %v3032 = vadd.f32 0.0, %v3031
      %v3033 = vpop.f32.mrf.mxu0
      %3034 = vmatprep.mubr.f32.mxu0 0.0
      %3035 = vmatmul.mubr.f32.gmra.mxu0 %v2873
      %v3036 = vpop.f32.mrf.mxu0
      %v3037 = vadd.f32 0.0, %v3036
      %v3038 = vpop.f32.mrf.mxu0
      %3039 = vmatprep.mubr.f32.mxu0 0.0
      %3040 = vmatmul.mubr.f32.gmra.mxu0 %v2876
      %v3041 = vpop.f32.mrf.mxu0
      %v3042 = vadd.f32 0.0, %v3041
      %v3043 = vpop.f32.mrf.mxu0
      %3044 = vmatprep.mubr.f32.mxu0 0.0
      %3045 = vmatmul.mubr.f32.gmra.mxu0 %v2879
      %v3046 = vpop.f32.mrf.mxu0
      %v3047 = vadd.f32 0.0, %v3046
      %v3048 = vpop.f32.mrf.mxu0
      %3049 = vmatprep.mubr.f32.mxu0 0.0
      %3050 = vmatmul.mubr.f32.gmra.mxu0 %v2882
      %v3051 = vpop.f32.mrf.mxu0
      %v3052 = vadd.f32 0.0, %v3051
      %v3053 = vpop.f32.mrf.mxu0
      %3054 = vmatprep.mubr.f32.mxu0 0.0
      %3055 = vmatmul.mubr.f32.gmra.mxu0 %v2885
      %v3056 = vpop.f32.mrf.mxu0
      %v3057 = vadd.f32 0.0, %v3056
      %v3058 = vpop.f32.mrf.mxu0
      %3059 = vmatprep.mubr.f32.mxu0 0.0
      %3060 = vmatmul.mubr.f32.gmra.mxu0 %v2888
      %v3061 = vpop.f32.mrf.mxu0
      %v3062 = vadd.f32 0.0, %v3061
      %v3063 = vpop.f32.mrf.mxu0
      %3064 = vmatprep.mubr.f32.mxu0 0.0
      %3065 = vmatmul.mubr.f32.gmra.mxu0 %v2891
      %v3066 = vpop.f32.mrf.mxu0
      %v3067 = vadd.f32 0.0, %v3066
      %v3068 = vpop.f32.mrf.mxu0
      %3069 = vmatprep.mubr.f32.mxu0 0.0
      %3070 = vmatmul.mubr.f32.gmra.mxu0 %v2894
      %v3071 = vpop.f32.mrf.mxu0
      %v3072 = vadd.f32 0.0, %v3071
      %v3073 = vpop.f32.mrf.mxu0
      %3074 = vmatprep.mubr.f32.mxu0 0.0
      %3075 = vmatmul.mubr.f32.gmra.mxu0 %v2897
      %v3076 = vpop.f32.mrf.mxu0
      %v3077 = vadd.f32 0.0, %v3076
      %v3078 = vpop.f32.mrf.mxu0
      %3079 = vmatprep.mubr.f32.mxu0 0.0
      %3080 = vmatmul.mubr.f32.gmra.mxu0 %v2900
      %v3081 = vpop.f32.mrf.mxu0
      %v3082 = vadd.f32 0.0, %v3081
      %v3083 = vpop.f32.mrf.mxu0
      %3084 = vmatprep.mubr.f32.mxu0 0.0
      %3085 = vmatmul.mubr.f32.gmra.mxu0 %v2903
      %v3086 = vpop.f32.mrf.mxu0
      %v3087 = vadd.f32 0.0, %v3086
      %v3088 = vpop.f32.mrf.mxu0
      %3089 = vmatprep.mubr.f32.mxu0 0.0
      %3090 = vmatmul.mubr.f32.gmra.mxu0 %v2906
      %v3091 = vpop.f32.mrf.mxu0
      %v3092 = vadd.f32 0.0, %v3091
      %v3093 = vpop.f32.mrf.mxu0
      %3094 = vmatprep.mubr.f32.mxu0 0.0
      %3095 = vmatmul.mubr.f32.gmra.mxu0 %v2909
      %v3096 = vpop.f32.mrf.mxu0
      %v3097 = vadd.f32 0.0, %v3096
      %v3098 = vpop.f32.mrf.mxu0
      %3099 = vmatprep.mubr.f32.mxu0 0.0
      %3100 = vmatmul.mubr.f32.gmra.mxu0 %v2912
      %v3101 = vpop.f32.mrf.mxu0
      %v3102 = vadd.f32 0.0, %v3101
      %v3103 = vpop.f32.mrf.mxu0
      %3104 = vmatprep.mubr.f32.mxu0 0.0
      %3105 = vmatmul.mubr.f32.gmra.mxu0 %v2915
      %v3106 = vpop.f32.mrf.mxu0
      %v3107 = vadd.f32 0.0, %v3106
      %v3108 = vpop.f32.mrf.mxu0
      %3109 = vmatprep.mubr.f32.mxu0 0.0
      %3110 = vmatmul.mubr.f32.gmra.mxu0 %v2918
      %v3111 = vpop.f32.mrf.mxu0
      %v3112 = vadd.f32 0.0, %v3111
      %v3113 = vpop.f32.mrf.mxu0
      %3114 = vmatprep.mubr.f32.mxu0 0.0
      %3115 = vmatmul.mubr.f32.gmra.mxu0 %v2921
      %v3116 = vpop.f32.mrf.mxu0
      %v3117 = vadd.f32 0.0, %v3116
      %v3118 = vpop.f32.mrf.mxu0
      %3119 = vmatprep.mubr.f32.mxu0 0.0
      %3120 = vmatmul.mubr.f32.gmra.mxu0 %v2924
      %v3121 = vpop.f32.mrf.mxu0
      %v3122 = vadd.f32 0.0, %v3121
      %v3123 = vpop.f32.mrf.mxu0
      %3124 = vmatprep.mubr.f32.mxu0 0.0
      %3125 = vmatmul.mubr.f32.gmra.mxu0 %v2927
      %v3126 = vpop.f32.mrf.mxu0
      %v3127 = vadd.f32 0.0, %v3126
      %v3128 = vpop.f32.mrf.mxu0
      %3129 = vmatprep.mubr.f32.mxu0 0.0
      %3130 = vmatmul.mubr.f32.gmra.mxu0 %v2930
      %v3131 = vpop.f32.mrf.mxu0
      %v3132 = vadd.f32 0.0, %v3131
      %v3133 = vpop.f32.mrf.mxu0
      %3134 = vmatprep.mubr.f32.mxu0 0.0
      %3135 = vmatmul.mubr.f32.gmra.mxu0 %v2933
      %v3136 = vpop.f32.mrf.mxu0
      %v3137 = vadd.f32 0.0, %v3136
      %v3138 = vpop.f32.mrf.mxu0
      %3139 = vmatprep.mubr.f32.mxu0 0.0
      %3140 = vmatmul.mubr.f32.gmra.mxu0 %v2936
      %v3141 = vpop.f32.mrf.mxu0
      %v3142 = vadd.f32 0.0, %v3141
      %v3143 = vpop.f32.mrf.mxu0
      %3144 = vmatprep.mubr.f32.mxu0 0.0
      %3145 = vmatmul.mubr.f32.gmra.mxu0 %v2939
      %v3146 = vpop.f32.mrf.mxu0
      %v3147 = vadd.f32 0.0, %v3146
      %v3148 = vpop.f32.mrf.mxu0
      %3149 = vmatprep.mubr.f32.mxu0 0.0
      %3150 = vmatmul.mubr.f32.gmra.mxu0 %v2942
      %v3151 = vpop.f32.mrf.mxu0
      %v3152 = vadd.f32 0.0, %v3151
      %v3153 = vpop.f32.mrf.mxu0
      %3154 = vmatprep.mubr.f32.mxu0 0.0
      %3155 = vmatmul.mubr.f32.gmra.mxu0 %v2945
      %v3156 = vpop.f32.mrf.mxu0
      %v3157 = vadd.f32 0.0, %v3156
      %v3158 = vpop.f32.mrf.mxu0
      %3159 = vmatprep.mubr.f32.mxu0 0.0
      %3160 = vmatmul.mubr.f32.gmra.mxu0 %v2948
      %v3161 = vpop.f32.mrf.mxu0
      %v3162 = vadd.f32 0.0, %v3161
      %v3163 = vpop.f32.mrf.mxu0
      %3164 = vmatprep.mubr.f32.mxu0 0.0
      %3165 = vmatmul.mubr.f32.gmra.mxu0 %v2951
      %v3166 = vpop.f32.mrf.mxu0
      %v3167 = vadd.f32 0.0, %v3166
      %v3168 = vpop.f32.mrf.mxu0
      %3169 = vmatprep.mubr.f32.mxu0 0.0
      %3170 = vmatmul.mubr.f32.gmra.mxu0 %v2954
      %v3171 = vpop.f32.mrf.mxu0
      %v3172 = vadd.f32 0.0, %v3171
      %v3173 = vpop.f32.mrf.mxu0
      %3174 = vmatprep.mubr.f32.mxu0 0.0
      %3175 = vmatmul.mubr.f32.gmra.mxu0 %v2957
      %v3176 = vpop.f32.mrf.mxu0
      %v3177 = vadd.f32 0.0, %v3176
      %v3178 = vpop.f32.mrf.mxu0
      %3179 = vmatprep.mubr.f32.mxu0 0.0
      %3180 = vmatmul.mubr.f32.gmra.mxu0 %v2960
      %v3181 = vpop.f32.mrf.mxu0
      %v3182 = vadd.f32 0.0, %v3181
      %v3183 = vpop.f32.mrf.mxu0
      %3184 = vmatprep.mubr.f32.mxu0 0.0
      %3185 = vmatmul.mubr.f32.gmra.mxu0 %v2963
      %v3186 = vpop.f32.mrf.mxu0
      %v3187 = vadd.f32 0.0, %v3186
      %v3188 = vpop.f32.mrf.mxu0
      %3189 = vdwg.mxu0
      %v3190 = vld [vmem:[%s7] sm:$0x1]
      %v3192 = vlaneseq
      %v3193 = vshrl.u32 %v3192, 7
      %v3194 = vsub.s32 0, %v3193
      %v3195 = vrot.slane %v3190, %v3194
      %v3197 = vmul.f32 %v3032, %v3195
      %v3198 = vmul.f32 %v3037, %v3195
      %v3199 = vmul.f32 %v3042, %v3195
      %v3200 = vmul.f32 %v3047, %v3195
      %v3201 = vmul.f32 %v3052, %v3195
      %v3202 = vmul.f32 %v3057, %v3195
      %v3203 = vmul.f32 %v3062, %v3195
      %v3204 = vmul.f32 %v3067, %v3195
      %v3205 = vmul.f32 %v3072, %v3195
      %v3206 = vmul.f32 %v3077, %v3195
      %v3207 = vmul.f32 %v3082, %v3195
      %v3208 = vmul.f32 %v3087, %v3195
      %v3209 = vmul.f32 %v3092, %v3195
      %v3210 = vmul.f32 %v3097, %v3195
      %v3211 = vmul.f32 %v3102, %v3195
      %v3212 = vmul.f32 %v3107, %v3195
      %v3213 = vmul.f32 %v3112, %v3195
      %v3214 = vmul.f32 %v3117, %v3195
      %v3215 = vmul.f32 %v3122, %v3195
      %v3216 = vmul.f32 %v3127, %v3195
      %v3217 = vmul.f32 %v3132, %v3195
      %v3218 = vmul.f32 %v3137, %v3195
      %v3219 = vmul.f32 %v3142, %v3195
      %v3220 = vmul.f32 %v3147, %v3195
      %v3221 = vmul.f32 %v3152, %v3195
      %v3222 = vmul.f32 %v3157, %v3195
      %v3223 = vmul.f32 %v3162, %v3195
      %v3224 = vmul.f32 %v3167, %v3195
      %v3225 = vmul.f32 %v3172, %v3195
      %v3226 = vmul.f32 %v3177, %v3195
      %v3227 = vmul.f32 %v3182, %v3195
      %v3228 = vmul.f32 %v3187, %v3195
      %v3229 = vld [vmem:[%s8] sm:$0x1]
      %v3231 = vlaneseq
      %v3232 = vshrl.u32 %v3231, 7
      %v3233 = vsub.s32 0, %v3232
      %v3234 = vrot.slane %v3229, %v3233
      %v3236 = vadd.f32 %v3197, %v3234
      %v3237 = vadd.f32 %v3198, %v3234
      %v3238 = vadd.f32 %v3199, %v3234
      %v3239 = vadd.f32 %v3200, %v3234
      %v3240 = vadd.f32 %v3201, %v3234
      %v3241 = vadd.f32 %v3202, %v3234
      %v3242 = vadd.f32 %v3203, %v3234
      %v3243 = vadd.f32 %v3204, %v3234
      %v3244 = vadd.f32 %v3205, %v3234
      %v3245 = vadd.f32 %v3206, %v3234
      %v3246 = vadd.f32 %v3207, %v3234
      %v3247 = vadd.f32 %v3208, %v3234
      %v3248 = vadd.f32 %v3209, %v3234
      %v3249 = vadd.f32 %v3210, %v3234
      %v3250 = vadd.f32 %v3211, %v3234
      %v3251 = vadd.f32 %v3212, %v3234
      %v3252 = vadd.f32 %v3213, %v3234
      %v3253 = vadd.f32 %v3214, %v3234
      %v3254 = vadd.f32 %v3215, %v3234
      %v3255 = vadd.f32 %v3216, %v3234
      %v3256 = vadd.f32 %v3217, %v3234
      %v3257 = vadd.f32 %v3218, %v3234
      %v3258 = vadd.f32 %v3219, %v3234
      %v3259 = vadd.f32 %v3220, %v3234
      %v3260 = vadd.f32 %v3221, %v3234
      %v3261 = vadd.f32 %v3222, %v3234
      %v3262 = vadd.f32 %v3223, %v3234
      %v3263 = vadd.f32 %v3224, %v3234
      %v3264 = vadd.f32 %v3225, %v3234
      %v3265 = vadd.f32 %v3226, %v3234
      %v3266 = vadd.f32 %v3227, %v3234
      %v3267 = vadd.f32 %v3228, %v3234
      %3268 = vst.msk [vmem:[#allocation4] sm:$0xff] %vm1848, -inf
      %3269 = vst.msk [vmem:[#allocation4 + $0x8] sm:$0xff] %vm1848, -inf
      %3270 = vst.msk [vmem:[#allocation4 + $0x10] sm:$0xff] %vm1848, -inf
      %3271 = vst.msk [vmem:[#allocation4 + $0x18] sm:$0x1] %vm1852, -inf
      %3272 = vst.msk [vmem:[#allocation4 + $0x20] sm:$0xff] %vm1848, -inf
      %3273 = vst.msk [vmem:[#allocation4 + $0x28] sm:$0xff] %vm1848, -inf
      %3274 = vst.msk [vmem:[#allocation4 + $0x30] sm:$0xff] %vm1848, -inf
      %3275 = vst.msk [vmem:[#allocation4 + $0x38] sm:$0x1] %vm1852, -inf
      %3276 = vst.msk [vmem:[#allocation4 + $0x40] sm:$0xff] %vm1848, -inf
      %3277 = vst.msk [vmem:[#allocation4 + $0x48] sm:$0xff] %vm1848, -inf
      %3278 = vst.msk [vmem:[#allocation4 + $0x50] sm:$0xff] %vm1848, -inf
      %3279 = vst.msk [vmem:[#allocation4 + $0x58] sm:$0x1] %vm1852, -inf
      %3280 = vst.msk [vmem:[#allocation4 + $0x60] sm:$0xff] %vm1848, -inf
      %3281 = vst.msk [vmem:[#allocation4 + $0x68] sm:$0xff] %vm1848, -inf
      %3282 = vst.msk [vmem:[#allocation4 + $0x70] sm:$0xff] %vm1848, -inf
      %3283 = vst.msk [vmem:[#allocation4 + $0x78] sm:$0x1] %vm1852, -inf
      %3284 = vst.msk [vmem:[#allocation4 + $0x80] sm:$0xff] %vm1848, -inf
      %3285 = vst.msk [vmem:[#allocation4 + $0x88] sm:$0xff] %vm1848, -inf
      %3286 = vst.msk [vmem:[#allocation4 + $0x90] sm:$0xff] %vm1848, -inf
      %3287 = vst.msk [vmem:[#allocation4 + $0x98] sm:$0x1] %vm1852, -inf
      %3288 = vst.msk [vmem:[#allocation4 + $0xa0] sm:$0xff] %vm1848, -inf
      %3289 = vst.msk [vmem:[#allocation4 + $0xa8] sm:$0xff] %vm1848, -inf
      %3290 = vst.msk [vmem:[#allocation4 + $0xb0] sm:$0xff] %vm1848, -inf
      %3291 = vst.msk [vmem:[#allocation4 + $0xb8] sm:$0x1] %vm1852, -inf
      %3292 = vst.msk [vmem:[#allocation4 + $0xc0] sm:$0xff] %vm1848, -inf
      %3293 = vst.msk [vmem:[#allocation4 + $0xc8] sm:$0xff] %vm1848, -inf
      %3294 = vst.msk [vmem:[#allocation4 + $0xd0] sm:$0xff] %vm1848, -inf
      %3295 = vst.msk [vmem:[#allocation4 + $0xd8] sm:$0x1] %vm1852, -inf
      %3296 = vst.msk [vmem:[#allocation4 + $0xe0] sm:$0xff] %vm1848, -inf
      %3297 = vst.msk [vmem:[#allocation4 + $0xe8] sm:$0xff] %vm1848, -inf
      %3298 = vst.msk [vmem:[#allocation4 + $0xf0] sm:$0xff] %vm1848, -inf
      %3299 = vst.msk [vmem:[#allocation4 + $0xf8] sm:$0x1] %vm1852, -inf
      %3300 = vst.msk [vmem:[#allocation4 + $0x100] sm:$0xff] %vm1848, -inf
      %3301 = vst.msk [vmem:[#allocation4 + $0x108] sm:$0xff] %vm1848, -inf
      %3302 = vst.msk [vmem:[#allocation4 + $0x110] sm:$0xff] %vm1848, -inf
      %3303 = vst.msk [vmem:[#allocation4 + $0x118] sm:$0x1] %vm1852, -inf
      %3304 = vst.msk [vmem:[#allocation4 + $0x120] sm:$0xff] %vm1848, -inf
      %3305 = vst.msk [vmem:[#allocation4 + $0x128] sm:$0xff] %vm1848, -inf
      %3306 = vst.msk [vmem:[#allocation4 + $0x130] sm:$0xff] %vm1848, -inf
      %3307 = vst.msk [vmem:[#allocation4 + $0x138] sm:$0x1] %vm1852, -inf
      %3308 = vst.msk [vmem:[#allocation4 + $0x140] sm:$0xff] %vm1848, -inf
      %3309 = vst.msk [vmem:[#allocation4 + $0x148] sm:$0xff] %vm1848, -inf
      %3310 = vst.msk [vmem:[#allocation4 + $0x150] sm:$0xff] %vm1848, -inf
      %3311 = vst.msk [vmem:[#allocation4 + $0x158] sm:$0x1] %vm1852, -inf
      %3312 = vst.msk [vmem:[#allocation4 + $0x160] sm:$0xff] %vm1848, -inf
      %3313 = vst.msk [vmem:[#allocation4 + $0x168] sm:$0xff] %vm1848, -inf
      %3314 = vst.msk [vmem:[#allocation4 + $0x170] sm:$0xff] %vm1848, -inf
      %3315 = vst.msk [vmem:[#allocation4 + $0x178] sm:$0x1] %vm1852, -inf
      %3316 = vst.msk [vmem:[#allocation4 + $0x180] sm:$0xff] %vm1848, -inf
      %3317 = vst.msk [vmem:[#allocation4 + $0x188] sm:$0xff] %vm1848, -inf
      %3318 = vst.msk [vmem:[#allocation4 + $0x190] sm:$0xff] %vm1848, -inf
      %3319 = vst.msk [vmem:[#allocation4 + $0x198] sm:$0x1] %vm1852, -inf
      %3320 = vst.msk [vmem:[#allocation4 + $0x1a0] sm:$0xff] %vm1848, -inf
      %3321 = vst.msk [vmem:[#allocation4 + $0x1a8] sm:$0xff] %vm1848, -inf
      %3322 = vst.msk [vmem:[#allocation4 + $0x1b0] sm:$0xff] %vm1848, -inf
      %3323 = vst.msk [vmem:[#allocation4 + $0x1b8] sm:$0x1] %vm1852, -inf
      %3324 = vst.msk [vmem:[#allocation4 + $0x1c0] sm:$0xff] %vm1848, -inf
      %3325 = vst.msk [vmem:[#allocation4 + $0x1c8] sm:$0xff] %vm1848, -inf
      %3326 = vst.msk [vmem:[#allocation4 + $0x1d0] sm:$0xff] %vm1848, -inf
      %3327 = vst.msk [vmem:[#allocation4 + $0x1d8] sm:$0x1] %vm1852, -inf
      %3328 = vst.msk [vmem:[#allocation4 + $0x1e0] sm:$0xff] %vm1848, -inf
      %3329 = vst.msk [vmem:[#allocation4 + $0x1e8] sm:$0xff] %vm1848, -inf
      %3330 = vst.msk [vmem:[#allocation4 + $0x1f0] sm:$0xff] %vm1848, -inf
      %3331 = vst.msk [vmem:[#allocation4 + $0x1f8] sm:$0x1] %vm1852, -inf
      %3332 = vst.msk [vmem:[#allocation4 + $0x200] sm:$0xff] %vm1848, -inf
      %3333 = vst.msk [vmem:[#allocation4 + $0x208] sm:$0xff] %vm1848, -inf
      %3334 = vst.msk [vmem:[#allocation4 + $0x210] sm:$0xff] %vm1848, -inf
      %3335 = vst.msk [vmem:[#allocation4 + $0x218] sm:$0x1] %vm1852, -inf
      %3336 = vst.msk [vmem:[#allocation4 + $0x220] sm:$0xff] %vm1848, -inf
      %3337 = vst.msk [vmem:[#allocation4 + $0x228] sm:$0xff] %vm1848, -inf
      %3338 = vst.msk [vmem:[#allocation4 + $0x230] sm:$0xff] %vm1848, -inf
      %3339 = vst.msk [vmem:[#allocation4 + $0x238] sm:$0x1] %vm1852, -inf
      %s3340 = scalar_lea.vmem [#allocation4], 32
      %3341 = vst.msk [vmem:[%s3340 + $0x8] sm:$0xff] %vm1848, %v3236
      %3342 = vst.msk [vmem:[%s3340 + $0x10] sm:$0xff] %vm1848, %v3237
      %3343 = vst.msk [vmem:[%s3340 + $0x28] sm:$0xff] %vm1848, %v3238
      %3344 = vst.msk [vmem:[%s3340 + $0x30] sm:$0xff] %vm1848, %v3239
      %3345 = vst.msk [vmem:[%s3340 + $0x48] sm:$0xff] %vm1848, %v3240
      %3346 = vst.msk [vmem:[%s3340 + $0x50] sm:$0xff] %vm1848, %v3241
      %3347 = vst.msk [vmem:[%s3340 + $0x68] sm:$0xff] %vm1848, %v3242
      %3348 = vst.msk [vmem:[%s3340 + $0x70] sm:$0xff] %vm1848, %v3243
      %3349 = vst.msk [vmem:[%s3340 + $0x88] sm:$0xff] %vm1848, %v3244
      %3350 = vst.msk [vmem:[%s3340 + $0x90] sm:$0xff] %vm1848, %v3245
      %3351 = vst.msk [vmem:[%s3340 + $0xa8] sm:$0xff] %vm1848, %v3246
      %3352 = vst.msk [vmem:[%s3340 + $0xb0] sm:$0xff] %vm1848, %v3247
      %3353 = vst.msk [vmem:[%s3340 + $0xc8] sm:$0xff] %vm1848, %v3248
      %3354 = vst.msk [vmem:[%s3340 + $0xd0] sm:$0xff] %vm1848, %v3249
      %3355 = vst.msk [vmem:[%s3340 + $0xe8] sm:$0xff] %vm1848, %v3250
      %3356 = vst.msk [vmem:[%s3340 + $0xf0] sm:$0xff] %vm1848, %v3251
      %3357 = vst.msk [vmem:[%s3340 + $0x108] sm:$0xff] %vm1848, %v3252
      %3358 = vst.msk [vmem:[%s3340 + $0x110] sm:$0xff] %vm1848, %v3253
      %3359 = vst.msk [vmem:[%s3340 + $0x128] sm:$0xff] %vm1848, %v3254
      %3360 = vst.msk [vmem:[%s3340 + $0x130] sm:$0xff] %vm1848, %v3255
      %3361 = vst.msk [vmem:[%s3340 + $0x148] sm:$0xff] %vm1848, %v3256
      %3362 = vst.msk [vmem:[%s3340 + $0x150] sm:$0xff] %vm1848, %v3257
      %3363 = vst.msk [vmem:[%s3340 + $0x168] sm:$0xff] %vm1848, %v3258
      %3364 = vst.msk [vmem:[%s3340 + $0x170] sm:$0xff] %vm1848, %v3259
      %3365 = vst.msk [vmem:[%s3340 + $0x188] sm:$0xff] %vm1848, %v3260
      %3366 = vst.msk [vmem:[%s3340 + $0x190] sm:$0xff] %vm1848, %v3261
      %3367 = vst.msk [vmem:[%s3340 + $0x1a8] sm:$0xff] %vm1848, %v3262
      %3368 = vst.msk [vmem:[%s3340 + $0x1b0] sm:$0xff] %vm1848, %v3263
      %3369 = vst.msk [vmem:[%s3340 + $0x1c8] sm:$0xff] %vm1848, %v3264
      %3370 = vst.msk [vmem:[%s3340 + $0x1d0] sm:$0xff] %vm1848, %v3265
      %3371 = vst.msk [vmem:[%s3340 + $0x1e8] sm:$0xff] %vm1848, %v3266
      %3372 = vst.msk [vmem:[%s3340 + $0x1f0] sm:$0xff] %vm1848, %v3267
      %v3373 = vld [vmem:[#allocation4 + $0x7] sm:$0xff]
      %v3374 = vld [vmem:[#allocation4 + $0xf] sm:$0xff]
      %v3375 = vld [vmem:[#allocation4 + $0x27] sm:$0xff]
      %v3376 = vld [vmem:[#allocation4 + $0x2f] sm:$0xff]
      %v3377 = vld [vmem:[#allocation4 + $0x47] sm:$0xff]
      %v3378 = vld [vmem:[#allocation4 + $0x4f] sm:$0xff]
      %v3379 = vld [vmem:[#allocation4 + $0x67] sm:$0xff]
      %v3380 = vld [vmem:[#allocation4 + $0x6f] sm:$0xff]
      %v3381 = vld [vmem:[#allocation4 + $0x87] sm:$0xff]
      %v3382 = vld [vmem:[#allocation4 + $0x8f] sm:$0xff]
      %v3383 = vld [vmem:[#allocation4 + $0xa7] sm:$0xff]
      %v3384 = vld [vmem:[#allocation4 + $0xaf] sm:$0xff]
      %v3385 = vld [vmem:[#allocation4 + $0xc7] sm:$0xff]
      %v3386 = vld [vmem:[#allocation4 + $0xcf] sm:$0xff]
      %v3387 = vld [vmem:[#allocation4 + $0xe7] sm:$0xff]
      %v3388 = vld [vmem:[#allocation4 + $0xef] sm:$0xff]
      %v3389 = vld [vmem:[#allocation4 + $0x107] sm:$0xff]
      %v3390 = vld [vmem:[#allocation4 + $0x10f] sm:$0xff]
      %v3391 = vld [vmem:[#allocation4 + $0x127] sm:$0xff]
      %v3392 = vld [vmem:[#allocation4 + $0x12f] sm:$0xff]
      %v3393 = vld [vmem:[#allocation4 + $0x147] sm:$0xff]
      %v3394 = vld [vmem:[#allocation4 + $0x14f] sm:$0xff]
      %v3395 = vld [vmem:[#allocation4 + $0x167] sm:$0xff]
      %v3396 = vld [vmem:[#allocation4 + $0x16f] sm:$0xff]
      %v3397 = vld [vmem:[#allocation4 + $0x187] sm:$0xff]
      %v3398 = vld [vmem:[#allocation4 + $0x18f] sm:$0xff]
      %v3399 = vld [vmem:[#allocation4 + $0x1a7] sm:$0xff]
      %v3400 = vld [vmem:[#allocation4 + $0x1af] sm:$0xff]
      %v3401 = vld [vmem:[#allocation4 + $0x1c7] sm:$0xff]
      %v3402 = vld [vmem:[#allocation4 + $0x1cf] sm:$0xff]
      %v3403 = vld [vmem:[#allocation4 + $0x1e7] sm:$0xff]
      %v3404 = vld [vmem:[#allocation4 + $0x1ef] sm:$0xff]
      %v3405 = vmax.f32 %v3236, %v3373
      %v3406 = vmax.f32 %v3237, %v3374
      %v3407 = vmax.f32 %v3238, %v3375
      %v3408 = vmax.f32 %v3239, %v3376
      %v3409 = vmax.f32 %v3240, %v3377
      %v3410 = vmax.f32 %v3241, %v3378
      %v3411 = vmax.f32 %v3242, %v3379
      %v3412 = vmax.f32 %v3243, %v3380
      %v3413 = vmax.f32 %v3244, %v3381
      %v3414 = vmax.f32 %v3245, %v3382
      %v3415 = vmax.f32 %v3246, %v3383
      %v3416 = vmax.f32 %v3247, %v3384
      %v3417 = vmax.f32 %v3248, %v3385
      %v3418 = vmax.f32 %v3249, %v3386
      %v3419 = vmax.f32 %v3250, %v3387
      %v3420 = vmax.f32 %v3251, %v3388
      %v3421 = vmax.f32 %v3252, %v3389
      %v3422 = vmax.f32 %v3253, %v3390
      %v3423 = vmax.f32 %v3254, %v3391
      %v3424 = vmax.f32 %v3255, %v3392
      %v3425 = vmax.f32 %v3256, %v3393
      %v3426 = vmax.f32 %v3257, %v3394
      %v3427 = vmax.f32 %v3258, %v3395
      %v3428 = vmax.f32 %v3259, %v3396
      %v3429 = vmax.f32 %v3260, %v3397
      %v3430 = vmax.f32 %v3261, %v3398
      %v3431 = vmax.f32 %v3262, %v3399
      %v3432 = vmax.f32 %v3263, %v3400
      %v3433 = vmax.f32 %v3264, %v3401
      %v3434 = vmax.f32 %v3265, %v3402
      %v3435 = vmax.f32 %v3266, %v3403
      %v3436 = vmax.f32 %v3267, %v3404
      %v3437 = vld [vmem:[#allocation4 + $0x8] sm:$0xff]
      %v3438 = vld [vmem:[#allocation4 + $0x10] sm:$0xff]
      %v3439 = vld [vmem:[#allocation4 + $0x28] sm:$0xff]
      %v3440 = vld [vmem:[#allocation4 + $0x30] sm:$0xff]
      %v3441 = vld [vmem:[#allocation4 + $0x48] sm:$0xff]
      %v3442 = vld [vmem:[#allocation4 + $0x50] sm:$0xff]
      %v3443 = vld [vmem:[#allocation4 + $0x68] sm:$0xff]
      %v3444 = vld [vmem:[#allocation4 + $0x70] sm:$0xff]
      %v3445 = vld [vmem:[#allocation4 + $0x88] sm:$0xff]
      %v3446 = vld [vmem:[#allocation4 + $0x90] sm:$0xff]
      %v3447 = vld [vmem:[#allocation4 + $0xa8] sm:$0xff]
      %v3448 = vld [vmem:[#allocation4 + $0xb0] sm:$0xff]
      %v3449 = vld [vmem:[#allocation4 + $0xc8] sm:$0xff]
      %v3450 = vld [vmem:[#allocation4 + $0xd0] sm:$0xff]
      %v3451 = vld [vmem:[#allocation4 + $0xe8] sm:$0xff]
      %v3452 = vld [vmem:[#allocation4 + $0xf0] sm:$0xff]
      %v3453 = vld [vmem:[#allocation4 + $0x108] sm:$0xff]
      %v3454 = vld [vmem:[#allocation4 + $0x110] sm:$0xff]
      %v3455 = vld [vmem:[#allocation4 + $0x128] sm:$0xff]
      %v3456 = vld [vmem:[#allocation4 + $0x130] sm:$0xff]
      %v3457 = vld [vmem:[#allocation4 + $0x148] sm:$0xff]
      %v3458 = vld [vmem:[#allocation4 + $0x150] sm:$0xff]
      %v3459 = vld [vmem:[#allocation4 + $0x168] sm:$0xff]
      %v3460 = vld [vmem:[#allocation4 + $0x170] sm:$0xff]
      %v3461 = vld [vmem:[#allocation4 + $0x188] sm:$0xff]
      %v3462 = vld [vmem:[#allocation4 + $0x190] sm:$0xff]
      %v3463 = vld [vmem:[#allocation4 + $0x1a8] sm:$0xff]
      %v3464 = vld [vmem:[#allocation4 + $0x1b0] sm:$0xff]
      %v3465 = vld [vmem:[#allocation4 + $0x1c8] sm:$0xff]
      %v3466 = vld [vmem:[#allocation4 + $0x1d0] sm:$0xff]
      %v3467 = vld [vmem:[#allocation4 + $0x1e8] sm:$0xff]
      %v3468 = vld [vmem:[#allocation4 + $0x1f0] sm:$0xff]
      %v3469 = vmax.f32 %v3405, %v3437
      %v3470 = vmax.f32 %v3406, %v3438
      %v3471 = vmax.f32 %v3407, %v3439
      %v3472 = vmax.f32 %v3408, %v3440
      %v3473 = vmax.f32 %v3409, %v3441
      %v3474 = vmax.f32 %v3410, %v3442
      %v3475 = vmax.f32 %v3411, %v3443
      %v3476 = vmax.f32 %v3412, %v3444
      %v3477 = vmax.f32 %v3413, %v3445
      %v3478 = vmax.f32 %v3414, %v3446
      %v3479 = vmax.f32 %v3415, %v3447
      %v3480 = vmax.f32 %v3416, %v3448
      %v3481 = vmax.f32 %v3417, %v3449
      %v3482 = vmax.f32 %v3418, %v3450
      %v3483 = vmax.f32 %v3419, %v3451
      %v3484 = vmax.f32 %v3420, %v3452
      %v3485 = vmax.f32 %v3421, %v3453
      %v3486 = vmax.f32 %v3422, %v3454
      %v3487 = vmax.f32 %v3423, %v3455
      %v3488 = vmax.f32 %v3424, %v3456
      %v3489 = vmax.f32 %v3425, %v3457
      %v3490 = vmax.f32 %v3426, %v3458
      %v3491 = vmax.f32 %v3427, %v3459
      %v3492 = vmax.f32 %v3428, %v3460
      %v3493 = vmax.f32 %v3429, %v3461
      %v3494 = vmax.f32 %v3430, %v3462
      %v3495 = vmax.f32 %v3431, %v3463
      %v3496 = vmax.f32 %v3432, %v3464
      %v3497 = vmax.f32 %v3433, %v3465
      %v3498 = vmax.f32 %v3434, %v3466
      %v3499 = vmax.f32 %v3435, %v3467
      %v3500 = vmax.f32 %v3436, %v3468
      %v3501 = vld [vmem:[#allocation4 + $0x9] sm:$0xff]
      %v3502 = vld [vmem:[#allocation4 + $0x11] sm:$0xff]
      %v3503 = vld [vmem:[#allocation4 + $0x29] sm:$0xff]
      %v3504 = vld [vmem:[#allocation4 + $0x31] sm:$0xff]
      %v3505 = vld [vmem:[#allocation4 + $0x49] sm:$0xff]
      %v3506 = vld [vmem:[#allocation4 + $0x51] sm:$0xff]
      %v3507 = vld [vmem:[#allocation4 + $0x69] sm:$0xff]
      %v3508 = vld [vmem:[#allocation4 + $0x71] sm:$0xff]
      %v3509 = vld [vmem:[#allocation4 + $0x89] sm:$0xff]
      %v3510 = vld [vmem:[#allocation4 + $0x91] sm:$0xff]
      %v3511 = vld [vmem:[#allocation4 + $0xa9] sm:$0xff]
      %v3512 = vld [vmem:[#allocation4 + $0xb1] sm:$0xff]
      %v3513 = vld [vmem:[#allocation4 + $0xc9] sm:$0xff]
      %v3514 = vld [vmem:[#allocation4 + $0xd1] sm:$0xff]
      %v3515 = vld [vmem:[#allocation4 + $0xe9] sm:$0xff]
      %v3516 = vld [vmem:[#allocation4 + $0xf1] sm:$0xff]
      %v3517 = vld [vmem:[#allocation4 + $0x109] sm:$0xff]
      %v3518 = vld [vmem:[#allocation4 + $0x111] sm:$0xff]
      %v3519 = vld [vmem:[#allocation4 + $0x129] sm:$0xff]
      %v3520 = vld [vmem:[#allocation4 + $0x131] sm:$0xff]
      %v3521 = vld [vmem:[#allocation4 + $0x149] sm:$0xff]
      %v3522 = vld [vmem:[#allocation4 + $0x151] sm:$0xff]
      %v3523 = vld [vmem:[#allocation4 + $0x169] sm:$0xff]
      %v3524 = vld [vmem:[#allocation4 + $0x171] sm:$0xff]
      %v3525 = vld [vmem:[#allocation4 + $0x189] sm:$0xff]
      %v3526 = vld [vmem:[#allocation4 + $0x191] sm:$0xff]
      %v3527 = vld [vmem:[#allocation4 + $0x1a9] sm:$0xff]
      %v3528 = vld [vmem:[#allocation4 + $0x1b1] sm:$0xff]
      %v3529 = vld [vmem:[#allocation4 + $0x1c9] sm:$0xff]
      %v3530 = vld [vmem:[#allocation4 + $0x1d1] sm:$0xff]
      %v3531 = vld [vmem:[#allocation4 + $0x1e9] sm:$0xff]
      %v3532 = vld [vmem:[#allocation4 + $0x1f1] sm:$0xff]
      %v3533 = vmax.f32 %v3469, %v3501
      %v3534 = vmax.f32 %v3470, %v3502
      %v3535 = vmax.f32 %v3471, %v3503
      %v3536 = vmax.f32 %v3472, %v3504
      %v3537 = vmax.f32 %v3473, %v3505
      %v3538 = vmax.f32 %v3474, %v3506
      %v3539 = vmax.f32 %v3475, %v3507
      %v3540 = vmax.f32 %v3476, %v3508
      %v3541 = vmax.f32 %v3477, %v3509
      %v3542 = vmax.f32 %v3478, %v3510
      %v3543 = vmax.f32 %v3479, %v3511
      %v3544 = vmax.f32 %v3480, %v3512
      %v3545 = vmax.f32 %v3481, %v3513
      %v3546 = vmax.f32 %v3482, %v3514
      %v3547 = vmax.f32 %v3483, %v3515
      %v3548 = vmax.f32 %v3484, %v3516
      %v3549 = vmax.f32 %v3485, %v3517
      %v3550 = vmax.f32 %v3486, %v3518
      %v3551 = vmax.f32 %v3487, %v3519
      %v3552 = vmax.f32 %v3488, %v3520
      %v3553 = vmax.f32 %v3489, %v3521
      %v3554 = vmax.f32 %v3490, %v3522
      %v3555 = vmax.f32 %v3491, %v3523
      %v3556 = vmax.f32 %v3492, %v3524
      %v3557 = vmax.f32 %v3493, %v3525
      %v3558 = vmax.f32 %v3494, %v3526
      %v3559 = vmax.f32 %v3495, %v3527
      %v3560 = vmax.f32 %v3496, %v3528
      %v3561 = vmax.f32 %v3497, %v3529
      %v3562 = vmax.f32 %v3498, %v3530
      %v3563 = vmax.f32 %v3499, %v3531
      %v3564 = vmax.f32 %v3500, %v3532
      %v3565 = vld [vmem:[%s3340 + $0x7] sm:$0xff]
      %v3566 = vld [vmem:[%s3340 + $0xf] sm:$0xff]
      %v3567 = vld [vmem:[%s3340 + $0x27] sm:$0xff]
      %v3568 = vld [vmem:[%s3340 + $0x2f] sm:$0xff]
      %v3569 = vld [vmem:[%s3340 + $0x47] sm:$0xff]
      %v3570 = vld [vmem:[%s3340 + $0x4f] sm:$0xff]
      %v3571 = vld [vmem:[%s3340 + $0x67] sm:$0xff]
      %v3572 = vld [vmem:[%s3340 + $0x6f] sm:$0xff]
      %v3573 = vld [vmem:[%s3340 + $0x87] sm:$0xff]
      %v3574 = vld [vmem:[%s3340 + $0x8f] sm:$0xff]
      %v3575 = vld [vmem:[%s3340 + $0xa7] sm:$0xff]
      %v3576 = vld [vmem:[%s3340 + $0xaf] sm:$0xff]
      %v3577 = vld [vmem:[%s3340 + $0xc7] sm:$0xff]
      %v3578 = vld [vmem:[%s3340 + $0xcf] sm:$0xff]
      %v3579 = vld [vmem:[%s3340 + $0xe7] sm:$0xff]
      %v3580 = vld [vmem:[%s3340 + $0xef] sm:$0xff]
      %v3581 = vld [vmem:[%s3340 + $0x107] sm:$0xff]
      %v3582 = vld [vmem:[%s3340 + $0x10f] sm:$0xff]
      %v3583 = vld [vmem:[%s3340 + $0x127] sm:$0xff]
      %v3584 = vld [vmem:[%s3340 + $0x12f] sm:$0xff]
      %v3585 = vld [vmem:[%s3340 + $0x147] sm:$0xff]
      %v3586 = vld [vmem:[%s3340 + $0x14f] sm:$0xff]
      %v3587 = vld [vmem:[%s3340 + $0x167] sm:$0xff]
      %v3588 = vld [vmem:[%s3340 + $0x16f] sm:$0xff]
      %v3589 = vld [vmem:[%s3340 + $0x187] sm:$0xff]
      %v3590 = vld [vmem:[%s3340 + $0x18f] sm:$0xff]
      %v3591 = vld [vmem:[%s3340 + $0x1a7] sm:$0xff]
      %v3592 = vld [vmem:[%s3340 + $0x1af] sm:$0xff]
      %v3593 = vld [vmem:[%s3340 + $0x1c7] sm:$0xff]
      %v3594 = vld [vmem:[%s3340 + $0x1cf] sm:$0xff]
      %v3595 = vld [vmem:[%s3340 + $0x1e7] sm:$0xff]
      %v3596 = vld [vmem:[%s3340 + $0x1ef] sm:$0xff]
      %v3597 = vmax.f32 %v3533, %v3565
      %v3598 = vmax.f32 %v3534, %v3566
      %v3599 = vmax.f32 %v3535, %v3567
      %v3600 = vmax.f32 %v3536, %v3568
      %v3601 = vmax.f32 %v3537, %v3569
      %v3602 = vmax.f32 %v3538, %v3570
      %v3603 = vmax.f32 %v3539, %v3571
      %v3604 = vmax.f32 %v3540, %v3572
      %v3605 = vmax.f32 %v3541, %v3573
      %v3606 = vmax.f32 %v3542, %v3574
      %v3607 = vmax.f32 %v3543, %v3575
      %v3608 = vmax.f32 %v3544, %v3576
      %v3609 = vmax.f32 %v3545, %v3577
      %v3610 = vmax.f32 %v3546, %v3578
      %v3611 = vmax.f32 %v3547, %v3579
      %v3612 = vmax.f32 %v3548, %v3580
      %v3613 = vmax.f32 %v3549, %v3581
      %v3614 = vmax.f32 %v3550, %v3582
      %v3615 = vmax.f32 %v3551, %v3583
      %v3616 = vmax.f32 %v3552, %v3584
      %v3617 = vmax.f32 %v3553, %v3585
      %v3618 = vmax.f32 %v3554, %v3586
      %v3619 = vmax.f32 %v3555, %v3587
      %v3620 = vmax.f32 %v3556, %v3588
      %v3621 = vmax.f32 %v3557, %v3589
      %v3622 = vmax.f32 %v3558, %v3590
      %v3623 = vmax.f32 %v3559, %v3591
      %v3624 = vmax.f32 %v3560, %v3592
      %v3625 = vmax.f32 %v3561, %v3593
      %v3626 = vmax.f32 %v3562, %v3594
      %v3627 = vmax.f32 %v3563, %v3595
      %v3628 = vmax.f32 %v3564, %v3596
      %v3629 = vld [vmem:[%s3340 + $0x9] sm:$0xff]
      %v3630 = vld [vmem:[%s3340 + $0x11] sm:$0xff]
      %v3631 = vld [vmem:[%s3340 + $0x29] sm:$0xff]
      %v3632 = vld [vmem:[%s3340 + $0x31] sm:$0xff]
      %v3633 = vld [vmem:[%s3340 + $0x49] sm:$0xff]
      %v3634 = vld [vmem:[%s3340 + $0x51] sm:$0xff]
      %v3635 = vld [vmem:[%s3340 + $0x69] sm:$0xff]
      %v3636 = vld [vmem:[%s3340 + $0x71] sm:$0xff]
      %v3637 = vld [vmem:[%s3340 + $0x89] sm:$0xff]
      %v3638 = vld [vmem:[%s3340 + $0x91] sm:$0xff]
      %v3639 = vld [vmem:[%s3340 + $0xa9] sm:$0xff]
      %v3640 = vld [vmem:[%s3340 + $0xb1] sm:$0xff]
      %v3641 = vld [vmem:[%s3340 + $0xc9] sm:$0xff]
      %v3642 = vld [vmem:[%s3340 + $0xd1] sm:$0xff]
      %v3643 = vld [vmem:[%s3340 + $0xe9] sm:$0xff]
      %v3644 = vld [vmem:[%s3340 + $0xf1] sm:$0xff]
      %v3645 = vld [vmem:[%s3340 + $0x109] sm:$0xff]
      %v3646 = vld [vmem:[%s3340 + $0x111] sm:$0xff]
      %v3647 = vld [vmem:[%s3340 + $0x129] sm:$0xff]
      %v3648 = vld [vmem:[%s3340 + $0x131] sm:$0xff]
      %v3649 = vld [vmem:[%s3340 + $0x149] sm:$0xff]
      %v3650 = vld [vmem:[%s3340 + $0x151] sm:$0xff]
      %v3651 = vld [vmem:[%s3340 + $0x169] sm:$0xff]
      %v3652 = vld [vmem:[%s3340 + $0x171] sm:$0xff]
      %v3653 = vld [vmem:[%s3340 + $0x189] sm:$0xff]
      %v3654 = vld [vmem:[%s3340 + $0x191] sm:$0xff]
      %v3655 = vld [vmem:[%s3340 + $0x1a9] sm:$0xff]
      %v3656 = vld [vmem:[%s3340 + $0x1b1] sm:$0xff]
      %v3657 = vld [vmem:[%s3340 + $0x1c9] sm:$0xff]
      %v3658 = vld [vmem:[%s3340 + $0x1d1] sm:$0xff]
      %v3659 = vld [vmem:[%s3340 + $0x1e9] sm:$0xff]
      %v3660 = vld [vmem:[%s3340 + $0x1f1] sm:$0xff]
      %v3661 = vmax.f32 %v3597, %v3629
      %v3662 = vmax.f32 %v3598, %v3630
      %v3663 = vmax.f32 %v3599, %v3631
      %v3664 = vmax.f32 %v3600, %v3632
      %v3665 = vmax.f32 %v3601, %v3633
      %v3666 = vmax.f32 %v3602, %v3634
      %v3667 = vmax.f32 %v3603, %v3635
      %v3668 = vmax.f32 %v3604, %v3636
      %v3669 = vmax.f32 %v3605, %v3637
      %v3670 = vmax.f32 %v3606, %v3638
      %v3671 = vmax.f32 %v3607, %v3639
      %v3672 = vmax.f32 %v3608, %v3640
      %v3673 = vmax.f32 %v3609, %v3641
      %v3674 = vmax.f32 %v3610, %v3642
      %v3675 = vmax.f32 %v3611, %v3643
      %v3676 = vmax.f32 %v3612, %v3644
      %v3677 = vmax.f32 %v3613, %v3645
      %v3678 = vmax.f32 %v3614, %v3646
      %v3679 = vmax.f32 %v3615, %v3647
      %v3680 = vmax.f32 %v3616, %v3648
      %v3681 = vmax.f32 %v3617, %v3649
      %v3682 = vmax.f32 %v3618, %v3650
      %v3683 = vmax.f32 %v3619, %v3651
      %v3684 = vmax.f32 %v3620, %v3652
      %v3685 = vmax.f32 %v3621, %v3653
      %v3686 = vmax.f32 %v3622, %v3654
      %v3687 = vmax.f32 %v3623, %v3655
      %v3688 = vmax.f32 %v3624, %v3656
      %v3689 = vmax.f32 %v3625, %v3657
      %v3690 = vmax.f32 %v3626, %v3658
      %v3691 = vmax.f32 %v3627, %v3659
      %v3692 = vmax.f32 %v3628, %v3660
      %s3693 = scalar_lea.vmem [#allocation4], 64
      %v3694 = vld [vmem:[%s3693 + $0x7] sm:$0xff]
      %v3695 = vld [vmem:[%s3693 + $0xf] sm:$0xff]
      %v3696 = vld [vmem:[%s3693 + $0x27] sm:$0xff]
      %v3697 = vld [vmem:[%s3693 + $0x2f] sm:$0xff]
      %v3698 = vld [vmem:[%s3693 + $0x47] sm:$0xff]
      %v3699 = vld [vmem:[%s3693 + $0x4f] sm:$0xff]
      %v3700 = vld [vmem:[%s3693 + $0x67] sm:$0xff]
      %v3701 = vld [vmem:[%s3693 + $0x6f] sm:$0xff]
      %v3702 = vld [vmem:[%s3693 + $0x87] sm:$0xff]
      %v3703 = vld [vmem:[%s3693 + $0x8f] sm:$0xff]
      %v3704 = vld [vmem:[%s3693 + $0xa7] sm:$0xff]
      %v3705 = vld [vmem:[%s3693 + $0xaf] sm:$0xff]
      %v3706 = vld [vmem:[%s3693 + $0xc7] sm:$0xff]
      %v3707 = vld [vmem:[%s3693 + $0xcf] sm:$0xff]
      %v3708 = vld [vmem:[%s3693 + $0xe7] sm:$0xff]
      %v3709 = vld [vmem:[%s3693 + $0xef] sm:$0xff]
      %v3710 = vld [vmem:[%s3693 + $0x107] sm:$0xff]
      %v3711 = vld [vmem:[%s3693 + $0x10f] sm:$0xff]
      %v3712 = vld [vmem:[%s3693 + $0x127] sm:$0xff]
      %v3713 = vld [vmem:[%s3693 + $0x12f] sm:$0xff]
      %v3714 = vld [vmem:[%s3693 + $0x147] sm:$0xff]
      %v3715 = vld [vmem:[%s3693 + $0x14f] sm:$0xff]
      %v3716 = vld [vmem:[%s3693 + $0x167] sm:$0xff]
      %v3717 = vld [vmem:[%s3693 + $0x16f] sm:$0xff]
      %v3718 = vld [vmem:[%s3693 + $0x187] sm:$0xff]
      %v3719 = vld [vmem:[%s3693 + $0x18f] sm:$0xff]
      %v3720 = vld [vmem:[%s3693 + $0x1a7] sm:$0xff]
      %v3721 = vld [vmem:[%s3693 + $0x1af] sm:$0xff]
      %v3722 = vld [vmem:[%s3693 + $0x1c7] sm:$0xff]
      %v3723 = vld [vmem:[%s3693 + $0x1cf] sm:$0xff]
      %v3724 = vld [vmem:[%s3693 + $0x1e7] sm:$0xff]
      %v3725 = vld [vmem:[%s3693 + $0x1ef] sm:$0xff]
      %v3726 = vmax.f32 %v3661, %v3694
      %v3727 = vmax.f32 %v3662, %v3695
      %v3728 = vmax.f32 %v3663, %v3696
      %v3729 = vmax.f32 %v3664, %v3697
      %v3730 = vmax.f32 %v3665, %v3698
      %v3731 = vmax.f32 %v3666, %v3699
      %v3732 = vmax.f32 %v3667, %v3700
      %v3733 = vmax.f32 %v3668, %v3701
      %v3734 = vmax.f32 %v3669, %v3702
      %v3735 = vmax.f32 %v3670, %v3703
      %v3736 = vmax.f32 %v3671, %v3704
      %v3737 = vmax.f32 %v3672, %v3705
      %v3738 = vmax.f32 %v3673, %v3706
      %v3739 = vmax.f32 %v3674, %v3707
      %v3740 = vmax.f32 %v3675, %v3708
      %v3741 = vmax.f32 %v3676, %v3709
      %v3742 = vmax.f32 %v3677, %v3710
      %v3743 = vmax.f32 %v3678, %v3711
      %v3744 = vmax.f32 %v3679, %v3712
      %v3745 = vmax.f32 %v3680, %v3713
      %v3746 = vmax.f32 %v3681, %v3714
      %v3747 = vmax.f32 %v3682, %v3715
      %v3748 = vmax.f32 %v3683, %v3716
      %v3749 = vmax.f32 %v3684, %v3717
      %v3750 = vmax.f32 %v3685, %v3718
      %v3751 = vmax.f32 %v3686, %v3719
      %v3752 = vmax.f32 %v3687, %v3720
      %v3753 = vmax.f32 %v3688, %v3721
      %v3754 = vmax.f32 %v3689, %v3722
      %v3755 = vmax.f32 %v3690, %v3723
      %v3756 = vmax.f32 %v3691, %v3724
      %v3757 = vmax.f32 %v3692, %v3725
      %v3758 = vld [vmem:[%s3693 + $0x8] sm:$0xff]
      %v3759 = vld [vmem:[%s3693 + $0x10] sm:$0xff]
      %v3760 = vld [vmem:[%s3693 + $0x28] sm:$0xff]
      %v3761 = vld [vmem:[%s3693 + $0x30] sm:$0xff]
      %v3762 = vld [vmem:[%s3693 + $0x48] sm:$0xff]
      %v3763 = vld [vmem:[%s3693 + $0x50] sm:$0xff]
      %v3764 = vld [vmem:[%s3693 + $0x68] sm:$0xff]
      %v3765 = vld [vmem:[%s3693 + $0x70] sm:$0xff]
      %v3766 = vld [vmem:[%s3693 + $0x88] sm:$0xff]
      %v3767 = vld [vmem:[%s3693 + $0x90] sm:$0xff]
      %v3768 = vld [vmem:[%s3693 + $0xa8] sm:$0xff]
      %v3769 = vld [vmem:[%s3693 + $0xb0] sm:$0xff]
      %v3770 = vld [vmem:[%s3693 + $0xc8] sm:$0xff]
      %v3771 = vld [vmem:[%s3693 + $0xd0] sm:$0xff]
      %v3772 = vld [vmem:[%s3693 + $0xe8] sm:$0xff]
      %v3773 = vld [vmem:[%s3693 + $0xf0] sm:$0xff]
      %v3774 = vld [vmem:[%s3693 + $0x108] sm:$0xff]
      %v3775 = vld [vmem:[%s3693 + $0x110] sm:$0xff]
      %v3776 = vld [vmem:[%s3693 + $0x128] sm:$0xff]
      %v3777 = vld [vmem:[%s3693 + $0x130] sm:$0xff]
      %v3778 = vld [vmem:[%s3693 + $0x148] sm:$0xff]
      %v3779 = vld [vmem:[%s3693 + $0x150] sm:$0xff]
      %v3780 = vld [vmem:[%s3693 + $0x168] sm:$0xff]
      %v3781 = vld [vmem:[%s3693 + $0x170] sm:$0xff]
      %v3782 = vld [vmem:[%s3693 + $0x188] sm:$0xff]
      %v3783 = vld [vmem:[%s3693 + $0x190] sm:$0xff]
      %v3784 = vld [vmem:[%s3693 + $0x1a8] sm:$0xff]
      %v3785 = vld [vmem:[%s3693 + $0x1b0] sm:$0xff]
      %v3786 = vld [vmem:[%s3693 + $0x1c8] sm:$0xff]
      %v3787 = vld [vmem:[%s3693 + $0x1d0] sm:$0xff]
      %v3788 = vld [vmem:[%s3693 + $0x1e8] sm:$0xff]
      %v3789 = vld [vmem:[%s3693 + $0x1f0] sm:$0xff]
      %v3790 = vmax.f32 %v3726, %v3758
      %v3791 = vmax.f32 %v3727, %v3759
      %v3792 = vmax.f32 %v3728, %v3760
      %v3793 = vmax.f32 %v3729, %v3761
      %v3794 = vmax.f32 %v3730, %v3762
      %v3795 = vmax.f32 %v3731, %v3763
      %v3796 = vmax.f32 %v3732, %v3764
      %v3797 = vmax.f32 %v3733, %v3765
      %v3798 = vmax.f32 %v3734, %v3766
      %v3799 = vmax.f32 %v3735, %v3767
      %v3800 = vmax.f32 %v3736, %v3768
      %v3801 = vmax.f32 %v3737, %v3769
      %v3802 = vmax.f32 %v3738, %v3770
      %v3803 = vmax.f32 %v3739, %v3771
      %v3804 = vmax.f32 %v3740, %v3772
      %v3805 = vmax.f32 %v3741, %v3773
      %v3806 = vmax.f32 %v3742, %v3774
      %v3807 = vmax.f32 %v3743, %v3775
      %v3808 = vmax.f32 %v3744, %v3776
      %v3809 = vmax.f32 %v3745, %v3777
      %v3810 = vmax.f32 %v3746, %v3778
      %v3811 = vmax.f32 %v3747, %v3779
      %v3812 = vmax.f32 %v3748, %v3780
      %v3813 = vmax.f32 %v3749, %v3781
      %v3814 = vmax.f32 %v3750, %v3782
      %v3815 = vmax.f32 %v3751, %v3783
      %v3816 = vmax.f32 %v3752, %v3784
      %v3817 = vmax.f32 %v3753, %v3785
      %v3818 = vmax.f32 %v3754, %v3786
      %v3819 = vmax.f32 %v3755, %v3787
      %v3820 = vmax.f32 %v3756, %v3788
      %v3821 = vmax.f32 %v3757, %v3789
      %v3822 = vld [vmem:[%s3693 + $0x9] sm:$0xff]
      %v3823 = vld [vmem:[%s3693 + $0x11] sm:$0xff]
      %v3824 = vld [vmem:[%s3693 + $0x29] sm:$0xff]
      %v3825 = vld [vmem:[%s3693 + $0x31] sm:$0xff]
      %v3826 = vld [vmem:[%s3693 + $0x49] sm:$0xff]
      %v3827 = vld [vmem:[%s3693 + $0x51] sm:$0xff]
      %v3828 = vld [vmem:[%s3693 + $0x69] sm:$0xff]
      %v3829 = vld [vmem:[%s3693 + $0x71] sm:$0xff]
      %v3830 = vld [vmem:[%s3693 + $0x89] sm:$0xff]
      %v3831 = vld [vmem:[%s3693 + $0x91] sm:$0xff]
      %v3832 = vld [vmem:[%s3693 + $0xa9] sm:$0xff]
      %v3833 = vld [vmem:[%s3693 + $0xb1] sm:$0xff]
      %v3834 = vld [vmem:[%s3693 + $0xc9] sm:$0xff]
      %v3835 = vld [vmem:[%s3693 + $0xd1] sm:$0xff]
      %v3836 = vld [vmem:[%s3693 + $0xe9] sm:$0xff]
      %v3837 = vld [vmem:[%s3693 + $0xf1] sm:$0xff]
      %v3838 = vld [vmem:[%s3693 + $0x109] sm:$0xff]
      %v3839 = vld [vmem:[%s3693 + $0x111] sm:$0xff]
      %v3840 = vld [vmem:[%s3693 + $0x129] sm:$0xff]
      %v3841 = vld [vmem:[%s3693 + $0x131] sm:$0xff]
      %v3842 = vld [vmem:[%s3693 + $0x149] sm:$0xff]
      %v3843 = vld [vmem:[%s3693 + $0x151] sm:$0xff]
      %v3844 = vld [vmem:[%s3693 + $0x169] sm:$0xff]
      %v3845 = vld [vmem:[%s3693 + $0x171] sm:$0xff]
      %v3846 = vld [vmem:[%s3693 + $0x189] sm:$0xff]
      %v3847 = vld [vmem:[%s3693 + $0x191] sm:$0xff]
      %v3848 = vld [vmem:[%s3693 + $0x1a9] sm:$0xff]
      %v3849 = vld [vmem:[%s3693 + $0x1b1] sm:$0xff]
      %v3850 = vld [vmem:[%s3693 + $0x1c9] sm:$0xff]
      %v3851 = vld [vmem:[%s3693 + $0x1d1] sm:$0xff]
      %v3852 = vld [vmem:[%s3693 + $0x1e9] sm:$0xff]
      %v3853 = vld [vmem:[%s3693 + $0x1f1] sm:$0xff]
      %v3854 = vmax.f32 %v3790, %v3822
      %v3855 = vmax.f32 %v3791, %v3823
      %v3856 = vmax.f32 %v3792, %v3824
      %v3857 = vmax.f32 %v3793, %v3825
      %v3858 = vmax.f32 %v3794, %v3826
      %v3859 = vmax.f32 %v3795, %v3827
      %v3860 = vmax.f32 %v3796, %v3828
      %v3861 = vmax.f32 %v3797, %v3829
      %v3862 = vmax.f32 %v3798, %v3830
      %v3863 = vmax.f32 %v3799, %v3831
      %v3864 = vmax.f32 %v3800, %v3832
      %v3865 = vmax.f32 %v3801, %v3833
      %v3866 = vmax.f32 %v3802, %v3834
      %v3867 = vmax.f32 %v3803, %v3835
      %v3868 = vmax.f32 %v3804, %v3836
      %v3869 = vmax.f32 %v3805, %v3837
      %v3870 = vmax.f32 %v3806, %v3838
      %v3871 = vmax.f32 %v3807, %v3839
      %v3872 = vmax.f32 %v3808, %v3840
      %v3873 = vmax.f32 %v3809, %v3841
      %v3874 = vmax.f32 %v3810, %v3842
      %v3875 = vmax.f32 %v3811, %v3843
      %v3876 = vmax.f32 %v3812, %v3844
      %v3877 = vmax.f32 %v3813, %v3845
      %v3878 = vmax.f32 %v3814, %v3846
      %v3879 = vmax.f32 %v3815, %v3847
      %v3880 = vmax.f32 %v3816, %v3848
      %v3881 = vmax.f32 %v3817, %v3849
      %v3882 = vmax.f32 %v3818, %v3850
      %v3883 = vmax.f32 %v3819, %v3851
      %v3884 = vmax.f32 %v3820, %v3852
      %v3885 = vmax.f32 %v3821, %v3853
      %3886 = vst.msk [vmem:[%s332] sm:$0xff] %vm1848, %v3854
      %3887 = vst.msk [vmem:[%s332 + $0x8] sm:$0xff] %vm1848, %v3855
      %3888 = vst.msk [vmem:[%s332 + $0x10] sm:$0xff] %vm1848, %v3856
      %3889 = vst.msk [vmem:[%s332 + $0x18] sm:$0xff] %vm1848, %v3857
      %3890 = vst.msk [vmem:[%s332 + $0x20] sm:$0xff] %vm1848, %v3858
      %3891 = vst.msk [vmem:[%s332 + $0x28] sm:$0xff] %vm1848, %v3859
      %3892 = vst.msk [vmem:[%s332 + $0x30] sm:$0xff] %vm1848, %v3860
      %3893 = vst.msk [vmem:[%s332 + $0x38] sm:$0xff] %vm1848, %v3861
      %3894 = vst.msk [vmem:[%s332 + $0x40] sm:$0xff] %vm1848, %v3862
      %3895 = vst.msk [vmem:[%s332 + $0x48] sm:$0xff] %vm1848, %v3863
      %3896 = vst.msk [vmem:[%s332 + $0x50] sm:$0xff] %vm1848, %v3864
      %3897 = vst.msk [vmem:[%s332 + $0x58] sm:$0xff] %vm1848, %v3865
      %3898 = vst.msk [vmem:[%s332 + $0x60] sm:$0xff] %vm1848, %v3866
      %3899 = vst.msk [vmem:[%s332 + $0x68] sm:$0xff] %vm1848, %v3867
      %3900 = vst.msk [vmem:[%s332 + $0x70] sm:$0xff] %vm1848, %v3868
      %3901 = vst.msk [vmem:[%s332 + $0x78] sm:$0xff] %vm1848, %v3869
      %3902 = vst.msk [vmem:[%s332 + $0x80] sm:$0xff] %vm1848, %v3870
      %3903 = vst.msk [vmem:[%s332 + $0x88] sm:$0xff] %vm1848, %v3871
      %3904 = vst.msk [vmem:[%s332 + $0x90] sm:$0xff] %vm1848, %v3872
      %3905 = vst.msk [vmem:[%s332 + $0x98] sm:$0xff] %vm1848, %v3873
      %3906 = vst.msk [vmem:[%s332 + $0xa0] sm:$0xff] %vm1848, %v3874
      %3907 = vst.msk [vmem:[%s332 + $0xa8] sm:$0xff] %vm1848, %v3875
      %3908 = vst.msk [vmem:[%s332 + $0xb0] sm:$0xff] %vm1848, %v3876
      %3909 = vst.msk [vmem:[%s332 + $0xb8] sm:$0xff] %vm1848, %v3877
      %3910 = vst.msk [vmem:[%s332 + $0xc0] sm:$0xff] %vm1848, %v3878
      %3911 = vst.msk [vmem:[%s332 + $0xc8] sm:$0xff] %vm1848, %v3879
      %3912 = vst.msk [vmem:[%s332 + $0xd0] sm:$0xff] %vm1848, %v3880
      %3913 = vst.msk [vmem:[%s332 + $0xd8] sm:$0xff] %vm1848, %v3881
      %3914 = vst.msk [vmem:[%s332 + $0xe0] sm:$0xff] %vm1848, %v3882
      %3915 = vst.msk [vmem:[%s332 + $0xe8] sm:$0xff] %vm1848, %v3883
      %3916 = vst.msk [vmem:[%s332 + $0xf0] sm:$0xff] %vm1848, %v3884
      %3917 = vst.msk [vmem:[%s332 + $0xf8] sm:$0xff] %vm1848, %v3885
      %p3918 = scmp.lt.s32.totalorder %s20, 1
      %s3919 = scalar_select %p3918, %s20, 1
      %s3920 = smul.addr %s3919, 32
      %s3921 = smul.addr %s3920, 8
      %s3922 = scalar_lea.vmem %s9, %s3921
      // Predicated region
      $region57: #{block_forward.2} parent=55 // pred_check
        %p3923 = pneg %p232
      $region58: #{block_forward.2} parent=55 // pred_check_branch
        %3925 = sbr.rel (%p3923) target = $region60
      $region59: #{block_forward.2} parent=55 // pred_region
        _
      $region60: #{block_forward.2} parent=55 // pred_fallthru
        _
    $region56: #{block_forward.2} parent=5 // pred_fallthru
      _
    %p3926 = scmp.le.s32.totalorder 2, %s15
    // Predicated region
    $region61: #{block_forward.2} parent=5 // pred_check
      %p3927 = pneg %p3926
    $region62: #{block_forward.2} parent=5 // pred_check_branch
      %3929 = sbr.rel (%p3927) target = $region64
    $region63: #{block_forward.2} parent=5 // pred_region
      %s3930 = ssub.s32 %s15, 2
      // Predicated region
      $region65: #{block_forward.2} parent=63 // pred_check
        %p3931 = pneg %p238
      $region66: #{block_forward.2} parent=63 // pred_check_branch
        %3933 = sbr.rel (%p3931) target = $region68
      $region67: #{block_forward.2} parent=63 // pred_region
        %p3934 = scmp.lt.s32.totalorder %s21, 1
        %s3935 = scalar_select %p3934, %s21, 1
        %s3936 = smul.addr %s3935, 32
        %s3937 = smul.addr %s3936, 8
        %s3938 = scalar_lea.vmem %s9, %s3937
      $region68: #{block_forward.2} parent=63 // pred_fallthru
        _
    $region64: #{block_forward.2} parent=5 // pred_fallthru
      _
  $region6: #{block_forward.2} parent=0 // loop_footer
    %s19 = sadd.s32 1, %s15
  $region7: #{block_forward.2} parent=0 // loop_footer_branch
    %14 = sbr.rel target = $region3
  $region8: #{block_forward.2} parent=0 // loop_exit
    _

</llo_original>
